<compile_context>
chip_gen: v7x
topology: tpu7x:2x2x1
jax: 0.10.0
libtpu: 0.0.40
codegen_flags: <defaults>
</compile_context>

<pallas_src>
import jax
import jax.numpy as jnp
import numpy as np
from jax.experimental import pallas as pl
from jax.experimental.pallas import tpu as pltpu

VMEM_LIMIT_BYTES = 32 * 1024 * 1024  # explicit (>= v5e default, safe on v6e/v7x)


def _round_up(x, m):
    return (x + m - 1) // m * m


# ----------------------------------------------------------------------------
# Kernel 1: gridded matmul + bias + ReLU  (squeeze 1x1 conv)
# ----------------------------------------------------------------------------
def _matmul_bias_relu_kernel(x_ref, w_ref, b_ref, o_ref):
    # x: (tm, K) bf16, w: (K, N) bf16, b: (1, N) f32 -> relu(x @ w + b)
    acc = jnp.dot(x_ref[...], w_ref[...], preferred_element_type=jnp.float32)
    o_ref[...] = jnp.maximum(acc + b_ref[...], 0.0).astype(o_ref.dtype)


def matmul_bias_relu(x, w, b, *, tm=256, out_dtype=jnp.bfloat16):
    """relu(x @ w + b), M tiled into `tm`-row blocks, bf16 MXU inputs."""
    M, K = x.shape
    K2, N = w.shape
    assert K == K2
    Mp = _round_up(M, tm)
    if Mp != M:
        x = jnp.pad(x, ((0, Mp - M), (0, 0)))
    xb = x.astype(jnp.bfloat16)
    wb = w.astype(jnp.bfloat16)
    bf = b.reshape(1, N).astype(jnp.float32)

    out = pl.pallas_call(
        _matmul_bias_relu_kernel,
        out_shape=jax.ShapeDtypeStruct((Mp, N), out_dtype),
        grid=(Mp // tm,),
        in_specs=[
            pl.BlockSpec((tm, K), lambda i: (i, 0)),
            pl.BlockSpec((K, N), lambda i: (0, 0)),
            pl.BlockSpec((1, N), lambda i: (0, 0)),
        ],
        out_specs=pl.BlockSpec((tm, N), lambda i: (i, 0)),
        compiler_params=pltpu.CompilerParams(
            dimension_semantics=("parallel",),
            vmem_limit_bytes=VMEM_LIMIT_BYTES),
    )(xb, wb, bf)
    return out[:M]


# ----------------------------------------------------------------------------
# Kernel 2: fused expand1x1 + expand3x3 + channel concat (per batch element)
# ----------------------------------------------------------------------------
def _fire_expand_kernel(sp_ref, w1_ref, b1_ref, w3_ref, b3_ref, o_ref):
    # sp_ref: (1, H+2, W+2, Cs) bf16  -- spatially padded squeeze activations
    # w1_ref: (Cs, C1) bf16,  b1_ref: (1, C1) f32
    # w3_ref: (9, Cs, C3) bf16, b3_ref: (1, C3) f32
    # o_ref : (1, H, W, C1+C3) f32
    H, W = o_ref.shape[1], o_ref.shape[2]
    C1, C3 = b1_ref.shape[1], b3_ref.shape[1]
    Cs = w1_ref.shape[0]

    xp = sp_ref[0]                                        # (H+2, W+2, Cs) in VMEM

    # expand1x1 branch on the center (un-shifted) window.
    center = xp[1:1 + H, 1:1 + W, :].reshape(H * W, Cs)
    y1 = jnp.dot(center, w1_ref[...], preferred_element_type=jnp.float32)
    y1 = jnp.maximum(y1 + b1_ref[...], 0.0)

    # expand3x3 branch: stream the 9 taps, accumulate in f32 (no im2col in HBM).
    acc = jnp.zeros((H * W, C3), jnp.float32)
    for t in range(9):
        di, dj = t // 3, t % 3
        xt = xp[di:di + H, dj:dj + W, :].reshape(H * W, Cs)
        acc = acc + jnp.dot(xt, w3_ref[t], preferred_element_type=jnp.float32)
    y3 = jnp.maximum(acc + b3_ref[...], 0.0)

    # Lane-dense concatenated output (C1 + C3 channels) written in one store.
    y = jnp.concatenate([y1, y3], axis=-1)
    o_ref[...] = y.reshape(1, H, W, C1 + C3).astype(o_ref.dtype)


# ----------------------------------------------------------------------------
# Fire forward (NCHW in / NCHW out, like the PyTorch module)
# ----------------------------------------------------------------------------
def fire_forward(x_nchw, params, *, tm=256):
    N, Cin, H, W = x_nchw.shape
    x = jnp.transpose(x_nchw, (0, 2, 3, 1))               # NCHW -> NHWC

    # --- squeeze: 1x1 conv + ReLU as a gridded matmul --------------------
    ws = params["squeeze"]["w"]                           # (Cs, Cin, 1, 1)
    Cs = ws.shape[0]
    ws_mat = ws.reshape(Cs, Cin).T                        # (Cin, Cs)
    s2d = matmul_bias_relu(x.reshape(N * H * W, Cin), ws_mat,
                           params["squeeze"]["b"], tm=tm)
    s = s2d.reshape(N, H, W, Cs)                          # bf16 activations

    # --- expand branches (fused kernel, grid over batch) -----------------
    sp = jnp.pad(s, ((0, 0), (1, 1), (1, 1), (0, 0)))     # pad=1 for the 3x3 conv

    w1t = params["expand1x1"]["w"]                        # (C1, Cs, 1, 1)
    C1 = w1t.shape[0]
    w1 = w1t.reshape(C1, Cs).T.astype(jnp.bfloat16)       # (Cs, C1)
    b1 = params["expand1x1"]["b"].reshape(1, C1).astype(jnp.float32)

    w3t = params["expand3x3"]["w"]                        # (C3, Cs, 3, 3)
    C3 = w3t.shape[0]
    w3 = jnp.transpose(w3t, (2, 3, 1, 0)).reshape(9, Cs, C3).astype(jnp.bfloat16)
    b3 = params["expand3x3"]["b"].reshape(1, C3).astype(jnp.float32)

    # NOTE: each grid step keeps one padded image of squeeze activations in VMEM;
    # for very large H*W this kernel would additionally tile spatial rows (halo).
    out = pl.pallas_call(
        _fire_expand_kernel,
        out_shape=jax.ShapeDtypeStruct((N, H, W, C1 + C3), jnp.float32),
        grid=(N,),
        in_specs=[
            pl.BlockSpec((1, H + 2, W + 2, Cs), lambda n: (n, 0, 0, 0)),
            pl.BlockSpec((Cs, C1), lambda n: (0, 0)),
            pl.BlockSpec((1, C1), lambda n: (0, 0)),
            pl.BlockSpec((9, Cs, C3), lambda n: (0, 0, 0)),
            pl.BlockSpec((1, C3), lambda n: (0, 0)),
        ],
        out_specs=pl.BlockSpec((1, H, W, C1 + C3), lambda n: (n, 0, 0, 0)),
        compiler_params=pltpu.CompilerParams(
            dimension_semantics=("parallel",),
            vmem_limit_bytes=VMEM_LIMIT_BYTES),
    )(sp, w1, b1, w3, b3)

    return jnp.transpose(out, (0, 3, 1, 2))               # NHWC -> NCHW


# ----------------------------------------------------------------------------
# Parameter init (matches nn.Conv2d default uniform(-1/sqrt(fan_in), ...))
# ----------------------------------------------------------------------------
def init_fire(key, inplanes, squeeze_planes, expand1x1_planes, expand3x3_planes):
    ks = jax.random.split(key, 6)

    def conv(kw, kb, cout, cin, kh, kww):
        bound = 1.0 / np.sqrt(cin * kh * kww)
        return dict(
            w=jax.random.uniform(kw, (cout, cin, kh, kww), jnp.float32, -bound, bound),
            b=jax.random.uniform(kb, (cout,), jnp.float32, -bound, bound),
        )

    return dict(
        squeeze=conv(ks[0], ks[1], squeeze_planes, inplanes, 1, 1),
        expand1x1=conv(ks[2], ks[3], expand1x1_planes, squeeze_planes, 1, 1),
        expand3x3=conv(ks[4], ks[5], expand3x3_planes, squeeze_planes, 3, 3),
    )


# ----------------------------------------------------------------------------
# Pure-JAX reference (for correctness check)
# ----------------------------------------------------------------------------
def fire_ref(x, params):
    def conv_relu(xx, p, pad):
        y = jax.lax.conv_general_dilated(
            xx, p["w"], window_strides=(1, 1),
            padding=[(pad, pad), (pad, pad)],
            dimension_numbers=("NCHW", "OIHW", "NCHW"),
            precision=jax.lax.Precision.HIGHEST)
        return jnp.maximum(y + p["b"][None, :, None, None], 0.0)

    s = conv_relu(x, params["squeeze"], 0)
    return jnp.concatenate([conv_relu(s, params["expand1x1"], 0),
                            conv_relu(s, params["expand3x3"], 1)], axis=1)


# ----------------------------------------------------------------------------
if __name__ == "__main__":
    key = jax.random.PRNGKey(0)
    k_x, k_p = jax.random.split(key)

    N, C_in, H, W = 2, 32, 16, 16
    SQ, E1, E3 = 16, 64, 64

    x = jax.random.normal(k_x, (N, C_in, H, W), jnp.float32)   # NCHW like PyTorch
    params = init_fire(k_p, C_in, SQ, E1, E3)

    fwd = jax.jit(fire_forward)
    out = jax.block_until_ready(fwd(x, params))
    assert out.shape == (N, E1 + E3, H, W), out.shape

    ref = jax.block_until_ready(jax.jit(fire_ref)(x, params))
    np.testing.assert_allclose(np.asarray(out), np.asarray(ref), rtol=3e-2, atol=3e-2)

    print("KERNEL_OK")
</pallas_src>

<mosaic_0001>
module attributes {stable_mosaic.version = 11 : i64} {
  func.func @_matmul_bias_relu_kernel(%arg0: i32, %arg1: memref<256x32xbf16, #tpu.memory_space<vmem>>, %arg2: memref<32x16xbf16, #tpu.memory_space<vmem>>, %arg3: memref<1x16xf32, #tpu.memory_space<vmem>>, %arg4: memref<256x16xbf16, #tpu.memory_space<vmem>>) attributes {dimension_semantics = [#tpu.dimension_semantics<parallel>], iteration_bounds = array<i64: 2>, scalar_prefetch = 0 : i64, scratch_operands = 0 : i64, tpu.core_type = #tpu.core_type<tc>, window_params = [{transform_indices = @transform_0, window_bounds = array<i64: 256, 32>}, {pipeline_mode = #tpu.pipeline_mode<synchronous>, transform_indices = @transform_1, window_bounds = array<i64: 32, 16>}, {pipeline_mode = #tpu.pipeline_mode<synchronous>, transform_indices = @transform_2, window_bounds = array<i64: 1, 16>}, {transform_indices = @transform_3, window_bounds = array<i64: 256, 16>}]} {
    %c0 = arith.constant 0 : index
    %c0_0 = arith.constant 0 : index
    %0 = vector.load %arg1[%c0, %c0_0] : memref<256x32xbf16, #tpu.memory_space<vmem>>, vector<256x32xbf16>
    %c0_1 = arith.constant 0 : index
    %c0_2 = arith.constant 0 : index
    %1 = vector.load %arg2[%c0_1, %c0_2] : memref<32x16xbf16, #tpu.memory_space<vmem>>, vector<32x16xbf16>
    %cst = arith.constant dense<0.000000e+00> : vector<256x16xf32>
    %2 = tpu.matmul %0, %1, %cst {dimension_numbers = #tpu.dot_dimension_numbers<[1], [0], [0], [1], [0, 0, 1, 1], [], []>} : vector<256x32xbf16>, vector<32x16xbf16>, vector<256x16xf32> -> vector<256x16xf32>
    %c0_3 = arith.constant 0 : index
    %c0_4 = arith.constant 0 : index
    %3 = vector.load %arg3[%c0_3, %c0_4] : memref<1x16xf32, #tpu.memory_space<vmem>>, vector<1x16xf32>
    %4 = vector.broadcast %3 : vector<1x16xf32> to vector<256x16xf32>
    %5 = arith.addf %2, %4 : vector<256x16xf32>
    %cst_5 = arith.constant 0.000000e+00 : f32
    %6 = vector.broadcast %cst_5 : f32 to vector<256x16xf32>
    %7 = arith.maximumf %5, %6 : vector<256x16xf32>
    %8 = arith.truncf %7 : vector<256x16xf32> to vector<256x16xbf16>
    %c0_6 = arith.constant 0 : index
    %c0_7 = arith.constant 0 : index
    %9 = vector.load %arg4[%c0_6, %c0_7] : memref<256x16xbf16, #tpu.memory_space<vmem>>, vector<256x16xbf16>
    tpu.vector_store %arg4[%c0_6, %c0_7], %8 {strides = array<i32>} : memref<256x16xbf16, #tpu.memory_space<vmem>>, vector<256x16xbf16>,
    return
  }
  func.func @transform_0(%arg0: i32) -> (i32, i32) {
    %c0_i32 = arith.constant 0 : i32
    %c0_i32_0 = arith.constant 0 : i32
    return %arg0, %c0_i32 : i32, i32
  }
  func.func @transform_1(%arg0: i32) -> (i32, i32) {
    %c0_i32 = arith.constant 0 : i32
    %c0_i32_0 = arith.constant 0 : i32
    %c0_i32_1 = arith.constant 0 : i32
    return %c0_i32, %c0_i32_0 : i32, i32
  }
  func.func @transform_2(%arg0: i32) -> (i32, i32) {
    %c0_i32 = arith.constant 0 : i32
    %c0_i32_0 = arith.constant 0 : i32
    %c0_i32_1 = arith.constant 0 : i32
    return %c0_i32, %c0_i32_0 : i32, i32
  }
  func.func @transform_3(%arg0: i32) -> (i32, i32) {
    %c0_i32 = arith.constant 0 : i32
    %c0_i32_0 = arith.constant 0 : i32
    return %arg0, %c0_i32 : i32, i32
  }
}

module attributes {stable_mosaic.version = 11 : i64} {
  func.func @_fire_expand_kernel(%arg0: i32, %arg1: memref<1x18x18x16xbf16, #tpu.memory_space<vmem>>, %arg2: memref<16x64xbf16, #tpu.memory_space<vmem>>, %arg3: memref<1x64xf32, #tpu.memory_space<vmem>>, %arg4: memref<9x16x64xbf16, #tpu.memory_space<vmem>>, %arg5: memref<1x64xf32, #tpu.memory_space<vmem>>, %arg6: memref<1x16x16x128xf32, #tpu.memory_space<vmem>>) attributes {dimension_semantics = [#tpu.dimension_semantics<parallel>], iteration_bounds = array<i64: 2>, scalar_prefetch = 0 : i64, scratch_operands = 0 : i64, tpu.core_type = #tpu.core_type<tc>, window_params = [{transform_indices = @transform_0, window_bounds = array<i64: 1, 18, 18, 16>}, {pipeline_mode = #tpu.pipeline_mode<synchronous>, transform_indices = @transform_1, window_bounds = array<i64: 16, 64>}, {pipeline_mode = #tpu.pipeline_mode<synchronous>, transform_indices = @transform_2, window_bounds = array<i64: 1, 64>}, {pipeline_mode = #tpu.pipeline_mode<synchronous>, transform_indices = @transform_3, window_bounds = array<i64: 9, 16, 64>}, {pipeline_mode = #tpu.pipeline_mode<synchronous>, transform_indices = @transform_4, window_bounds = array<i64: 1, 64>}, {transform_indices = @transform_5, window_bounds = array<i64: 1, 16, 16, 128>}]} {
    %c0 = arith.constant 0 : index
    %c0_0 = arith.constant 0 : index
    %c0_1 = arith.constant 0 : index
    %c0_2 = arith.constant 0 : index
    %0 = vector.load %arg1[%c0, %c0_0, %c0_1, %c0_2] : memref<1x18x18x16xbf16, #tpu.memory_space<vmem>>, vector<1x18x18x16xbf16>
    %1 = vector.shape_cast %0 : vector<1x18x18x16xbf16> to vector<18x18x16xbf16>
    %2 = vector.extract_strided_slice %1 {offsets = [1, 1, 0], sizes = [16, 16, 16], strides = [1, 1, 1]} : vector<18x18x16xbf16> to vector<16x16x16xbf16>
    %3 = vector.shape_cast %2 : vector<16x16x16xbf16> to vector<256x16xbf16>
    %c0_3 = arith.constant 0 : index
    %c0_4 = arith.constant 0 : index
    %4 = vector.load %arg2[%c0_3, %c0_4] : memref<16x64xbf16, #tpu.memory_space<vmem>>, vector<16x64xbf16>
    %cst = arith.constant dense<0.000000e+00> : vector<256x64xf32>
    %5 = tpu.matmul %3, %4, %cst {dimension_numbers = #tpu.dot_dimension_numbers<[1], [0], [0], [1], [0, 0, 1, 1], [], []>} : vector<256x16xbf16>, vector<16x64xbf16>, vector<256x64xf32> -> vector<256x64xf32>
    %c0_5 = arith.constant 0 : index
    %c0_6 = arith.constant 0 : index
    %6 = vector.load %arg3[%c0_5, %c0_6] : memref<1x64xf32, #tpu.memory_space<vmem>>, vector<1x64xf32>
    %7 = vector.broadcast %6 : vector<1x64xf32> to vector<256x64xf32>
    %8 = arith.addf %5, %7 : vector<256x64xf32>
    %cst_7 = arith.constant 0.000000e+00 : f32
    %9 = vector.broadcast %cst_7 : f32 to vector<256x64xf32>
    %10 = arith.maximumf %8, %9 : vector<256x64xf32>
    %cst_8 = arith.constant 0.000000e+00 : f32
    %11 = vector.broadcast %cst_8 : f32 to vector<256x64xf32>
    %12 = vector.extract_strided_slice %1 {offsets = [0, 0, 0], sizes = [16, 16, 16], strides = [1, 1, 1]} : vector<18x18x16xbf16> to vector<16x16x16xbf16>
    %13 = vector.shape_cast %12 : vector<16x16x16xbf16> to vector<256x16xbf16>
    %c0_9 = arith.constant 0 : index
    %c0_10 = arith.constant 0 : index
    %c0_11 = arith.constant 0 : index
    %14 = vector.load %arg4[%c0_9, %c0_10, %c0_11] : memref<9x16x64xbf16, #tpu.memory_space<vmem>>, vector<1x16x64xbf16>
    %15 = vector.shape_cast %14 : vector<1x16x64xbf16> to vector<16x64xbf16>
    %cst_12 = arith.constant dense<0.000000e+00> : vector<256x64xf32>
    %16 = tpu.matmul %13, %15, %cst_12 {dimension_numbers = #tpu.dot_dimension_numbers<[1], [0], [0], [1], [0, 0, 1, 1], [], []>} : vector<256x16xbf16>, vector<16x64xbf16>, vector<256x64xf32> -> vector<256x64xf32>
    %17 = arith.addf %11, %16 : vector<256x64xf32>
    %18 = vector.extract_strided_slice %1 {offsets = [0, 1, 0], sizes = [16, 16, 16], strides = [1, 1, 1]} : vector<18x18x16xbf16> to vector<16x16x16xbf16>
    %19 = vector.shape_cast %18 : vector<16x16x16xbf16> to vector<256x16xbf16>
    %c1 = arith.constant 1 : index
    %c0_13 = arith.constant 0 : index
    %c0_14 = arith.constant 0 : index
    %20 = vector.load %arg4[%c1, %c0_13, %c0_14] : memref<9x16x64xbf16, #tpu.memory_space<vmem>>, vector<1x16x64xbf16>
    %21 = vector.shape_cast %20 : vector<1x16x64xbf16> to vector<16x64xbf16>
    %cst_15 = arith.constant dense<0.000000e+00> : vector<256x64xf32>
    %22 = tpu.matmul %19, %21, %cst_15 {dimension_numbers = #tpu.dot_dimension_numbers<[1], [0], [0], [1], [0, 0, 1, 1], [], []>} : vector<256x16xbf16>, vector<16x64xbf16>, vector<256x64xf32> -> vector<256x64xf32>
    %23 = arith.addf %17, %22 : vector<256x64xf32>
    %24 = vector.extract_strided_slice %1 {offsets = [0, 2, 0], sizes = [16, 16, 16], strides = [1, 1, 1]} : vector<18x18x16xbf16> to vector<16x16x16xbf16>
    %25 = vector.shape_cast %24 : vector<16x16x16xbf16> to vector<256x16xbf16>
    %c2 = arith.constant 2 : index
    %c0_16 = arith.constant 0 : index
    %c0_17 = arith.constant 0 : index
    %26 = vector.load %arg4[%c2, %c0_16, %c0_17] : memref<9x16x64xbf16, #tpu.memory_space<vmem>>, vector<1x16x64xbf16>
    %27 = vector.shape_cast %26 : vector<1x16x64xbf16> to vector<16x64xbf16>
    %cst_18 = arith.constant dense<0.000000e+00> : vector<256x64xf32>
    %28 = tpu.matmul %25, %27, %cst_18 {dimension_numbers = #tpu.dot_dimension_numbers<[1], [0], [0], [1], [0, 0, 1, 1], [], []>} : vector<256x16xbf16>, vector<16x64xbf16>, vector<256x64xf32> -> vector<256x64xf32>
    %29 = arith.addf %23, %28 : vector<256x64xf32>
    %30 = vector.extract_strided_slice %1 {offsets = [1, 0, 0], sizes = [16, 16, 16], strides = [1, 1, 1]} : vector<18x18x16xbf16> to vector<16x16x16xbf16>
    %31 = vector.shape_cast %30 : vector<16x16x16xbf16> to vector<256x16xbf16>
    %c3 = arith.constant 3 : index
    %c0_19 = arith.constant 0 : index
    %c0_20 = arith.constant 0 : index
    %32 = vector.load %arg4[%c3, %c0_19, %c0_20] : memref<9x16x64xbf16, #tpu.memory_space<vmem>>, vector<1x16x64xbf16>
    %33 = vector.shape_cast %32 : vector<1x16x64xbf16> to vector<16x64xbf16>
    %cst_21 = arith.constant dense<0.000000e+00> : vector<256x64xf32>
    %34 = tpu.matmul %31, %33, %cst_21 {dimension_numbers = #tpu.dot_dimension_numbers<[1], [0], [0], [1], [0, 0, 1, 1], [], []>} : vector<256x16xbf16>, vector<16x64xbf16>, vector<256x64xf32> -> vector<256x64xf32>
    %35 = arith.addf %29, %34 : vector<256x64xf32>
    %36 = vector.extract_strided_slice %1 {offsets = [1, 1, 0], sizes = [16, 16, 16], strides = [1, 1, 1]} : vector<18x18x16xbf16> to vector<16x16x16xbf16>
    %37 = vector.shape_cast %36 : vector<16x16x16xbf16> to vector<256x16xbf16>
    %c4 = arith.constant 4 : index
    %c0_22 = arith.constant 0 : index
    %c0_23 = arith.constant 0 : index
    %38 = vector.load %arg4[%c4, %c0_22, %c0_23] : memref<9x16x64xbf16, #tpu.memory_space<vmem>>, vector<1x16x64xbf16>
    %39 = vector.shape_cast %38 : vector<1x16x64xbf16> to vector<16x64xbf16>
    %cst_24 = arith.constant dense<0.000000e+00> : vector<256x64xf32>
    %40 = tpu.matmul %37, %39, %cst_24 {dimension_numbers = #tpu.dot_dimension_numbers<[1], [0], [0], [1], [0, 0, 1, 1], [], []>} : vector<256x16xbf16>, vector<16x64xbf16>, vector<256x64xf32> -> vector<256x64xf32>
    %41 = arith.addf %35, %40 : vector<256x64xf32>
    %42 = vector.extract_strided_slice %1 {offsets = [1, 2, 0], sizes = [16, 16, 16], strides = [1, 1, 1]} : vector<18x18x16xbf16> to vector<16x16x16xbf16>
    %43 = vector.shape_cast %42 : vector<16x16x16xbf16> to vector<256x16xbf16>
    %c5 = arith.constant 5 : index
    %c0_25 = arith.constant 0 : index
    %c0_26 = arith.constant 0 : index
    %44 = vector.load %arg4[%c5, %c0_25, %c0_26] : memref<9x16x64xbf16, #tpu.memory_space<vmem>>, vector<1x16x64xbf16>
    %45 = vector.shape_cast %44 : vector<1x16x64xbf16> to vector<16x64xbf16>
    %cst_27 = arith.constant dense<0.000000e+00> : vector<256x64xf32>
    %46 = tpu.matmul %43, %45, %cst_27 {dimension_numbers = #tpu.dot_dimension_numbers<[1], [0], [0], [1], [0, 0, 1, 1], [], []>} : vector<256x16xbf16>, vector<16x64xbf16>, vector<256x64xf32> -> vector<256x64xf32>
    %47 = arith.addf %41, %46 : vector<256x64xf32>
    %48 = vector.extract_strided_slice %1 {offsets = [2, 0, 0], sizes = [16, 16, 16], strides = [1, 1, 1]} : vector<18x18x16xbf16> to vector<16x16x16xbf16>
    %49 = vector.shape_cast %48 : vector<16x16x16xbf16> to vector<256x16xbf16>
    %c6 = arith.constant 6 : index
    %c0_28 = arith.constant 0 : index
    %c0_29 = arith.constant 0 : index
    %50 = vector.load %arg4[%c6, %c0_28, %c0_29] : memref<9x16x64xbf16, #tpu.memory_space<vmem>>, vector<1x16x64xbf16>
    %51 = vector.shape_cast %50 : vector<1x16x64xbf16> to vector<16x64xbf16>
    %cst_30 = arith.constant dense<0.000000e+00> : vector<256x64xf32>
    %52 = tpu.matmul %49, %51, %cst_30 {dimension_numbers = #tpu.dot_dimension_numbers<[1], [0], [0], [1], [0, 0, 1, 1], [], []>} : vector<256x16xbf16>, vector<16x64xbf16>, vector<256x64xf32> -> vector<256x64xf32>
    %53 = arith.addf %47, %52 : vector<256x64xf32>
    %54 = vector.extract_strided_slice %1 {offsets = [2, 1, 0], sizes = [16, 16, 16], strides = [1, 1, 1]} : vector<18x18x16xbf16> to vector<16x16x16xbf16>
    %55 = vector.shape_cast %54 : vector<16x16x16xbf16> to vector<256x16xbf16>
    %c7 = arith.constant 7 : index
    %c0_31 = arith.constant 0 : index
    %c0_32 = arith.constant 0 : index
    %56 = vector.load %arg4[%c7, %c0_31, %c0_32] : memref<9x16x64xbf16, #tpu.memory_space<vmem>>, vector<1x16x64xbf16>
    %57 = vector.shape_cast %56 : vector<1x16x64xbf16> to vector<16x64xbf16>
    %cst_33 = arith.constant dense<0.000000e+00> : vector<256x64xf32>
    %58 = tpu.matmul %55, %57, %cst_33 {dimension_numbers = #tpu.dot_dimension_numbers<[1], [0], [0], [1], [0, 0, 1, 1], [], []>} : vector<256x16xbf16>, vector<16x64xbf16>, vector<256x64xf32> -> vector<256x64xf32>
    %59 = arith.addf %53, %58 : vector<256x64xf32>
    %60 = vector.extract_strided_slice %1 {offsets = [2, 2, 0], sizes = [16, 16, 16], strides = [1, 1, 1]} : vector<18x18x16xbf16> to vector<16x16x16xbf16>
    %61 = vector.shape_cast %60 : vector<16x16x16xbf16> to vector<256x16xbf16>
    %c8 = arith.constant 8 : index
    %c0_34 = arith.constant 0 : index
    %c0_35 = arith.constant 0 : index
    %62 = vector.load %arg4[%c8, %c0_34, %c0_35] : memref<9x16x64xbf16, #tpu.memory_space<vmem>>, vector<1x16x64xbf16>
    %63 = vector.shape_cast %62 : vector<1x16x64xbf16> to vector<16x64xbf16>
    %cst_36 = arith.constant dense<0.000000e+00> : vector<256x64xf32>
    %64 = tpu.matmul %61, %63, %cst_36 {dimension_numbers = #tpu.dot_dimension_numbers<[1], [0], [0], [1], [0, 0, 1, 1], [], []>} : vector<256x16xbf16>, vector<16x64xbf16>, vector<256x64xf32> -> vector<256x64xf32>
    %65 = arith.addf %59, %64 : vector<256x64xf32>
    %c0_37 = arith.constant 0 : index
    %c0_38 = arith.constant 0 : index
    %66 = vector.load %arg5[%c0_37, %c0_38] : memref<1x64xf32, #tpu.memory_space<vmem>>, vector<1x64xf32>
    %67 = vector.broadcast %66 : vector<1x64xf32> to vector<256x64xf32>
    %68 = arith.addf %65, %67 : vector<256x64xf32>
    %cst_39 = arith.constant 0.000000e+00 : f32
    %69 = vector.broadcast %cst_39 : f32 to vector<256x64xf32>
    %70 = arith.maximumf %68, %69 : vector<256x64xf32>
    %71 = tpu.concatenate %10, %70 in 1 : vector<256x64xf32>, vector<256x64xf32> -> vector<256x128xf32>
    %72 = vector.shape_cast %71 : vector<256x128xf32> to vector<1x16x16x128xf32>
    %c0_40 = arith.constant 0 : index
    %c0_41 = arith.constant 0 : index
    %c0_42 = arith.constant 0 : index
    %c0_43 = arith.constant 0 : index
    %73 = vector.load %arg6[%c0_40, %c0_41, %c0_42, %c0_43] : memref<1x16x16x128xf32, #tpu.memory_space<vmem>>, vector<1x16x16x128xf32>
    tpu.vector_store %arg6[%c0_40, %c0_41, %c0_42, %c0_43], %72 {strides = array<i32>} : memref<1x16x16x128xf32, #tpu.memory_space<vmem>>, vector<1x16x16x128xf32>,
    return
  }
  func.func @transform_0(%arg0: i32) -> (i32, i32, i32, i32) {
    %c0_i32 = arith.constant 0 : i32
    %c0_i32_0 = arith.constant 0 : i32
    %c0_i32_1 = arith.constant 0 : i32
    %c0_i32_2 = arith.constant 0 : i32
    return %arg0, %c0_i32, %c0_i32_0, %c0_i32_1 : i32, i32, i32, i32
  }
  func.func @transform_1(%arg0: i32) -> (i32, i32) {
    %c0_i32 = arith.constant 0 : i32
    %c0_i32_0 = arith.constant 0 : i32
    %c0_i32_1 = arith.constant 0 : i32
    return %c0_i32, %c0_i32_0 : i32, i32
  }
  func.func @transform_2(%arg0: i32) -> (i32, i32) {
    %c0_i32 = arith.constant 0 : i32
    %c0_i32_0 = arith.constant 0 : i32
    %c0_i32_1 = arith.constant 0 : i32
    return %c0_i32, %c0_i32_0 : i32, i32
  }
  func.func @transform_3(%arg0: i32) -> (i32, i32, i32) {
    %c0_i32 = arith.constant 0 : i32
    %c0_i32_0 = arith.constant 0 : i32
    %c0_i32_1 = arith.constant 0 : i32
    %c0_i32_2 = arith.constant 0 : i32
    return %c0_i32, %c0_i32_0, %c0_i32_1 : i32, i32, i32
  }
  func.func @transform_4(%arg0: i32) -> (i32, i32) {
    %c0_i32 = arith.constant 0 : i32
    %c0_i32_0 = arith.constant 0 : i32
    %c0_i32_1 = arith.constant 0 : i32
    return %c0_i32, %c0_i32_0 : i32, i32
  }
  func.func @transform_5(%arg0: i32) -> (i32, i32, i32, i32) {
    %c0_i32 = arith.constant 0 : i32
    %c0_i32_0 = arith.constant 0 : i32
    %c0_i32_1 = arith.constant 0 : i32
    %c0_i32_2 = arith.constant 0 : i32
    return %arg0, %c0_i32, %c0_i32_0, %c0_i32_1 : i32, i32, i32, i32
  }
}

</mosaic_0001>

<llo_original>
// kernel: fire_forward.2
$region0: #{fire_forward.2}
  #allocation0 [shape = 'u32[]', space=smem, size = 0x4, offset = 0x4, fixed_abs, tag = 'smem constant byte address 0x4 - core index']
  #allocation1 [shape = 'u32[144,128]{1,0:T(1,128)}', space=vmem, size = 0x12000, scoped, tag = 'internal scratch']
  %s0 = inlined_call_operand.vmem [shape: bf16[512,32], index: 0, kind: input, shape index: {}]
  %s1 = inlined_call_operand.vmem [shape: bf16[32,16], index: 1, kind: input, shape index: {}]
  %s2 = inlined_call_operand.vmem [shape: f32[1,16], index: 2, kind: input, shape index: {}]
  %s3 = inlined_call_operand.vmem [shape: bf16[512,16], index: 3, kind: output, shape index: {}]
  %s4 = sld [smem:[#allocation0]]
  $region45: #{fire_forward.2} parent=0
    _
  %s6 = ssub.s32 1, %s4
  %s7 = scalar_select 0, %s6, %s4
  loop: start=0, step=1, limit=4
  $region2: #{fire_forward.2} parent=0 // loop_pre_header
    _
  $region3: #{fire_forward.2} parent=0 // loop_header
    %s9 = sphi 0, %s13
    %p10 = scmp.ge.s32.totalorder %s9, 4
    %s19 = sphi 0, %s21
    %s22 = sphi 0, %s19
    %s23 = sphi 0, %s22
    %s39 = sphi 0, %s23
    %s43 = sphi 0, %s43
    %s45 = sphi 0, %s43
    %s46 = sphi 0, %s45
    %s60 = sphi 0, %s46
    %s64 = sphi 0, %s64
    %s66 = sphi 0, %s64
    %s67 = sphi 0, %s66
    %s81 = sphi 0, %s67
    %s87 = sphi 0, %s89
    %s90 = sphi 0, %s87
    %s91 = sphi 0, %s90
    %s107 = sphi 0, %s91
  $region4: #{fire_forward.2} parent=0 // loop_header_branch
    %12 = sbr.rel (%p10) target = $region8
  $region5: #{fire_forward.2} parent=0 // loop_body
    %s14 = ssub.s32 %s9, 1
    %s15 = ssub.s32 %s9, 2
    %s16 = sadd.s32 %s9, 1
    %s17 = ssub.s32 %s9, %s16
    %p18 = scmp.eq.s32.totalorder %s17, 0
    %s20 = sadd.s32 %s19, 1
    %s21 = scalar_select %p18, %s19, %s20
    %p24 = pneg %p18
    %p25 = scmp.eq.s32.totalorder %s9, 1
    %p26 = por %p24, %p25
    %p27 = scmp.ne.s32.totalorder %s19, %s22
    %p28 = scmp.eq.s32.totalorder %s9, 0
    %p29 = por %p27, %p28
    %p30 = scmp.ne.s32.totalorder %s19, %s22
    %p31 = scmp.eq.s32.totalorder %s14, 1
    %p32 = por %p30, %p31
    %p33 = scmp.ne.s32.totalorder %s22, %s23
    %p34 = scmp.eq.s32.totalorder %s14, 0
    %p35 = por %p33, %p34
    %p36 = scmp.ne.s32.totalorder %s22, %s23
    %p37 = scmp.eq.s32.totalorder %s15, 1
    %p38 = por %p36, %p37
    %p40 = scmp.ne.s32.totalorder %s23, %s39
    %p41 = scmp.eq.s32.totalorder %s15, 0
    %p42 = por %p40, %p41
    %s44 = sadd.s32 %s43, 1
    %p47 = scmp.eq.s32.totalorder %s9, 1
    %p48 = scmp.ne.s32.totalorder %s43, %s45
    %p49 = scmp.eq.s32.totalorder %s9, 0
    %p50 = por %p48, %p49
    %p51 = scmp.ne.s32.totalorder %s43, %s45
    %p52 = scmp.eq.s32.totalorder %s14, 1
    %p53 = por %p51, %p52
    %p54 = scmp.ne.s32.totalorder %s45, %s46
    %p55 = scmp.eq.s32.totalorder %s14, 0
    %p56 = por %p54, %p55
    %p57 = scmp.ne.s32.totalorder %s45, %s46
    %p58 = scmp.eq.s32.totalorder %s15, 1
    %p59 = por %p57, %p58
    %p61 = scmp.ne.s32.totalorder %s46, %s60
    %p62 = scmp.eq.s32.totalorder %s15, 0
    %p63 = por %p61, %p62
    %s65 = sadd.s32 %s64, 1
    %p68 = scmp.eq.s32.totalorder %s9, 1
    %p69 = scmp.ne.s32.totalorder %s64, %s66
    %p70 = scmp.eq.s32.totalorder %s9, 0
    %p71 = por %p69, %p70
    %p72 = scmp.ne.s32.totalorder %s64, %s66
    %p73 = scmp.eq.s32.totalorder %s14, 1
    %p74 = por %p72, %p73
    %p75 = scmp.ne.s32.totalorder %s66, %s67
    %p76 = scmp.eq.s32.totalorder %s14, 0
    %p77 = por %p75, %p76
    %p78 = scmp.ne.s32.totalorder %s66, %s67
    %p79 = scmp.eq.s32.totalorder %s15, 1
    %p80 = por %p78, %p79
    %p82 = scmp.ne.s32.totalorder %s67, %s81
    %p83 = scmp.eq.s32.totalorder %s15, 0
    %p84 = por %p82, %p83
    %s85 = ssub.s32 %s9, %s16
    %p86 = scmp.eq.s32.totalorder %s85, 0
    %s88 = sadd.s32 %s87, 1
    %s89 = scalar_select %p86, %s87, %s88
    %p92 = pneg %p86
    %p93 = scmp.eq.s32.totalorder %s9, 1
    %p94 = por %p92, %p93
    %p95 = scmp.ne.s32.totalorder %s87, %s90
    %p96 = scmp.eq.s32.totalorder %s9, 0
    %p97 = por %p95, %p96
    %p98 = scmp.ne.s32.totalorder %s87, %s90
    %p99 = scmp.eq.s32.totalorder %s14, 1
    %p100 = por %p98, %p99
    %p101 = scmp.ne.s32.totalorder %s90, %s91
    %p102 = scmp.eq.s32.totalorder %s14, 0
    %p103 = por %p101, %p102
    %p104 = scmp.ne.s32.totalorder %s90, %s91
    %p105 = scmp.eq.s32.totalorder %s15, 1
    %p106 = por %p104, %p105
    %p108 = scmp.ne.s32.totalorder %s91, %s107
    %p109 = scmp.eq.s32.totalorder %s15, 0
    %p110 = por %p108, %p109
    %p111 = scmp.le.s32.totalorder 1, %s9
    %p112 = scmp.lt.s32.totalorder %s9, 3
    %p113 = pnand %p111, %p112
    %p114 = pneg %p113
    // Predicated region
    $region9: #{fire_forward.2} parent=5 // pred_check
      _
    $region10: #{fire_forward.2} parent=5 // pred_check_branch
      %116 = sbr.rel (%p113) target = $region12
    $region11: #{fire_forward.2} parent=5 // pred_region
      %s117 = ssub.s32 %s9, 1
      // Predicated region
      $region13: #{fire_forward.2} parent=11 // pred_check
        %p118 = pneg %p56
      $region14: #{fire_forward.2} parent=11 // pred_check_branch
        %120 = sbr.rel (%p118) target = $region16
      $region15: #{fire_forward.2} parent=11 // pred_region
        _
      $region16: #{fire_forward.2} parent=11 // pred_fallthru
        _
      // Predicated region
      $region17: #{fire_forward.2} parent=11 // pred_check
        %p121 = pneg %p77
      $region18: #{fire_forward.2} parent=11 // pred_check_branch
        %123 = sbr.rel (%p121) target = $region20
      $region19: #{fire_forward.2} parent=11 // pred_region
        _
      $region20: #{fire_forward.2} parent=11 // pred_fallthru
        _
    $region12: #{fire_forward.2} parent=5 // pred_fallthru
      _
    %p124 = scmp.lt.s32.totalorder %s9, 2
    // Predicated region
    $region21: #{fire_forward.2} parent=5 // pred_check
      %p125 = pneg %p124
    $region22: #{fire_forward.2} parent=5 // pred_check_branch
      %127 = sbr.rel (%p125) target = $region24
    $region23: #{fire_forward.2} parent=5 // pred_region
      // Predicated region
      $region25: #{fire_forward.2} parent=23 // pred_check
        %p128 = pneg %p29
      $region26: #{fire_forward.2} parent=23 // pred_check_branch
        %130 = sbr.rel (%p128) target = $region28
      $region27: #{fire_forward.2} parent=23 // pred_region
        %s131 = smul.u32 32, %s9
        %p132 = scmp.lt.s32.totalorder %s131, 63
        %s133 = scalar_select %p132, %s131, 63
        %s134 = smul.addr %s133, 4
        %s135 = scalar_lea.vmem %s0, %s134
        %s136 = smul.u32 32, %s9
      $region28: #{fire_forward.2} parent=23 // pred_fallthru
        _
    $region24: #{fire_forward.2} parent=5 // pred_fallthru
      _
    %p137 = scmp.le.s32.totalorder 1, %s9
    %p138 = scmp.lt.s32.totalorder %s9, 3
    %p139 = pnand %p137, %p138
    %p140 = pneg %p139
    // Predicated region
    $region29: #{fire_forward.2} parent=5 // pred_check
      _
    $region30: #{fire_forward.2} parent=5 // pred_check_branch
      %142 = sbr.rel (%p139) target = $region32
    $region31: #{fire_forward.2} parent=5 // pred_region
      %s143 = ssub.s32 %s9, 1
      %s144 = smul.u32 32, %s14
      %p145 = scmp.lt.s32.totalorder %s144, 63
      %s146 = scalar_select %p145, %s144, 63
      %s147 = smul.addr %s146, 4
      %s148 = scalar_lea.vmem %s0, %s147
      %p149 = pneg %p35
      %p150 = pneg %p32
      %p151 = pneg %p56
      %p152 = pneg %p53
      %p153 = pneg %p77
      %p154 = pneg %p74
      %p155 = pneg %p103
      %p156 = pneg %p100
      %s157 = smul.u32 32, %s14
      %p158 = scmp.lt.s32.totalorder %s157, 63
      %s159 = scalar_select %p158, %s157, 63
      %s160 = smul.addr %s159, 4
      %s161 = scalar_lea.vmem %s3, %s160
      %s162 = smul.u32 32, %s14
      %p163 = scmp.lt.s32.totalorder %s162, 63
      %s164 = scalar_select %p163, %s162, 63
      %s165 = smul.addr %s164, 4
      %s166 = scalar_lea.vmem %s0, %s165
      %s167 = smul.u32 32, %s14
      %s168 = smul.u32 32, %s14
      %p169 = scmp.lt.s32.totalorder %s168, 63
      %s170 = scalar_select %p169, %s168, 63
      %s171 = smul.addr %s170, 4
      %s172 = scalar_lea.vmem %s3, %s171
      %s173 = smul.u32 32, %s14
      %v175 = vld [vmem:[%s166] sm:$0xf]
      %v176 = vld [vmem:[%s166 + $0x4] sm:$0xf]
      %v177 = vld [vmem:[%s166 + $0x8] sm:$0xf]
      %v178 = vld [vmem:[%s166 + $0xc] sm:$0xf]
      %v179 = vld [vmem:[%s166 + $0x10] sm:$0xf]
      %v180 = vld [vmem:[%s166 + $0x14] sm:$0xf]
      %v181 = vld [vmem:[%s166 + $0x18] sm:$0xf]
      %v182 = vld [vmem:[%s166 + $0x1c] sm:$0xf]
      %v183 = vld [vmem:[%s166 + $0x20] sm:$0xf]
      %v184 = vld [vmem:[%s166 + $0x24] sm:$0xf]
      %v185 = vld [vmem:[%s166 + $0x28] sm:$0xf]
      %v186 = vld [vmem:[%s166 + $0x2c] sm:$0xf]
      %v187 = vld [vmem:[%s166 + $0x30] sm:$0xf]
      %v188 = vld [vmem:[%s166 + $0x34] sm:$0xf]
      %v189 = vld [vmem:[%s166 + $0x38] sm:$0xf]
      %v190 = vld [vmem:[%s166 + $0x3c] sm:$0xf]
      %v191 = vld [vmem:[%s166 + $0x40] sm:$0xf]
      %v192 = vld [vmem:[%s166 + $0x44] sm:$0xf]
      %v193 = vld [vmem:[%s166 + $0x48] sm:$0xf]
      %v194 = vld [vmem:[%s166 + $0x4c] sm:$0xf]
      %v195 = vld [vmem:[%s166 + $0x50] sm:$0xf]
      %v196 = vld [vmem:[%s166 + $0x54] sm:$0xf]
      %v197 = vld [vmem:[%s166 + $0x58] sm:$0xf]
      %v198 = vld [vmem:[%s166 + $0x5c] sm:$0xf]
      %v199 = vld [vmem:[%s166 + $0x60] sm:$0xf]
      %v200 = vld [vmem:[%s166 + $0x64] sm:$0xf]
      %v201 = vld [vmem:[%s166 + $0x68] sm:$0xf]
      %v202 = vld [vmem:[%s166 + $0x6c] sm:$0xf]
      %v203 = vld [vmem:[%s166 + $0x70] sm:$0xf]
      %v204 = vld [vmem:[%s166 + $0x74] sm:$0xf]
      %v205 = vld [vmem:[%s166 + $0x78] sm:$0xf]
      %v206 = vld [vmem:[%s166 + $0x7c] sm:$0xf]
      %v207 = vld [vmem:[%s1] sm:$0xf]
      %v208 = vld [vmem:[%s1 + $0x4] sm:$0xf]
      %v209 = vld [vmem:[%s1 + $0x8] sm:$0xf]
      %v210 = vld [vmem:[%s1 + $0xc] sm:$0xf]
      %v211 = vld [vmem:[%s2] sm:$0x1]
      %v213 = vlaneseq
      %v214 = vshrl.u32 %v213, 7
      %v215 = vsub.s32 0, %v214
      %v216 = vrot.slane %v211, %v215
      %v250 = vunpack.c.l.b16 %v175
      %v251 = vunpack.c.l.b16 %v176
      %v252 = vunpack.c.l.b16 %v177
      %v253 = vunpack.c.l.b16 %v178
      %v254 = vunpack.c.l.b16 %v179
      %v255 = vunpack.c.l.b16 %v180
      %v256 = vunpack.c.l.b16 %v181
      %v257 = vunpack.c.l.b16 %v182
      %v258 = vunpack.c.l.b16 %v183
      %v259 = vunpack.c.l.b16 %v184
      %v260 = vunpack.c.l.b16 %v185
      %v261 = vunpack.c.l.b16 %v186
      %v262 = vunpack.c.l.b16 %v187
      %v263 = vunpack.c.l.b16 %v188
      %v264 = vunpack.c.l.b16 %v189
      %v265 = vunpack.c.l.b16 %v190
      %v266 = vunpack.c.l.b16 %v191
      %v267 = vunpack.c.l.b16 %v192
      %v268 = vunpack.c.l.b16 %v193
      %v269 = vunpack.c.l.b16 %v194
      %v270 = vunpack.c.l.b16 %v195
      %v271 = vunpack.c.l.b16 %v196
      %v272 = vunpack.c.l.b16 %v197
      %v273 = vunpack.c.l.b16 %v198
      %v274 = vunpack.c.l.b16 %v199
      %v275 = vunpack.c.l.b16 %v200
      %v276 = vunpack.c.l.b16 %v201
      %v277 = vunpack.c.l.b16 %v202
      %v278 = vunpack.c.l.b16 %v203
      %v279 = vunpack.c.l.b16 %v204
      %v280 = vunpack.c.l.b16 %v205
      %v281 = vunpack.c.l.b16 %v206
      %v282 = vpack.c.b16 %v251, %v250
      %v283 = vpack.c.b16 %v253, %v252
      %v284 = vpack.c.b16 %v255, %v254
      %v285 = vpack.c.b16 %v257, %v256
      %v286 = vpack.c.b16 %v259, %v258
      %v287 = vpack.c.b16 %v261, %v260
      %v288 = vpack.c.b16 %v263, %v262
      %v289 = vpack.c.b16 %v265, %v264
      %v290 = vpack.c.b16 %v267, %v266
      %v291 = vpack.c.b16 %v269, %v268
      %v292 = vpack.c.b16 %v271, %v270
      %v293 = vpack.c.b16 %v273, %v272
      %v294 = vpack.c.b16 %v275, %v274
      %v295 = vpack.c.b16 %v277, %v276
      %v296 = vpack.c.b16 %v279, %v278
      %v297 = vpack.c.b16 %v281, %v280
      %v302 = vunpack.c.l.b16 %v207
      %v303 = vunpack.c.l.b16 %v208
      %v304 = vunpack.c.l.b16 %v209
      %v305 = vunpack.c.l.b16 %v210
      %v306 = vpack.c.b16 %v303, %v302
      %v307 = vpack.c.b16 %v305, %v304
      %vm310 = vcmask 261120
      %v312 = vsel %vm310, %v282, 0
      %v315 = vsel %vm310, %v283, 0
      %v318 = vsel %vm310, %v284, 0
      %v321 = vsel %vm310, %v285, 0
      %v324 = vsel %vm310, %v286, 0
      %v327 = vsel %vm310, %v287, 0
      %v330 = vsel %vm310, %v288, 0
      %v333 = vsel %vm310, %v289, 0
      %v336 = vsel %vm310, %v290, 0
      %v339 = vsel %vm310, %v291, 0
      %v342 = vsel %vm310, %v292, 0
      %v345 = vsel %vm310, %v293, 0
      %v348 = vsel %vm310, %v294, 0
      %v351 = vsel %vm310, %v295, 0
      %v354 = vsel %vm310, %v296, 0
      %v357 = vsel %vm310, %v297, 0
      %359 = vmatprep.subr.bf16.mxu0 0
      %360 = vmatpush1.bf16.msra.mxu0 %v306
      %361 = vmatprep.subr.bf16.mxu0 0
      %362 = vmatpush1.bf16.msra.mxu0 %v307
      %363 = vmatprep.subr.bf16.mxu0 0
      %364 = vmatpush1.bf16.msra.mxu0 0
      %365 = vmatprep.subr.bf16.mxu0 0
      %366 = vmatpush1.bf16.msra.mxu0 0
      %367 = vmatprep.subr.bf16.mxu0 0
      %368 = vmatpush1.bf16.msra.mxu0 0
      %369 = vmatprep.subr.bf16.mxu0 0
      %370 = vmatpush1.bf16.msra.mxu0 0
      %371 = vmatprep.subr.bf16.mxu0 0
      %372 = vmatpush1.bf16.msra.mxu0 0
      %373 = vmatprep.subr.bf16.mxu0 0
      %374 = vmatpush1.bf16.msra.mxu0 0
      %375 = vmatprep.subr.bf16.mxu0 0
      %376 = vmatpush1.bf16.msra.mxu0 0
      %377 = vmatprep.subr.bf16.mxu0 0
      %378 = vmatpush1.bf16.msra.mxu0 0
      %379 = vmatprep.subr.bf16.mxu0 0
      %380 = vmatpush1.bf16.msra.mxu0 0
      %381 = vmatprep.subr.bf16.mxu0 0
      %382 = vmatpush1.bf16.msra.mxu0 0
      %383 = vmatprep.subr.bf16.mxu0 0
      %384 = vmatpush1.bf16.msra.mxu0 0
      %385 = vmatprep.subr.bf16.mxu0 0
      %386 = vmatpush1.bf16.msra.mxu0 0
      %387 = vmatprep.subr.bf16.mxu0 0
      %388 = vmatpush1.bf16.msra.mxu0 0
      %389 = vmatprep.subr.bf16.mxu0 0
      %390 = vmatpush1.bf16.msra.mxu0 0
      %391 = vmatprep.mubr.bf16.mxu0 0
      %392 = vmatmul.mubr.bf16.gmra.mrb[0].mxu0 %v312
      %v393 = vpop.f32.mrb[0].mxu0
      %v394 = vadd.f32 %v216, %v393
      %v395 = vpop.f32.mrb[0].mxu0
      %v396 = vpop.f32.mrb[0].mxu0
      %v397 = vadd.f32 %v216, %v396
      %v398 = vpop.f32.mrb[0].mxu0
      %399 = vmatprep.mubr.bf16.mxu0 0
      %400 = vmatmul.mubr.bf16.gmra.mrb[0].mxu0 %v315
      %v401 = vpop.f32.mrb[0].mxu0
      %v402 = vadd.f32 %v216, %v401
      %v403 = vpop.f32.mrb[0].mxu0
      %v404 = vpop.f32.mrb[0].mxu0
      %v405 = vadd.f32 %v216, %v404
      %v406 = vpop.f32.mrb[0].mxu0
      %407 = vmatprep.mubr.bf16.mxu0 0
      %408 = vmatmul.mubr.bf16.gmra.mrb[0].mxu0 %v318
      %v409 = vpop.f32.mrb[0].mxu0
      %v410 = vadd.f32 %v216, %v409
      %v411 = vpop.f32.mrb[0].mxu0
      %v412 = vpop.f32.mrb[0].mxu0
      %v413 = vadd.f32 %v216, %v412
      %v414 = vpop.f32.mrb[0].mxu0
      %415 = vmatprep.mubr.bf16.mxu0 0
      %416 = vmatmul.mubr.bf16.gmra.mrb[0].mxu0 %v321
      %v417 = vpop.f32.mrb[0].mxu0
      %v418 = vadd.f32 %v216, %v417
      %v419 = vpop.f32.mrb[0].mxu0
      %v420 = vpop.f32.mrb[0].mxu0
      %v421 = vadd.f32 %v216, %v420
      %v422 = vpop.f32.mrb[0].mxu0
      %423 = vmatprep.mubr.bf16.mxu0 0
      %424 = vmatmul.mubr.bf16.gmra.mrb[0].mxu0 %v324
      %v425 = vpop.f32.mrb[0].mxu0
      %v426 = vadd.f32 %v216, %v425
      %v427 = vpop.f32.mrb[0].mxu0
      %v428 = vpop.f32.mrb[0].mxu0
      %v429 = vadd.f32 %v216, %v428
      %v430 = vpop.f32.mrb[0].mxu0
      %431 = vmatprep.mubr.bf16.mxu0 0
      %432 = vmatmul.mubr.bf16.gmra.mrb[0].mxu0 %v327
      %v433 = vpop.f32.mrb[0].mxu0
      %v434 = vadd.f32 %v216, %v433
      %v435 = vpop.f32.mrb[0].mxu0
      %v436 = vpop.f32.mrb[0].mxu0
      %v437 = vadd.f32 %v216, %v436
      %v438 = vpop.f32.mrb[0].mxu0
      %439 = vmatprep.mubr.bf16.mxu0 0
      %440 = vmatmul.mubr.bf16.gmra.mrb[0].mxu0 %v330
      %v441 = vpop.f32.mrb[0].mxu0
      %v442 = vadd.f32 %v216, %v441
      %v443 = vpop.f32.mrb[0].mxu0
      %v444 = vpop.f32.mrb[0].mxu0
      %v445 = vadd.f32 %v216, %v444
      %v446 = vpop.f32.mrb[0].mxu0
      %447 = vmatprep.mubr.bf16.mxu0 0
      %448 = vmatmul.mubr.bf16.gmra.mrb[0].mxu0 %v333
      %v449 = vpop.f32.mrb[0].mxu0
      %v450 = vadd.f32 %v216, %v449
      %v451 = vpop.f32.mrb[0].mxu0
      %v452 = vpop.f32.mrb[0].mxu0
      %v453 = vadd.f32 %v216, %v452
      %v454 = vpop.f32.mrb[0].mxu0
      %455 = vmatprep.mubr.bf16.mxu0 0
      %456 = vmatmul.mubr.bf16.gmra.mrb[0].mxu0 %v336
      %v457 = vpop.f32.mrb[0].mxu0
      %v458 = vadd.f32 %v216, %v457
      %v459 = vpop.f32.mrb[0].mxu0
      %v460 = vpop.f32.mrb[0].mxu0
      %v461 = vadd.f32 %v216, %v460
      %v462 = vpop.f32.mrb[0].mxu0
      %463 = vmatprep.mubr.bf16.mxu0 0
      %464 = vmatmul.mubr.bf16.gmra.mrb[0].mxu0 %v339
      %v465 = vpop.f32.mrb[0].mxu0
      %v466 = vadd.f32 %v216, %v465
      %v467 = vpop.f32.mrb[0].mxu0
      %v468 = vpop.f32.mrb[0].mxu0
      %v469 = vadd.f32 %v216, %v468
      %v470 = vpop.f32.mrb[0].mxu0
      %471 = vmatprep.mubr.bf16.mxu0 0
      %472 = vmatmul.mubr.bf16.gmra.mrb[0].mxu0 %v342
      %v473 = vpop.f32.mrb[0].mxu0
      %v474 = vadd.f32 %v216, %v473
      %v475 = vpop.f32.mrb[0].mxu0
      %v476 = vpop.f32.mrb[0].mxu0
      %v477 = vadd.f32 %v216, %v476
      %v478 = vpop.f32.mrb[0].mxu0
      %479 = vmatprep.mubr.bf16.mxu0 0
      %480 = vmatmul.mubr.bf16.gmra.mrb[0].mxu0 %v345
      %v481 = vpop.f32.mrb[0].mxu0
      %v482 = vadd.f32 %v216, %v481
      %v483 = vpop.f32.mrb[0].mxu0
      %v484 = vpop.f32.mrb[0].mxu0
      %v485 = vadd.f32 %v216, %v484
      %v486 = vpop.f32.mrb[0].mxu0
      %487 = vmatprep.mubr.bf16.mxu0 0
      %488 = vmatmul.mubr.bf16.gmra.mrb[0].mxu0 %v348
      %v489 = vpop.f32.mrb[0].mxu0
      %v490 = vadd.f32 %v216, %v489
      %v491 = vpop.f32.mrb[0].mxu0
      %v492 = vpop.f32.mrb[0].mxu0
      %v493 = vadd.f32 %v216, %v492
      %v494 = vpop.f32.mrb[0].mxu0
      %495 = vmatprep.mubr.bf16.mxu0 0
      %496 = vmatmul.mubr.bf16.gmra.mrb[0].mxu0 %v351
      %v497 = vpop.f32.mrb[0].mxu0
      %v498 = vadd.f32 %v216, %v497
      %v499 = vpop.f32.mrb[0].mxu0
      %v500 = vpop.f32.mrb[0].mxu0
      %v501 = vadd.f32 %v216, %v500
      %v502 = vpop.f32.mrb[0].mxu0
      %503 = vmatprep.mubr.bf16.mxu0 0
      %504 = vmatmul.mubr.bf16.gmra.mrb[0].mxu0 %v354
      %v505 = vpop.f32.mrb[0].mxu0
      %v506 = vadd.f32 %v216, %v505
      %v507 = vpop.f32.mrb[0].mxu0
      %v508 = vpop.f32.mrb[0].mxu0
      %v509 = vadd.f32 %v216, %v508
      %v510 = vpop.f32.mrb[0].mxu0
      %511 = vmatprep.mubr.bf16.mxu0 0
      %512 = vmatmul.mubr.bf16.gmra.mrb[0].mxu0 %v357
      %v513 = vpop.f32.mrb[0].mxu0
      %v514 = vadd.f32 %v216, %v513
      %v515 = vpop.f32.mrb[0].mxu0
      %v516 = vpop.f32.mrb[0].mxu0
      %v517 = vadd.f32 %v216, %v516
      %v518 = vpop.f32.mrb[0].mxu0
      %519 = vdwg.mxu0
      %v520 = vmax.f32 %v394, 0.0
      %v521 = vmax.f32 %v397, 0.0
      %v522 = vmax.f32 %v402, 0.0
      %v523 = vmax.f32 %v405, 0.0
      %v524 = vmax.f32 %v410, 0.0
      %v525 = vmax.f32 %v413, 0.0
      %v526 = vmax.f32 %v418, 0.0
      %v527 = vmax.f32 %v421, 0.0
      %v528 = vmax.f32 %v426, 0.0
      %v529 = vmax.f32 %v429, 0.0
      %v530 = vmax.f32 %v434, 0.0
      %v531 = vmax.f32 %v437, 0.0
      %v532 = vmax.f32 %v442, 0.0
      %v533 = vmax.f32 %v445, 0.0
      %v534 = vmax.f32 %v450, 0.0
      %v535 = vmax.f32 %v453, 0.0
      %v536 = vmax.f32 %v458, 0.0
      %v537 = vmax.f32 %v461, 0.0
      %v538 = vmax.f32 %v466, 0.0
      %v539 = vmax.f32 %v469, 0.0
      %v540 = vmax.f32 %v474, 0.0
      %v541 = vmax.f32 %v477, 0.0
      %v542 = vmax.f32 %v482, 0.0
      %v543 = vmax.f32 %v485, 0.0
      %v544 = vmax.f32 %v490, 0.0
      %v545 = vmax.f32 %v493, 0.0
      %v546 = vmax.f32 %v498, 0.0
      %v547 = vmax.f32 %v501, 0.0
      %v548 = vmax.f32 %v506, 0.0
      %v549 = vmax.f32 %v509, 0.0
      %v550 = vmax.f32 %v514, 0.0
      %v551 = vmax.f32 %v517, 0.0
      %v552 = vpack.c.bf16 %v521, %v520
      %v553 = vpack.c.bf16 %v523, %v522
      %v554 = vpack.c.bf16 %v525, %v524
      %v555 = vpack.c.bf16 %v527, %v526
      %v556 = vpack.c.bf16 %v529, %v528
      %v557 = vpack.c.bf16 %v531, %v530
      %v558 = vpack.c.bf16 %v533, %v532
      %v559 = vpack.c.bf16 %v535, %v534
      %v560 = vpack.c.bf16 %v537, %v536
      %v561 = vpack.c.bf16 %v539, %v538
      %v562 = vpack.c.bf16 %v541, %v540
      %v563 = vpack.c.bf16 %v543, %v542
      %v564 = vpack.c.bf16 %v545, %v544
      %v565 = vpack.c.bf16 %v547, %v546
      %v566 = vpack.c.bf16 %v549, %v548
      %v567 = vpack.c.bf16 %v551, %v550
      %v584 = vunpack.c.l.b16 %v552
      %v585 = vunpack.c.h.b16 %v552
      %v586 = vunpack.c.l.b16 %v553
      %v587 = vunpack.c.h.b16 %v553
      %v588 = vunpack.c.l.b16 %v554
      %v589 = vunpack.c.h.b16 %v554
      %v590 = vunpack.c.l.b16 %v555
      %v591 = vunpack.c.h.b16 %v555
      %v592 = vunpack.c.l.b16 %v556
      %v593 = vunpack.c.h.b16 %v556
      %v594 = vunpack.c.l.b16 %v557
      %v595 = vunpack.c.h.b16 %v557
      %v596 = vunpack.c.l.b16 %v558
      %v597 = vunpack.c.h.b16 %v558
      %v598 = vunpack.c.l.b16 %v559
      %v599 = vunpack.c.h.b16 %v559
      %v600 = vunpack.c.l.b16 %v560
      %v601 = vunpack.c.h.b16 %v560
      %v602 = vunpack.c.l.b16 %v561
      %v603 = vunpack.c.h.b16 %v561
      %v604 = vunpack.c.l.b16 %v562
      %v605 = vunpack.c.h.b16 %v562
      %v606 = vunpack.c.l.b16 %v563
      %v607 = vunpack.c.h.b16 %v563
      %v608 = vunpack.c.l.b16 %v564
      %v609 = vunpack.c.h.b16 %v564
      %v610 = vunpack.c.l.b16 %v565
      %v611 = vunpack.c.h.b16 %v565
      %v612 = vunpack.c.l.b16 %v566
      %v613 = vunpack.c.h.b16 %v566
      %v614 = vunpack.c.l.b16 %v567
      %v615 = vunpack.c.h.b16 %v567
      %v616 = vpack.c.b16 %v584, %v584
      %v617 = vpack.c.b16 %v585, %v585
      %v618 = vpack.c.b16 %v586, %v586
      %v619 = vpack.c.b16 %v587, %v587
      %v620 = vpack.c.b16 %v588, %v588
      %v621 = vpack.c.b16 %v589, %v589
      %v622 = vpack.c.b16 %v590, %v590
      %v623 = vpack.c.b16 %v591, %v591
      %v624 = vpack.c.b16 %v592, %v592
      %v625 = vpack.c.b16 %v593, %v593
      %v626 = vpack.c.b16 %v594, %v594
      %v627 = vpack.c.b16 %v595, %v595
      %v628 = vpack.c.b16 %v596, %v596
      %v629 = vpack.c.b16 %v597, %v597
      %v630 = vpack.c.b16 %v598, %v598
      %v631 = vpack.c.b16 %v599, %v599
      %v632 = vpack.c.b16 %v600, %v600
      %v633 = vpack.c.b16 %v601, %v601
      %v634 = vpack.c.b16 %v602, %v602
      %v635 = vpack.c.b16 %v603, %v603
      %v636 = vpack.c.b16 %v604, %v604
      %v637 = vpack.c.b16 %v605, %v605
      %v638 = vpack.c.b16 %v606, %v606
      %v639 = vpack.c.b16 %v607, %v607
      %v640 = vpack.c.b16 %v608, %v608
      %v641 = vpack.c.b16 %v609, %v609
      %v642 = vpack.c.b16 %v610, %v610
      %v643 = vpack.c.b16 %v611, %v611
      %v644 = vpack.c.b16 %v612, %v612
      %v645 = vpack.c.b16 %v613, %v613
      %v646 = vpack.c.b16 %v614, %v614
      %v647 = vpack.c.b16 %v615, %v615
      %vm680 = vcmask 125952
      %681 = vst.msk [vmem:[%s172] sm:$0xf] %vm680, %v616
      %682 = vst.msk [vmem:[%s172 + $0x4] sm:$0xf] %vm680, %v617
      %683 = vst.msk [vmem:[%s172 + $0x8] sm:$0xf] %vm680, %v618
      %684 = vst.msk [vmem:[%s172 + $0xc] sm:$0xf] %vm680, %v619
      %685 = vst.msk [vmem:[%s172 + $0x10] sm:$0xf] %vm680, %v620
      %686 = vst.msk [vmem:[%s172 + $0x14] sm:$0xf] %vm680, %v621
      %687 = vst.msk [vmem:[%s172 + $0x18] sm:$0xf] %vm680, %v622
      %688 = vst.msk [vmem:[%s172 + $0x1c] sm:$0xf] %vm680, %v623
      %689 = vst.msk [vmem:[%s172 + $0x20] sm:$0xf] %vm680, %v624
      %690 = vst.msk [vmem:[%s172 + $0x24] sm:$0xf] %vm680, %v625
      %691 = vst.msk [vmem:[%s172 + $0x28] sm:$0xf] %vm680, %v626
      %692 = vst.msk [vmem:[%s172 + $0x2c] sm:$0xf] %vm680, %v627
      %693 = vst.msk [vmem:[%s172 + $0x30] sm:$0xf] %vm680, %v628
      %694 = vst.msk [vmem:[%s172 + $0x34] sm:$0xf] %vm680, %v629
      %695 = vst.msk [vmem:[%s172 + $0x38] sm:$0xf] %vm680, %v630
      %696 = vst.msk [vmem:[%s172 + $0x3c] sm:$0xf] %vm680, %v631
      %697 = vst.msk [vmem:[%s172 + $0x40] sm:$0xf] %vm680, %v632
      %698 = vst.msk [vmem:[%s172 + $0x44] sm:$0xf] %vm680, %v633
      %699 = vst.msk [vmem:[%s172 + $0x48] sm:$0xf] %vm680, %v634
      %700 = vst.msk [vmem:[%s172 + $0x4c] sm:$0xf] %vm680, %v635
      %701 = vst.msk [vmem:[%s172 + $0x50] sm:$0xf] %vm680, %v636
      %702 = vst.msk [vmem:[%s172 + $0x54] sm:$0xf] %vm680, %v637
      %703 = vst.msk [vmem:[%s172 + $0x58] sm:$0xf] %vm680, %v638
      %704 = vst.msk [vmem:[%s172 + $0x5c] sm:$0xf] %vm680, %v639
      %705 = vst.msk [vmem:[%s172 + $0x60] sm:$0xf] %vm680, %v640
      %706 = vst.msk [vmem:[%s172 + $0x64] sm:$0xf] %vm680, %v641
      %707 = vst.msk [vmem:[%s172 + $0x68] sm:$0xf] %vm680, %v642
      %708 = vst.msk [vmem:[%s172 + $0x6c] sm:$0xf] %vm680, %v643
      %709 = vst.msk [vmem:[%s172 + $0x70] sm:$0xf] %vm680, %v644
      %710 = vst.msk [vmem:[%s172 + $0x74] sm:$0xf] %vm680, %v645
      %711 = vst.msk [vmem:[%s172 + $0x78] sm:$0xf] %vm680, %v646
      %712 = vst.msk [vmem:[%s172 + $0x7c] sm:$0xf] %vm680, %v647
      %s713 = smul.u32 32, %s14
      %p714 = scmp.lt.s32.totalorder %s713, 63
      %s715 = scalar_select %p714, %s713, 63
      %s716 = smul.addr %s715, 4
      %s717 = scalar_lea.vmem %s3, %s716
      // Predicated region
      $region33: #{fire_forward.2} parent=31 // pred_check
        %p718 = pneg %p100
      $region34: #{fire_forward.2} parent=31 // pred_check_branch
        %720 = sbr.rel (%p718) target = $region36
      $region35: #{fire_forward.2} parent=31 // pred_region
        %s721 = smul.u32 32, %s14
      $region36: #{fire_forward.2} parent=31 // pred_fallthru
        _
    $region32: #{fire_forward.2} parent=5 // pred_fallthru
      _
    %p722 = scmp.le.s32.totalorder 2, %s9
    // Predicated region
    $region37: #{fire_forward.2} parent=5 // pred_check
      %p723 = pneg %p722
    $region38: #{fire_forward.2} parent=5 // pred_check_branch
      %725 = sbr.rel (%p723) target = $region40
    $region39: #{fire_forward.2} parent=5 // pred_region
      %s726 = ssub.s32 %s9, 2
      // Predicated region
      $region41: #{fire_forward.2} parent=39 // pred_check
        %p727 = pneg %p106
      $region42: #{fire_forward.2} parent=39 // pred_check_branch
        %729 = sbr.rel (%p727) target = $region44
      $region43: #{fire_forward.2} parent=39 // pred_region
        %s730 = smul.u32 32, %s15
        %p731 = scmp.lt.s32.totalorder %s730, 63
        %s732 = scalar_select %p731, %s730, 63
        %s733 = smul.addr %s732, 4
        %s734 = scalar_lea.vmem %s3, %s733
      $region44: #{fire_forward.2} parent=39 // pred_fallthru
        _
    $region40: #{fire_forward.2} parent=5 // pred_fallthru
      _
  $region6: #{fire_forward.2} parent=0 // loop_footer
    %s13 = sadd.s32 1, %s9
  $region7: #{fire_forward.2} parent=0 // loop_footer_branch
    %8 = sbr.rel target = $region3
  $region8: #{fire_forward.2} parent=0 // loop_exit
    _

// kernel: fire_forward.3
$region0: #{fire_forward.3}
  #allocation0 [shape = 'u32[]', space=smem, size = 0x4, offset = 0x4, fixed_abs, tag = 'smem constant byte address 0x4 - core index']
  #allocation1 [shape = 'u32[144,128]{1,0:T(1,128)}', space=vmem, size = 0x12000, scoped, tag = 'internal scratch']
  %s0 = inlined_call_operand.vmem [shape: bf16[2,18,18,16], index: 0, kind: input, shape index: {}]
  %s1 = inlined_call_operand.vmem [shape: bf16[16,64], index: 1, kind: input, shape index: {}]
  %s2 = inlined_call_operand.vmem [shape: f32[1,64], index: 2, kind: input, shape index: {}]
  %s3 = inlined_call_operand.vmem [shape: bf16[9,16,64], index: 3, kind: input, shape index: {}]
  %s4 = inlined_call_operand.vmem [shape: f32[1,64], index: 4, kind: input, shape index: {}]
  %s5 = inlined_call_operand.hbm [shape: f32[2,16,16,128], index: 5, kind: output, shape index: {}]
  %s6 = sld [smem:[#allocation0]]
  $region53: #{fire_forward.3} parent=0
    _
  %s8 = ssub.s32 1, %s6
  %s9 = scalar_select 0, %s8, %s6
  $region1: #{fire_forward.3} parent=0
    #allocation2 [shape = 'u8[262144]{0}', space=vmem, size = 0x40000, scoped, tag = 'output window, operand 0']
    #allocation3 [shape = 's32[2]{0}', space=sflag, size = 0x8, scoped, tag = 'scoped memory for fire_forward.3']
    %10 = vsyncpa [#allocation3], 0
    %s11 = scalar_lea.sflag [#allocation3], 1
    %12 = vsyncpa %s11, 0
    loop: start=0, step=1, limit=4
    $region2: #{fire_forward.3} parent=1 // loop_pre_header
      _
    $region3: #{fire_forward.3} parent=1 // loop_header
      %s14 = sphi 0, %s18
      %p15 = scmp.ge.s32.totalorder %s14, 4
      %s24 = sphi 0, %s26
      %s27 = sphi 0, %s24
      %s28 = sphi 0, %s27
      %s44 = sphi 0, %s28
      %s48 = sphi 0, %s48
      %s50 = sphi 0, %s48
      %s51 = sphi 0, %s50
      %s65 = sphi 0, %s51
      %s69 = sphi 0, %s69
      %s71 = sphi 0, %s69
      %s72 = sphi 0, %s71
      %s86 = sphi 0, %s72
      %s90 = sphi 0, %s90
      %s92 = sphi 0, %s90
      %s93 = sphi 0, %s92
      %s107 = sphi 0, %s93
      %s111 = sphi 0, %s111
      %s113 = sphi 0, %s111
      %s114 = sphi 0, %s113
      %s128 = sphi 0, %s114
      %s134 = sphi 0, %s136
      %s137 = sphi 0, %s134
      %s138 = sphi 0, %s137
      %s154 = sphi 0, %s138
    $region4: #{fire_forward.3} parent=1 // loop_header_branch
      %17 = sbr.rel (%p15) target = $region8
    $region5: #{fire_forward.3} parent=1 // loop_body
      %s19 = ssub.s32 %s14, 1
      %s20 = ssub.s32 %s14, 2
      %s21 = sadd.s32 %s14, 1
      %s22 = ssub.s32 %s14, %s21
      %p23 = scmp.eq.s32.totalorder %s22, 0
      %s25 = sadd.s32 %s24, 1
      %s26 = scalar_select %p23, %s24, %s25
      %p29 = pneg %p23
      %p30 = scmp.eq.s32.totalorder %s14, 1
      %p31 = por %p29, %p30
      %p32 = scmp.ne.s32.totalorder %s24, %s27
      %p33 = scmp.eq.s32.totalorder %s14, 0
      %p34 = por %p32, %p33
      %p35 = scmp.ne.s32.totalorder %s24, %s27
      %p36 = scmp.eq.s32.totalorder %s19, 1
      %p37 = por %p35, %p36
      %p38 = scmp.ne.s32.totalorder %s27, %s28
      %p39 = scmp.eq.s32.totalorder %s19, 0
      %p40 = por %p38, %p39
      %p41 = scmp.ne.s32.totalorder %s27, %s28
      %p42 = scmp.eq.s32.totalorder %s20, 1
      %p43 = por %p41, %p42
      %p45 = scmp.ne.s32.totalorder %s28, %s44
      %p46 = scmp.eq.s32.totalorder %s20, 0
      %p47 = por %p45, %p46
      %s49 = sadd.s32 %s48, 1
      %p52 = scmp.eq.s32.totalorder %s14, 1
      %p53 = scmp.ne.s32.totalorder %s48, %s50
      %p54 = scmp.eq.s32.totalorder %s14, 0
      %p55 = por %p53, %p54
      %p56 = scmp.ne.s32.totalorder %s48, %s50
      %p57 = scmp.eq.s32.totalorder %s19, 1
      %p58 = por %p56, %p57
      %p59 = scmp.ne.s32.totalorder %s50, %s51
      %p60 = scmp.eq.s32.totalorder %s19, 0
      %p61 = por %p59, %p60
      %p62 = scmp.ne.s32.totalorder %s50, %s51
      %p63 = scmp.eq.s32.totalorder %s20, 1
      %p64 = por %p62, %p63
      %p66 = scmp.ne.s32.totalorder %s51, %s65
      %p67 = scmp.eq.s32.totalorder %s20, 0
      %p68 = por %p66, %p67
      %s70 = sadd.s32 %s69, 1
      %p73 = scmp.eq.s32.totalorder %s14, 1
      %p74 = scmp.ne.s32.totalorder %s69, %s71
      %p75 = scmp.eq.s32.totalorder %s14, 0
      %p76 = por %p74, %p75
      %p77 = scmp.ne.s32.totalorder %s69, %s71
      %p78 = scmp.eq.s32.totalorder %s19, 1
      %p79 = por %p77, %p78
      %p80 = scmp.ne.s32.totalorder %s71, %s72
      %p81 = scmp.eq.s32.totalorder %s19, 0
      %p82 = por %p80, %p81
      %p83 = scmp.ne.s32.totalorder %s71, %s72
      %p84 = scmp.eq.s32.totalorder %s20, 1
      %p85 = por %p83, %p84
      %p87 = scmp.ne.s32.totalorder %s72, %s86
      %p88 = scmp.eq.s32.totalorder %s20, 0
      %p89 = por %p87, %p88
      %s91 = sadd.s32 %s90, 1
      %p94 = scmp.eq.s32.totalorder %s14, 1
      %p95 = scmp.ne.s32.totalorder %s90, %s92
      %p96 = scmp.eq.s32.totalorder %s14, 0
      %p97 = por %p95, %p96
      %p98 = scmp.ne.s32.totalorder %s90, %s92
      %p99 = scmp.eq.s32.totalorder %s19, 1
      %p100 = por %p98, %p99
      %p101 = scmp.ne.s32.totalorder %s92, %s93
      %p102 = scmp.eq.s32.totalorder %s19, 0
      %p103 = por %p101, %p102
      %p104 = scmp.ne.s32.totalorder %s92, %s93
      %p105 = scmp.eq.s32.totalorder %s20, 1
      %p106 = por %p104, %p105
      %p108 = scmp.ne.s32.totalorder %s93, %s107
      %p109 = scmp.eq.s32.totalorder %s20, 0
      %p110 = por %p108, %p109
      %s112 = sadd.s32 %s111, 1
      %p115 = scmp.eq.s32.totalorder %s14, 1
      %p116 = scmp.ne.s32.totalorder %s111, %s113
      %p117 = scmp.eq.s32.totalorder %s14, 0
      %p118 = por %p116, %p117
      %p119 = scmp.ne.s32.totalorder %s111, %s113
      %p120 = scmp.eq.s32.totalorder %s19, 1
      %p121 = por %p119, %p120
      %p122 = scmp.ne.s32.totalorder %s113, %s114
      %p123 = scmp.eq.s32.totalorder %s19, 0
      %p124 = por %p122, %p123
      %p125 = scmp.ne.s32.totalorder %s113, %s114
      %p126 = scmp.eq.s32.totalorder %s20, 1
      %p127 = por %p125, %p126
      %p129 = scmp.ne.s32.totalorder %s114, %s128
      %p130 = scmp.eq.s32.totalorder %s20, 0
      %p131 = por %p129, %p130
      %s132 = ssub.s32 %s14, %s21
      %p133 = scmp.eq.s32.totalorder %s132, 0
      %s135 = sadd.s32 %s134, 1
      %s136 = scalar_select %p133, %s134, %s135
      %p139 = pneg %p133
      %p140 = scmp.eq.s32.totalorder %s14, 1
      %p141 = por %p139, %p140
      %p142 = scmp.ne.s32.totalorder %s134, %s137
      %p143 = scmp.eq.s32.totalorder %s14, 0
      %p144 = por %p142, %p143
      %p145 = scmp.ne.s32.totalorder %s134, %s137
      %p146 = scmp.eq.s32.totalorder %s19, 1
      %p147 = por %p145, %p146
      %p148 = scmp.ne.s32.totalorder %s137, %s138
      %p149 = scmp.eq.s32.totalorder %s19, 0
      %p150 = por %p148, %p149
      %p151 = scmp.ne.s32.totalorder %s137, %s138
      %p152 = scmp.eq.s32.totalorder %s20, 1
      %p153 = por %p151, %p152
      %p155 = scmp.ne.s32.totalorder %s138, %s154
      %p156 = scmp.eq.s32.totalorder %s20, 0
      %p157 = por %p155, %p156
      %p158 = scmp.le.s32.totalorder 1, %s14
      %p159 = scmp.lt.s32.totalorder %s14, 3
      %p160 = pnand %p158, %p159
      %p161 = pneg %p160
      // Predicated region
      $region9: #{fire_forward.3} parent=5 // pred_check
        _
      $region10: #{fire_forward.3} parent=5 // pred_check_branch
        %163 = sbr.rel (%p160) target = $region12
      $region11: #{fire_forward.3} parent=5 // pred_region
        %s164 = ssub.s32 %s14, 1
        // Predicated region
        $region13: #{fire_forward.3} parent=11 // pred_check
          %p165 = pneg %p61
        $region14: #{fire_forward.3} parent=11 // pred_check_branch
          %167 = sbr.rel (%p165) target = $region16
        $region15: #{fire_forward.3} parent=11 // pred_region
          _
        $region16: #{fire_forward.3} parent=11 // pred_fallthru
          _
        // Predicated region
        $region17: #{fire_forward.3} parent=11 // pred_check
          %p168 = pneg %p82
        $region18: #{fire_forward.3} parent=11 // pred_check_branch
          %170 = sbr.rel (%p168) target = $region20
        $region19: #{fire_forward.3} parent=11 // pred_region
          _
        $region20: #{fire_forward.3} parent=11 // pred_fallthru
          _
        // Predicated region
        $region21: #{fire_forward.3} parent=11 // pred_check
          %p171 = pneg %p103
        $region22: #{fire_forward.3} parent=11 // pred_check_branch
          %173 = sbr.rel (%p171) target = $region24
        $region23: #{fire_forward.3} parent=11 // pred_region
          _
        $region24: #{fire_forward.3} parent=11 // pred_fallthru
          _
        // Predicated region
        $region25: #{fire_forward.3} parent=11 // pred_check
          %p174 = pneg %p124
        $region26: #{fire_forward.3} parent=11 // pred_check_branch
          %176 = sbr.rel (%p174) target = $region28
        $region27: #{fire_forward.3} parent=11 // pred_region
          _
        $region28: #{fire_forward.3} parent=11 // pred_fallthru
          _
      $region12: #{fire_forward.3} parent=5 // pred_fallthru
        _
      %p177 = scmp.lt.s32.totalorder %s14, 2
      // Predicated region
      $region29: #{fire_forward.3} parent=5 // pred_check
        %p178 = pneg %p177
      $region30: #{fire_forward.3} parent=5 // pred_check_branch
        %180 = sbr.rel (%p178) target = $region32
      $region31: #{fire_forward.3} parent=5 // pred_region
        // Predicated region
        $region33: #{fire_forward.3} parent=31 // pred_check
          %p181 = pneg %p34
        $region34: #{fire_forward.3} parent=31 // pred_check_branch
          %183 = sbr.rel (%p181) target = $region36
        $region35: #{fire_forward.3} parent=31 // pred_region
          %p184 = scmp.lt.s32.totalorder %s14, 1
          %s185 = scalar_select %p184, %s14, 1
          %s186 = smul.addr %s185, 54
          %s187 = smul.addr %s186, 4
          %s188 = scalar_lea.vmem %s0, %s187
        $region36: #{fire_forward.3} parent=31 // pred_fallthru
          _
      $region32: #{fire_forward.3} parent=5 // pred_fallthru
        _
      %p189 = scmp.le.s32.totalorder 1, %s14
      %p190 = scmp.lt.s32.totalorder %s14, 3
      %p191 = pnand %p189, %p190
      %p192 = pneg %p191
      // Predicated region
      $region37: #{fire_forward.3} parent=5 // pred_check
        _
      $region38: #{fire_forward.3} parent=5 // pred_check_branch
        %194 = sbr.rel (%p191) target = $region40
      $region39: #{fire_forward.3} parent=5 // pred_region
        %s195 = ssub.s32 %s14, 1
        %p196 = scmp.lt.s32.totalorder %s19, 1
        %s197 = scalar_select %p196, %s19, 1
        %s198 = smul.addr %s197, 54
        %s199 = smul.addr %s198, 4
        %s200 = scalar_lea.vmem %s0, %s199
        %p201 = pneg %p40
        %p202 = pneg %p37
        %p203 = pneg %p61
        %p204 = pneg %p58
        %p205 = pneg %p82
        %p206 = pneg %p79
        %p207 = pneg %p103
        %p208 = pneg %p100
        %p209 = pneg %p124
        %p210 = pneg %p121
        %p211 = pneg %p150
        %p212 = pneg %p147
        %s213 = sand.u32 %s137, 1
        %s214 = scalar_lea.sflag [#allocation3], %s213
        %s215 = sand.u32 %s137, 1
        %s216 = smul.addr %s215, 256
        %s217 = scalar_lea.vmem [#allocation2], %s216
        %p218 = scmp.lt.s32.totalorder %s19, 1
        %s219 = scalar_select %p218, %s19, 1
        %s220 = smul.addr %s219, 54
        %s221 = smul.addr %s220, 4
        %s222 = scalar_lea.vmem %s0, %s221
        %v224 = vld [vmem:[%s222] sm:$0xf]
        %v225 = vld [vmem:[%s222 + $0x4] sm:$0xf]
        %v226 = vld [vmem:[%s222 + $0x8] sm:$0x1]
        %v227 = vld [vmem:[%s222 + $0xc] sm:$0xf]
        %v228 = vld [vmem:[%s222 + $0x10] sm:$0xf]
        %v229 = vld [vmem:[%s222 + $0x14] sm:$0x1]
        %v230 = vld [vmem:[%s222 + $0x18] sm:$0xf]
        %v231 = vld [vmem:[%s222 + $0x1c] sm:$0xf]
        %v232 = vld [vmem:[%s222 + $0x20] sm:$0x1]
        %v233 = vld [vmem:[%s222 + $0x24] sm:$0xf]
        %v234 = vld [vmem:[%s222 + $0x28] sm:$0xf]
        %v235 = vld [vmem:[%s222 + $0x2c] sm:$0x1]
        %v236 = vld [vmem:[%s222 + $0x30] sm:$0xf]
        %v237 = vld [vmem:[%s222 + $0x34] sm:$0xf]
        %v238 = vld [vmem:[%s222 + $0x38] sm:$0x1]
        %v239 = vld [vmem:[%s222 + $0x3c] sm:$0xf]
        %v240 = vld [vmem:[%s222 + $0x40] sm:$0xf]
        %v241 = vld [vmem:[%s222 + $0x44] sm:$0x1]
        %v242 = vld [vmem:[%s222 + $0x48] sm:$0xf]
        %v243 = vld [vmem:[%s222 + $0x4c] sm:$0xf]
        %v244 = vld [vmem:[%s222 + $0x50] sm:$0x1]
        %v245 = vld [vmem:[%s222 + $0x54] sm:$0xf]
        %v246 = vld [vmem:[%s222 + $0x58] sm:$0xf]
        %v247 = vld [vmem:[%s222 + $0x5c] sm:$0x1]
        %v248 = vld [vmem:[%s222 + $0x60] sm:$0xf]
        %v249 = vld [vmem:[%s222 + $0x64] sm:$0xf]
        %v250 = vld [vmem:[%s222 + $0x68] sm:$0x1]
        %v251 = vld [vmem:[%s222 + $0x6c] sm:$0xf]
        %v252 = vld [vmem:[%s222 + $0x70] sm:$0xf]
        %v253 = vld [vmem:[%s222 + $0x74] sm:$0x1]
        %v254 = vld [vmem:[%s222 + $0x78] sm:$0xf]
        %v255 = vld [vmem:[%s222 + $0x7c] sm:$0xf]
        %v256 = vld [vmem:[%s222 + $0x80] sm:$0x1]
        %v257 = vld [vmem:[%s222 + $0x84] sm:$0xf]
        %v258 = vld [vmem:[%s222 + $0x88] sm:$0xf]
        %v259 = vld [vmem:[%s222 + $0x8c] sm:$0x1]
        %v260 = vld [vmem:[%s222 + $0x90] sm:$0xf]
        %v261 = vld [vmem:[%s222 + $0x94] sm:$0xf]
        %v262 = vld [vmem:[%s222 + $0x98] sm:$0x1]
        %v263 = vld [vmem:[%s222 + $0x9c] sm:$0xf]
        %v264 = vld [vmem:[%s222 + $0xa0] sm:$0xf]
        %v265 = vld [vmem:[%s222 + $0xa4] sm:$0x1]
        %v266 = vld [vmem:[%s222 + $0xa8] sm:$0xf]
        %v267 = vld [vmem:[%s222 + $0xac] sm:$0xf]
        %v268 = vld [vmem:[%s222 + $0xb0] sm:$0x1]
        %v269 = vld [vmem:[%s222 + $0xb4] sm:$0xf]
        %v270 = vld [vmem:[%s222 + $0xb8] sm:$0xf]
        %v271 = vld [vmem:[%s222 + $0xbc] sm:$0x1]
        %v272 = vld [vmem:[%s222 + $0xc0] sm:$0xf]
        %v273 = vld [vmem:[%s222 + $0xc4] sm:$0xf]
        %v274 = vld [vmem:[%s222 + $0xc8] sm:$0x1]
        %v275 = vld [vmem:[%s222 + $0xcc] sm:$0xf]
        %v276 = vld [vmem:[%s222 + $0xd0] sm:$0xf]
        %v277 = vld [vmem:[%s222 + $0xd4] sm:$0x1]
        %vm278 = vsmask.f32 3328
        %vm279 = vsmask.f32 7440
        %vm280 = vmor %vm278, %vm279
        %v282 = vshrl.u32 %v227, 16
        %v284 = vrot.slane %v282, 4
        %v285 = vshll.u32 %v227, 16
        %v287 = vrot.slane %v285, 5
        %v288 = vor.u32 %v284, %v287
        %v289 = vrot.slane %v288, 4
        %v291 = vshll.u32 %v228, 16
        %v293 = vrot.slane %v291, 5
        %v294 = vsel %vm280, %v289, %v293
        %v295 = vshrl.u32 %v228, 16
        %v297 = vrot.slane %v295, 4
        %v298 = vor.u32 %v297, %v293
        %v299 = vrot.slane %v298, 4
        %v301 = vshll.u32 %v229, 16
        %v303 = vrot.slane %v301, 5
        %v304 = vsel %vm280, %v299, %v303
        %v306 = vshrl.u32 %v230, 16
        %v308 = vrot.slane %v306, 4
        %v309 = vshll.u32 %v230, 16
        %v311 = vrot.slane %v309, 5
        %v312 = vor.u32 %v308, %v311
        %v313 = vrot.slane %v312, 4
        %v315 = vshll.u32 %v231, 16
        %v317 = vrot.slane %v315, 5
        %v318 = vsel %vm280, %v313, %v317
        %v319 = vshrl.u32 %v231, 16
        %v321 = vrot.slane %v319, 4
        %v322 = vor.u32 %v321, %v317
        %v323 = vrot.slane %v322, 4
        %v325 = vshll.u32 %v232, 16
        %v327 = vrot.slane %v325, 5
        %v328 = vsel %vm280, %v323, %v327
        %v330 = vshrl.u32 %v233, 16
        %v332 = vrot.slane %v330, 4
        %v333 = vshll.u32 %v233, 16
        %v335 = vrot.slane %v333, 5
        %v336 = vor.u32 %v332, %v335
        %v337 = vrot.slane %v336, 4
        %v339 = vshll.u32 %v234, 16
        %v341 = vrot.slane %v339, 5
        %v342 = vsel %vm280, %v337, %v341
        %v343 = vshrl.u32 %v234, 16
        %v345 = vrot.slane %v343, 4
        %v346 = vor.u32 %v345, %v341
        %v347 = vrot.slane %v346, 4
        %v349 = vshll.u32 %v235, 16
        %v351 = vrot.slane %v349, 5
        %v352 = vsel %vm280, %v347, %v351
        %v354 = vshrl.u32 %v236, 16
        %v356 = vrot.slane %v354, 4
        %v357 = vshll.u32 %v236, 16
        %v359 = vrot.slane %v357, 5
        %v360 = vor.u32 %v356, %v359
        %v361 = vrot.slane %v360, 4
        %v363 = vshll.u32 %v237, 16
        %v365 = vrot.slane %v363, 5
        %v366 = vsel %vm280, %v361, %v365
        %v367 = vshrl.u32 %v237, 16
        %v369 = vrot.slane %v367, 4
        %v370 = vor.u32 %v369, %v365
        %v371 = vrot.slane %v370, 4
        %v373 = vshll.u32 %v238, 16
        %v375 = vrot.slane %v373, 5
        %v376 = vsel %vm280, %v371, %v375
        %v378 = vshrl.u32 %v239, 16
        %v380 = vrot.slane %v378, 4
        %v381 = vshll.u32 %v239, 16
        %v383 = vrot.slane %v381, 5
        %v384 = vor.u32 %v380, %v383
        %v385 = vrot.slane %v384, 4
        %v387 = vshll.u32 %v240, 16
        %v389 = vrot.slane %v387, 5
        %v390 = vsel %vm280, %v385, %v389
        %v391 = vshrl.u32 %v240, 16
        %v393 = vrot.slane %v391, 4
        %v394 = vor.u32 %v393, %v389
        %v395 = vrot.slane %v394, 4
        %v397 = vshll.u32 %v241, 16
        %v399 = vrot.slane %v397, 5
        %v400 = vsel %vm280, %v395, %v399
        %v402 = vshrl.u32 %v242, 16
        %v404 = vrot.slane %v402, 4
        %v405 = vshll.u32 %v242, 16
        %v407 = vrot.slane %v405, 5
        %v408 = vor.u32 %v404, %v407
        %v409 = vrot.slane %v408, 4
        %v411 = vshll.u32 %v243, 16
        %v413 = vrot.slane %v411, 5
        %v414 = vsel %vm280, %v409, %v413
        %v415 = vshrl.u32 %v243, 16
        %v417 = vrot.slane %v415, 4
        %v418 = vor.u32 %v417, %v413
        %v419 = vrot.slane %v418, 4
        %v421 = vshll.u32 %v244, 16
        %v423 = vrot.slane %v421, 5
        %v424 = vsel %vm280, %v419, %v423
        %v426 = vshrl.u32 %v245, 16
        %v428 = vrot.slane %v426, 4
        %v429 = vshll.u32 %v245, 16
        %v431 = vrot.slane %v429, 5
        %v432 = vor.u32 %v428, %v431
        %v433 = vrot.slane %v432, 4
        %v435 = vshll.u32 %v246, 16
        %v437 = vrot.slane %v435, 5
        %v438 = vsel %vm280, %v433, %v437
        %v439 = vshrl.u32 %v246, 16
        %v441 = vrot.slane %v439, 4
        %v442 = vor.u32 %v441, %v437
        %v443 = vrot.slane %v442, 4
        %v445 = vshll.u32 %v247, 16
        %v447 = vrot.slane %v445, 5
        %v448 = vsel %vm280, %v443, %v447
        %v450 = vshrl.u32 %v248, 16
        %v452 = vrot.slane %v450, 4
        %v453 = vshll.u32 %v248, 16
        %v455 = vrot.slane %v453, 5
        %v456 = vor.u32 %v452, %v455
        %v457 = vrot.slane %v456, 4
        %v459 = vshll.u32 %v249, 16
        %v461 = vrot.slane %v459, 5
        %v462 = vsel %vm280, %v457, %v461
        %v463 = vshrl.u32 %v249, 16
        %v465 = vrot.slane %v463, 4
        %v466 = vor.u32 %v465, %v461
        %v467 = vrot.slane %v466, 4
        %v469 = vshll.u32 %v250, 16
        %v471 = vrot.slane %v469, 5
        %v472 = vsel %vm280, %v467, %v471
        %v474 = vshrl.u32 %v251, 16
        %v476 = vrot.slane %v474, 4
        %v477 = vshll.u32 %v251, 16
        %v479 = vrot.slane %v477, 5
        %v480 = vor.u32 %v476, %v479
        %v481 = vrot.slane %v480, 4
        %v483 = vshll.u32 %v252, 16
        %v485 = vrot.slane %v483, 5
        %v486 = vsel %vm280, %v481, %v485
        %v487 = vshrl.u32 %v252, 16
        %v489 = vrot.slane %v487, 4
        %v490 = vor.u32 %v489, %v485
        %v491 = vrot.slane %v490, 4
        %v493 = vshll.u32 %v253, 16
        %v495 = vrot.slane %v493, 5
        %v496 = vsel %vm280, %v491, %v495
        %v498 = vshrl.u32 %v254, 16
        %v500 = vrot.slane %v498, 4
        %v501 = vshll.u32 %v254, 16
        %v503 = vrot.slane %v501, 5
        %v504 = vor.u32 %v500, %v503
        %v505 = vrot.slane %v504, 4
        %v507 = vshll.u32 %v255, 16
        %v509 = vrot.slane %v507, 5
        %v510 = vsel %vm280, %v505, %v509
        %v511 = vshrl.u32 %v255, 16
        %v513 = vrot.slane %v511, 4
        %v514 = vor.u32 %v513, %v509
        %v515 = vrot.slane %v514, 4
        %v517 = vshll.u32 %v256, 16
        %v519 = vrot.slane %v517, 5
        %v520 = vsel %vm280, %v515, %v519
        %v522 = vshrl.u32 %v257, 16
        %v524 = vrot.slane %v522, 4
        %v525 = vshll.u32 %v257, 16
        %v527 = vrot.slane %v525, 5
        %v528 = vor.u32 %v524, %v527
        %v529 = vrot.slane %v528, 4
        %v531 = vshll.u32 %v258, 16
        %v533 = vrot.slane %v531, 5
        %v534 = vsel %vm280, %v529, %v533
        %v535 = vshrl.u32 %v258, 16
        %v537 = vrot.slane %v535, 4
        %v538 = vor.u32 %v537, %v533
        %v539 = vrot.slane %v538, 4
        %v541 = vshll.u32 %v259, 16
        %v543 = vrot.slane %v541, 5
        %v544 = vsel %vm280, %v539, %v543
        %v546 = vshrl.u32 %v260, 16
        %v548 = vrot.slane %v546, 4
        %v549 = vshll.u32 %v260, 16
        %v551 = vrot.slane %v549, 5
        %v552 = vor.u32 %v548, %v551
        %v553 = vrot.slane %v552, 4
        %v555 = vshll.u32 %v261, 16
        %v557 = vrot.slane %v555, 5
        %v558 = vsel %vm280, %v553, %v557
        %v559 = vshrl.u32 %v261, 16
        %v561 = vrot.slane %v559, 4
        %v562 = vor.u32 %v561, %v557
        %v563 = vrot.slane %v562, 4
        %v565 = vshll.u32 %v262, 16
        %v567 = vrot.slane %v565, 5
        %v568 = vsel %vm280, %v563, %v567
        %v570 = vshrl.u32 %v263, 16
        %v572 = vrot.slane %v570, 4
        %v573 = vshll.u32 %v263, 16
        %v575 = vrot.slane %v573, 5
        %v576 = vor.u32 %v572, %v575
        %v577 = vrot.slane %v576, 4
        %v579 = vshll.u32 %v264, 16
        %v581 = vrot.slane %v579, 5
        %v582 = vsel %vm280, %v577, %v581
        %v583 = vshrl.u32 %v264, 16
        %v585 = vrot.slane %v583, 4
        %v586 = vor.u32 %v585, %v581
        %v587 = vrot.slane %v586, 4
        %v589 = vshll.u32 %v265, 16
        %v591 = vrot.slane %v589, 5
        %v592 = vsel %vm280, %v587, %v591
        %v594 = vshrl.u32 %v266, 16
        %v596 = vrot.slane %v594, 4
        %v597 = vshll.u32 %v266, 16
        %v599 = vrot.slane %v597, 5
        %v600 = vor.u32 %v596, %v599
        %v601 = vrot.slane %v600, 4
        %v603 = vshll.u32 %v267, 16
        %v605 = vrot.slane %v603, 5
        %v606 = vsel %vm280, %v601, %v605
        %v607 = vshrl.u32 %v267, 16
        %v609 = vrot.slane %v607, 4
        %v610 = vor.u32 %v609, %v605
        %v611 = vrot.slane %v610, 4
        %v613 = vshll.u32 %v268, 16
        %v615 = vrot.slane %v613, 5
        %v616 = vsel %vm280, %v611, %v615
        %v618 = vshrl.u32 %v269, 16
        %v620 = vrot.slane %v618, 4
        %v621 = vshll.u32 %v269, 16
        %v623 = vrot.slane %v621, 5
        %v624 = vor.u32 %v620, %v623
        %v625 = vrot.slane %v624, 4
        %v627 = vshll.u32 %v270, 16
        %v629 = vrot.slane %v627, 5
        %v630 = vsel %vm280, %v625, %v629
        %v631 = vshrl.u32 %v270, 16
        %v633 = vrot.slane %v631, 4
        %v634 = vor.u32 %v633, %v629
        %v635 = vrot.slane %v634, 4
        %v637 = vshll.u32 %v271, 16
        %v639 = vrot.slane %v637, 5
        %v640 = vsel %vm280, %v635, %v639
        %v642 = vshrl.u32 %v272, 16
        %v644 = vrot.slane %v642, 4
        %v645 = vshll.u32 %v272, 16
        %v647 = vrot.slane %v645, 5
        %v648 = vor.u32 %v644, %v647
        %v649 = vrot.slane %v648, 4
        %v651 = vshll.u32 %v273, 16
        %v653 = vrot.slane %v651, 5
        %v654 = vsel %vm280, %v649, %v653
        %v655 = vshrl.u32 %v273, 16
        %v657 = vrot.slane %v655, 4
        %v658 = vor.u32 %v657, %v653
        %v659 = vrot.slane %v658, 4
        %v661 = vshll.u32 %v274, 16
        %v663 = vrot.slane %v661, 5
        %v664 = vsel %vm280, %v659, %v663
        %v665 = vld [vmem:[%s1] sm:$0xf]
        %v666 = vld [vmem:[%s1 + $0x4] sm:$0xf]
        %v667 = vld [vmem:[%s2] sm:$0x1]
        %v669 = vlaneseq
        %v670 = vshrl.u32 %v669, 7
        %v671 = vsub.s32 0, %v670
        %v672 = vrot.slane %v667, %v671
        %v674 = vunpack.c.l.b16 %v294
        %v675 = vunpack.c.l.b16 %v304
        %v676 = vunpack.c.l.b16 %v318
        %v677 = vunpack.c.l.b16 %v328
        %v678 = vunpack.c.l.b16 %v342
        %v679 = vunpack.c.l.b16 %v352
        %v680 = vunpack.c.l.b16 %v366
        %v681 = vunpack.c.l.b16 %v376
        %v682 = vunpack.c.l.b16 %v390
        %v683 = vunpack.c.l.b16 %v400
        %v684 = vunpack.c.l.b16 %v414
        %v685 = vunpack.c.l.b16 %v424
        %v686 = vunpack.c.l.b16 %v438
        %v687 = vunpack.c.l.b16 %v448
        %v688 = vunpack.c.l.b16 %v462
        %v689 = vunpack.c.l.b16 %v472
        %v690 = vunpack.c.l.b16 %v486
        %v691 = vunpack.c.l.b16 %v496
        %v692 = vunpack.c.l.b16 %v510
        %v693 = vunpack.c.l.b16 %v520
        %v694 = vunpack.c.l.b16 %v534
        %v695 = vunpack.c.l.b16 %v544
        %v696 = vunpack.c.l.b16 %v558
        %v697 = vunpack.c.l.b16 %v568
        %v698 = vunpack.c.l.b16 %v582
        %v699 = vunpack.c.l.b16 %v592
        %v700 = vunpack.c.l.b16 %v606
        %v701 = vunpack.c.l.b16 %v616
        %v702 = vunpack.c.l.b16 %v630
        %v703 = vunpack.c.l.b16 %v640
        %v704 = vunpack.c.l.b16 %v654
        %v705 = vunpack.c.l.b16 %v664
        %v706 = vpack.c.b16 %v675, %v674
        %v707 = vpack.c.b16 %v677, %v676
        %v708 = vpack.c.b16 %v679, %v678
        %v709 = vpack.c.b16 %v681, %v680
        %v710 = vpack.c.b16 %v683, %v682
        %v711 = vpack.c.b16 %v685, %v684
        %v712 = vpack.c.b16 %v687, %v686
        %v713 = vpack.c.b16 %v689, %v688
        %v714 = vpack.c.b16 %v691, %v690
        %v715 = vpack.c.b16 %v693, %v692
        %v716 = vpack.c.b16 %v695, %v694
        %v717 = vpack.c.b16 %v697, %v696
        %v718 = vpack.c.b16 %v699, %v698
        %v719 = vpack.c.b16 %v701, %v700
        %v720 = vpack.c.b16 %v703, %v702
        %v721 = vpack.c.b16 %v705, %v704
        %v724 = vunpack.c.l.b16 %v665
        %v725 = vunpack.c.l.b16 %v666
        %v726 = vpack.c.b16 %v725, %v724
        %vm728 = vcmask 130048
        %v730 = vsel %vm728, %v706, 0
        %v733 = vsel %vm728, %v707, 0
        %v736 = vsel %vm728, %v708, 0
        %v739 = vsel %vm728, %v709, 0
        %v742 = vsel %vm728, %v710, 0
        %v745 = vsel %vm728, %v711, 0
        %v748 = vsel %vm728, %v712, 0
        %v751 = vsel %vm728, %v713, 0
        %v754 = vsel %vm728, %v714, 0
        %v757 = vsel %vm728, %v715, 0
        %v760 = vsel %vm728, %v716, 0
        %v763 = vsel %vm728, %v717, 0
        %v766 = vsel %vm728, %v718, 0
        %v769 = vsel %vm728, %v719, 0
        %v772 = vsel %vm728, %v720, 0
        %v775 = vsel %vm728, %v721, 0
        %777 = vmatprep.subr.bf16.mxu0 0
        %778 = vmatpush1.bf16.msra.mxu0 %v726
        %779 = vmatprep.subr.bf16.mxu0 0
        %780 = vmatpush1.bf16.msra.mxu0 0
        %781 = vmatprep.subr.bf16.mxu0 0
        %782 = vmatpush1.bf16.msra.mxu0 0
        %783 = vmatprep.subr.bf16.mxu0 0
        %784 = vmatpush1.bf16.msra.mxu0 0
        %785 = vmatprep.subr.bf16.mxu0 0
        %786 = vmatpush1.bf16.msra.mxu0 0
        %787 = vmatprep.subr.bf16.mxu0 0
        %788 = vmatpush1.bf16.msra.mxu0 0
        %789 = vmatprep.subr.bf16.mxu0 0
        %790 = vmatpush1.bf16.msra.mxu0 0
        %791 = vmatprep.subr.bf16.mxu0 0
        %792 = vmatpush1.bf16.msra.mxu0 0
        %793 = vmatprep.subr.bf16.mxu0 0
        %794 = vmatpush1.bf16.msra.mxu0 0
        %795 = vmatprep.subr.bf16.mxu0 0
        %796 = vmatpush1.bf16.msra.mxu0 0
        %797 = vmatprep.subr.bf16.mxu0 0
        %798 = vmatpush1.bf16.msra.mxu0 0
        %799 = vmatprep.subr.bf16.mxu0 0
        %800 = vmatpush1.bf16.msra.mxu0 0
        %801 = vmatprep.subr.bf16.mxu0 0
        %802 = vmatpush1.bf16.msra.mxu0 0
        %803 = vmatprep.subr.bf16.mxu0 0
        %804 = vmatpush1.bf16.msra.mxu0 0
        %805 = vmatprep.subr.bf16.mxu0 0
        %806 = vmatpush1.bf16.msra.mxu0 0
        %807 = vmatprep.subr.bf16.mxu0 0
        %808 = vmatpush1.bf16.msra.mxu0 0
        %809 = vmatprep.mubr.bf16.mxu0 0
        %810 = vmatmul.mubr.bf16.gmra.mrb[0].mxu0 %v730
        %v811 = vpop.f32.mrb[0].mxu0
        %v812 = vadd.f32 %v672, %v811
        %v813 = vpop.f32.mrb[0].mxu0
        %v814 = vpop.f32.mrb[0].mxu0
        %v815 = vadd.f32 %v672, %v814
        %v816 = vpop.f32.mrb[0].mxu0
        %817 = vmatprep.mubr.bf16.mxu0 0
        %818 = vmatmul.mubr.bf16.gmra.mrb[0].mxu0 %v733
        %v819 = vpop.f32.mrb[0].mxu0
        %v820 = vadd.f32 %v672, %v819
        %v821 = vpop.f32.mrb[0].mxu0
        %v822 = vpop.f32.mrb[0].mxu0
        %v823 = vadd.f32 %v672, %v822
        %v824 = vpop.f32.mrb[0].mxu0
        %825 = vmatprep.mubr.bf16.mxu0 0
        %826 = vmatmul.mubr.bf16.gmra.mrb[0].mxu0 %v736
        %v827 = vpop.f32.mrb[0].mxu0
        %v828 = vadd.f32 %v672, %v827
        %v829 = vpop.f32.mrb[0].mxu0
        %v830 = vpop.f32.mrb[0].mxu0
        %v831 = vadd.f32 %v672, %v830
        %v832 = vpop.f32.mrb[0].mxu0
        %833 = vmatprep.mubr.bf16.mxu0 0
        %834 = vmatmul.mubr.bf16.gmra.mrb[0].mxu0 %v739
        %v835 = vpop.f32.mrb[0].mxu0
        %v836 = vadd.f32 %v672, %v835
        %v837 = vpop.f32.mrb[0].mxu0
        %v838 = vpop.f32.mrb[0].mxu0
        %v839 = vadd.f32 %v672, %v838
        %v840 = vpop.f32.mrb[0].mxu0
        %841 = vmatprep.mubr.bf16.mxu0 0
        %842 = vmatmul.mubr.bf16.gmra.mrb[0].mxu0 %v742
        %v843 = vpop.f32.mrb[0].mxu0
        %v844 = vadd.f32 %v672, %v843
        %v845 = vpop.f32.mrb[0].mxu0
        %v846 = vpop.f32.mrb[0].mxu0
        %v847 = vadd.f32 %v672, %v846
        %v848 = vpop.f32.mrb[0].mxu0
        %849 = vmatprep.mubr.bf16.mxu0 0
        %850 = vmatmul.mubr.bf16.gmra.mrb[0].mxu0 %v745
        %v851 = vpop.f32.mrb[0].mxu0
        %v852 = vadd.f32 %v672, %v851
        %v853 = vpop.f32.mrb[0].mxu0
        %v854 = vpop.f32.mrb[0].mxu0
        %v855 = vadd.f32 %v672, %v854
        %v856 = vpop.f32.mrb[0].mxu0
        %857 = vmatprep.mubr.bf16.mxu0 0
        %858 = vmatmul.mubr.bf16.gmra.mrb[0].mxu0 %v748
        %v859 = vpop.f32.mrb[0].mxu0
        %v860 = vadd.f32 %v672, %v859
        %v861 = vpop.f32.mrb[0].mxu0
        %v862 = vpop.f32.mrb[0].mxu0
        %v863 = vadd.f32 %v672, %v862
        %v864 = vpop.f32.mrb[0].mxu0
        %865 = vmatprep.mubr.bf16.mxu0 0
        %866 = vmatmul.mubr.bf16.gmra.mrb[0].mxu0 %v751
        %v867 = vpop.f32.mrb[0].mxu0
        %v868 = vadd.f32 %v672, %v867
        %v869 = vpop.f32.mrb[0].mxu0
        %v870 = vpop.f32.mrb[0].mxu0
        %v871 = vadd.f32 %v672, %v870
        %v872 = vpop.f32.mrb[0].mxu0
        %873 = vmatprep.mubr.bf16.mxu0 0
        %874 = vmatmul.mubr.bf16.gmra.mrb[0].mxu0 %v754
        %v875 = vpop.f32.mrb[0].mxu0
        %v876 = vadd.f32 %v672, %v875
        %v877 = vpop.f32.mrb[0].mxu0
        %v878 = vpop.f32.mrb[0].mxu0
        %v879 = vadd.f32 %v672, %v878
        %v880 = vpop.f32.mrb[0].mxu0
        %881 = vmatprep.mubr.bf16.mxu0 0
        %882 = vmatmul.mubr.bf16.gmra.mrb[0].mxu0 %v757
        %v883 = vpop.f32.mrb[0].mxu0
        %v884 = vadd.f32 %v672, %v883
        %v885 = vpop.f32.mrb[0].mxu0
        %v886 = vpop.f32.mrb[0].mxu0
        %v887 = vadd.f32 %v672, %v886
        %v888 = vpop.f32.mrb[0].mxu0
        %889 = vmatprep.mubr.bf16.mxu0 0
        %890 = vmatmul.mubr.bf16.gmra.mrb[0].mxu0 %v760
        %v891 = vpop.f32.mrb[0].mxu0
        %v892 = vadd.f32 %v672, %v891
        %v893 = vpop.f32.mrb[0].mxu0
        %v894 = vpop.f32.mrb[0].mxu0
        %v895 = vadd.f32 %v672, %v894
        %v896 = vpop.f32.mrb[0].mxu0
        %897 = vmatprep.mubr.bf16.mxu0 0
        %898 = vmatmul.mubr.bf16.gmra.mrb[0].mxu0 %v763
        %v899 = vpop.f32.mrb[0].mxu0
        %v900 = vadd.f32 %v672, %v899
        %v901 = vpop.f32.mrb[0].mxu0
        %v902 = vpop.f32.mrb[0].mxu0
        %v903 = vadd.f32 %v672, %v902
        %v904 = vpop.f32.mrb[0].mxu0
        %905 = vmatprep.mubr.bf16.mxu0 0
        %906 = vmatmul.mubr.bf16.gmra.mrb[0].mxu0 %v766
        %v907 = vpop.f32.mrb[0].mxu0
        %v908 = vadd.f32 %v672, %v907
        %v909 = vpop.f32.mrb[0].mxu0
        %v910 = vpop.f32.mrb[0].mxu0
        %v911 = vadd.f32 %v672, %v910
        %v912 = vpop.f32.mrb[0].mxu0
        %913 = vmatprep.mubr.bf16.mxu0 0
        %914 = vmatmul.mubr.bf16.gmra.mrb[0].mxu0 %v769
        %v915 = vpop.f32.mrb[0].mxu0
        %v916 = vadd.f32 %v672, %v915
        %v917 = vpop.f32.mrb[0].mxu0
        %v918 = vpop.f32.mrb[0].mxu0
        %v919 = vadd.f32 %v672, %v918
        %v920 = vpop.f32.mrb[0].mxu0
        %921 = vmatprep.mubr.bf16.mxu0 0
        %922 = vmatmul.mubr.bf16.gmra.mrb[0].mxu0 %v772
        %v923 = vpop.f32.mrb[0].mxu0
        %v924 = vadd.f32 %v672, %v923
        %v925 = vpop.f32.mrb[0].mxu0
        %v926 = vpop.f32.mrb[0].mxu0
        %v927 = vadd.f32 %v672, %v926
        %v928 = vpop.f32.mrb[0].mxu0
        %929 = vmatprep.mubr.bf16.mxu0 0
        %930 = vmatmul.mubr.bf16.gmra.mrb[0].mxu0 %v775
        %v931 = vpop.f32.mrb[0].mxu0
        %v932 = vadd.f32 %v672, %v931
        %v933 = vpop.f32.mrb[0].mxu0
        %v934 = vpop.f32.mrb[0].mxu0
        %v935 = vadd.f32 %v672, %v934
        %v936 = vpop.f32.mrb[0].mxu0
        %937 = vdwg.mxu0
        %v938 = vmax.f32 %v812, 0.0
        %v939 = vmax.f32 %v815, 0.0
        %v940 = vmax.f32 %v820, 0.0
        %v941 = vmax.f32 %v823, 0.0
        %v942 = vmax.f32 %v828, 0.0
        %v943 = vmax.f32 %v831, 0.0
        %v944 = vmax.f32 %v836, 0.0
        %v945 = vmax.f32 %v839, 0.0
        %v946 = vmax.f32 %v844, 0.0
        %v947 = vmax.f32 %v847, 0.0
        %v948 = vmax.f32 %v852, 0.0
        %v949 = vmax.f32 %v855, 0.0
        %v950 = vmax.f32 %v860, 0.0
        %v951 = vmax.f32 %v863, 0.0
        %v952 = vmax.f32 %v868, 0.0
        %v953 = vmax.f32 %v871, 0.0
        %v954 = vmax.f32 %v876, 0.0
        %v955 = vmax.f32 %v879, 0.0
        %v956 = vmax.f32 %v884, 0.0
        %v957 = vmax.f32 %v887, 0.0
        %v958 = vmax.f32 %v892, 0.0
        %v959 = vmax.f32 %v895, 0.0
        %v960 = vmax.f32 %v900, 0.0
        %v961 = vmax.f32 %v903, 0.0
        %v962 = vmax.f32 %v908, 0.0
        %v963 = vmax.f32 %v911, 0.0
        %v964 = vmax.f32 %v916, 0.0
        %v965 = vmax.f32 %v919, 0.0
        %v966 = vmax.f32 %v924, 0.0
        %v967 = vmax.f32 %v927, 0.0
        %v968 = vmax.f32 %v932, 0.0
        %v969 = vmax.f32 %v935, 0.0
        %v970 = vld [vmem:[%s3] sm:$0xf]
        %v971 = vld [vmem:[%s3 + $0x4] sm:$0xf]
        %v973 = vshrl.u32 %v224, 16
        %v975 = vrot.slane %v973, 4
        %v976 = vshll.u32 %v224, 16
        %v978 = vrot.slane %v976, 5
        %v979 = vor.u32 %v975, %v978
        %v980 = vrot.slane %v979, 4
        %v982 = vshll.u32 %v225, 16
        %v984 = vrot.slane %v982, 5
        %v985 = vsel %vm280, %v980, %v984
        %v986 = vshrl.u32 %v225, 16
        %v988 = vrot.slane %v986, 4
        %v989 = vor.u32 %v988, %v984
        %v990 = vrot.slane %v989, 4
        %v992 = vshll.u32 %v226, 16
        %v994 = vrot.slane %v992, 5
        %v995 = vsel %vm280, %v990, %v994
        %s996 = scalar_lea.vmem %s3, 8
        %v997 = vld [vmem:[%s996] sm:$0xf]
        %v998 = vld [vmem:[%s996 + $0x4] sm:$0xf]
        %v999 = vunpack.c.l.b16 %v985
        %v1000 = vunpack.c.l.b16 %v995
        %v1001 = vpack.c.b16 %v1000, %v999
        %v1004 = vunpack.c.l.b16 %v997
        %v1005 = vunpack.c.l.b16 %v998
        %v1006 = vpack.c.b16 %v1005, %v1004
        %v1009 = vsel %vm728, %v1001, 0
        %1011 = vmatprep.subr.bf16.mxu0 0
        %1012 = vmatpush1.bf16.msra.mxu0 %v1006
        %1013 = vmatprep.subr.bf16.mxu0 0
        %1014 = vmatpush1.bf16.msra.mxu0 0
        %1015 = vmatprep.subr.bf16.mxu0 0
        %1016 = vmatpush1.bf16.msra.mxu0 0
        %1017 = vmatprep.subr.bf16.mxu0 0
        %1018 = vmatpush1.bf16.msra.mxu0 0
        %1019 = vmatprep.subr.bf16.mxu0 0
        %1020 = vmatpush1.bf16.msra.mxu0 0
        %1021 = vmatprep.subr.bf16.mxu0 0
        %1022 = vmatpush1.bf16.msra.mxu0 0
        %1023 = vmatprep.subr.bf16.mxu0 0
        %1024 = vmatpush1.bf16.msra.mxu0 0
        %1025 = vmatprep.subr.bf16.mxu0 0
        %1026 = vmatpush1.bf16.msra.mxu0 0
        %1027 = vmatprep.subr.bf16.mxu0 0
        %1028 = vmatpush1.bf16.msra.mxu0 0
        %1029 = vmatprep.subr.bf16.mxu0 0
        %1030 = vmatpush1.bf16.msra.mxu0 0
        %1031 = vmatprep.subr.bf16.mxu0 0
        %1032 = vmatpush1.bf16.msra.mxu0 0
        %1033 = vmatprep.subr.bf16.mxu0 0
        %1034 = vmatpush1.bf16.msra.mxu0 0
        %1035 = vmatprep.subr.bf16.mxu0 0
        %1036 = vmatpush1.bf16.msra.mxu0 0
        %1037 = vmatprep.subr.bf16.mxu0 0
        %1038 = vmatpush1.bf16.msra.mxu0 0
        %1039 = vmatprep.subr.bf16.mxu0 0
        %1040 = vmatpush1.bf16.msra.mxu0 0
        %1041 = vmatprep.subr.bf16.mxu0 0
        %1042 = vmatpush1.bf16.msra.mxu0 0
        %1043 = vmatprep.mubr.bf16.mxu0 0
        %1044 = vmatmul.mubr.bf16.gmra.mrb[0].mxu0 %v1009
        %v1045 = vpop.f32.mrb[0].mxu0
        %v1046 = vadd.f32 0.0, %v1045
        %v1047 = vpop.f32.mrb[0].mxu0
        %v1048 = vpop.f32.mrb[0].mxu0
        %v1049 = vadd.f32 0.0, %v1048
        %v1050 = vpop.f32.mrb[0].mxu0
        %1051 = vmatprep.mubr.bf16.mxu0 0
        %1052 = vmatmul.mubr.bf16.gmra.mrb[0].mxu0 %v730
        %v1053 = vpop.f32.mrb[0].mxu0
        %v1054 = vadd.f32 0.0, %v1053
        %v1055 = vpop.f32.mrb[0].mxu0
        %v1056 = vpop.f32.mrb[0].mxu0
        %v1057 = vadd.f32 0.0, %v1056
        %v1058 = vpop.f32.mrb[0].mxu0
        %1059 = vmatprep.mubr.bf16.mxu0 0
        %1060 = vmatmul.mubr.bf16.gmra.mrb[0].mxu0 %v733
        %v1061 = vpop.f32.mrb[0].mxu0
        %v1062 = vadd.f32 0.0, %v1061
        %v1063 = vpop.f32.mrb[0].mxu0
        %v1064 = vpop.f32.mrb[0].mxu0
        %v1065 = vadd.f32 0.0, %v1064
        %v1066 = vpop.f32.mrb[0].mxu0
        %1067 = vmatprep.mubr.bf16.mxu0 0
        %1068 = vmatmul.mubr.bf16.gmra.mrb[0].mxu0 %v736
        %v1069 = vpop.f32.mrb[0].mxu0
        %v1070 = vadd.f32 0.0, %v1069
        %v1071 = vpop.f32.mrb[0].mxu0
        %v1072 = vpop.f32.mrb[0].mxu0
        %v1073 = vadd.f32 0.0, %v1072
        %v1074 = vpop.f32.mrb[0].mxu0
        %1075 = vmatprep.mubr.bf16.mxu0 0
        %1076 = vmatmul.mubr.bf16.gmra.mrb[0].mxu0 %v739
        %v1077 = vpop.f32.mrb[0].mxu0
        %v1078 = vadd.f32 0.0, %v1077
        %v1079 = vpop.f32.mrb[0].mxu0
        %v1080 = vpop.f32.mrb[0].mxu0
        %v1081 = vadd.f32 0.0, %v1080
        %v1082 = vpop.f32.mrb[0].mxu0
        %1083 = vmatprep.mubr.bf16.mxu0 0
        %1084 = vmatmul.mubr.bf16.gmra.mrb[0].mxu0 %v742
        %v1085 = vpop.f32.mrb[0].mxu0
        %v1086 = vadd.f32 0.0, %v1085
        %v1087 = vpop.f32.mrb[0].mxu0
        %v1088 = vpop.f32.mrb[0].mxu0
        %v1089 = vadd.f32 0.0, %v1088
        %v1090 = vpop.f32.mrb[0].mxu0
        %1091 = vmatprep.mubr.bf16.mxu0 0
        %1092 = vmatmul.mubr.bf16.gmra.mrb[0].mxu0 %v745
        %v1093 = vpop.f32.mrb[0].mxu0
        %v1094 = vadd.f32 0.0, %v1093
        %v1095 = vpop.f32.mrb[0].mxu0
        %v1096 = vpop.f32.mrb[0].mxu0
        %v1097 = vadd.f32 0.0, %v1096
        %v1098 = vpop.f32.mrb[0].mxu0
        %1099 = vmatprep.mubr.bf16.mxu0 0
        %1100 = vmatmul.mubr.bf16.gmra.mrb[0].mxu0 %v748
        %v1101 = vpop.f32.mrb[0].mxu0
        %v1102 = vadd.f32 0.0, %v1101
        %v1103 = vpop.f32.mrb[0].mxu0
        %v1104 = vpop.f32.mrb[0].mxu0
        %v1105 = vadd.f32 0.0, %v1104
        %v1106 = vpop.f32.mrb[0].mxu0
        %1107 = vmatprep.mubr.bf16.mxu0 0
        %1108 = vmatmul.mubr.bf16.gmra.mrb[0].mxu0 %v751
        %v1109 = vpop.f32.mrb[0].mxu0
        %v1110 = vadd.f32 0.0, %v1109
        %v1111 = vpop.f32.mrb[0].mxu0
        %v1112 = vpop.f32.mrb[0].mxu0
        %v1113 = vadd.f32 0.0, %v1112
        %v1114 = vpop.f32.mrb[0].mxu0
        %1115 = vmatprep.mubr.bf16.mxu0 0
        %1116 = vmatmul.mubr.bf16.gmra.mrb[0].mxu0 %v754
        %v1117 = vpop.f32.mrb[0].mxu0
        %v1118 = vadd.f32 0.0, %v1117
        %v1119 = vpop.f32.mrb[0].mxu0
        %v1120 = vpop.f32.mrb[0].mxu0
        %v1121 = vadd.f32 0.0, %v1120
        %v1122 = vpop.f32.mrb[0].mxu0
        %1123 = vmatprep.mubr.bf16.mxu0 0
        %1124 = vmatmul.mubr.bf16.gmra.mrb[0].mxu0 %v757
        %v1125 = vpop.f32.mrb[0].mxu0
        %v1126 = vadd.f32 0.0, %v1125
        %v1127 = vpop.f32.mrb[0].mxu0
        %v1128 = vpop.f32.mrb[0].mxu0
        %v1129 = vadd.f32 0.0, %v1128
        %v1130 = vpop.f32.mrb[0].mxu0
        %1131 = vmatprep.mubr.bf16.mxu0 0
        %1132 = vmatmul.mubr.bf16.gmra.mrb[0].mxu0 %v760
        %v1133 = vpop.f32.mrb[0].mxu0
        %v1134 = vadd.f32 0.0, %v1133
        %v1135 = vpop.f32.mrb[0].mxu0
        %v1136 = vpop.f32.mrb[0].mxu0
        %v1137 = vadd.f32 0.0, %v1136
        %v1138 = vpop.f32.mrb[0].mxu0
        %1139 = vmatprep.mubr.bf16.mxu0 0
        %1140 = vmatmul.mubr.bf16.gmra.mrb[0].mxu0 %v763
        %v1141 = vpop.f32.mrb[0].mxu0
        %v1142 = vadd.f32 0.0, %v1141
        %v1143 = vpop.f32.mrb[0].mxu0
        %v1144 = vpop.f32.mrb[0].mxu0
        %v1145 = vadd.f32 0.0, %v1144
        %v1146 = vpop.f32.mrb[0].mxu0
        %1147 = vmatprep.mubr.bf16.mxu0 0
        %1148 = vmatmul.mubr.bf16.gmra.mrb[0].mxu0 %v766
        %v1149 = vpop.f32.mrb[0].mxu0
        %v1150 = vadd.f32 0.0, %v1149
        %v1151 = vpop.f32.mrb[0].mxu0
        %v1152 = vpop.f32.mrb[0].mxu0
        %v1153 = vadd.f32 0.0, %v1152
        %v1154 = vpop.f32.mrb[0].mxu0
        %1155 = vmatprep.mubr.bf16.mxu0 0
        %1156 = vmatmul.mubr.bf16.gmra.mrb[0].mxu0 %v769
        %v1157 = vpop.f32.mrb[0].mxu0
        %v1158 = vadd.f32 0.0, %v1157
        %v1159 = vpop.f32.mrb[0].mxu0
        %v1160 = vpop.f32.mrb[0].mxu0
        %v1161 = vadd.f32 0.0, %v1160
        %v1162 = vpop.f32.mrb[0].mxu0
        %1163 = vmatprep.mubr.bf16.mxu0 0
        %1164 = vmatmul.mubr.bf16.gmra.mrb[0].mxu0 %v772
        %v1165 = vpop.f32.mrb[0].mxu0
        %v1166 = vadd.f32 0.0, %v1165
        %v1167 = vpop.f32.mrb[0].mxu0
        %v1168 = vpop.f32.mrb[0].mxu0
        %v1169 = vadd.f32 0.0, %v1168
        %v1170 = vpop.f32.mrb[0].mxu0
        %1171 = vdwg.mxu0
        %v1204 = vunpack.c.l.b16 %v224
        %v1205 = vunpack.c.l.b16 %v225
        %v1206 = vunpack.c.l.b16 %v227
        %v1207 = vunpack.c.l.b16 %v228
        %v1208 = vunpack.c.l.b16 %v230
        %v1209 = vunpack.c.l.b16 %v231
        %v1210 = vunpack.c.l.b16 %v233
        %v1211 = vunpack.c.l.b16 %v234
        %v1212 = vunpack.c.l.b16 %v236
        %v1213 = vunpack.c.l.b16 %v237
        %v1214 = vunpack.c.l.b16 %v239
        %v1215 = vunpack.c.l.b16 %v240
        %v1216 = vunpack.c.l.b16 %v242
        %v1217 = vunpack.c.l.b16 %v243
        %v1218 = vunpack.c.l.b16 %v245
        %v1219 = vunpack.c.l.b16 %v246
        %v1220 = vunpack.c.l.b16 %v248
        %v1221 = vunpack.c.l.b16 %v249
        %v1222 = vunpack.c.l.b16 %v251
        %v1223 = vunpack.c.l.b16 %v252
        %v1224 = vunpack.c.l.b16 %v254
        %v1225 = vunpack.c.l.b16 %v255
        %v1226 = vunpack.c.l.b16 %v257
        %v1227 = vunpack.c.l.b16 %v258
        %v1228 = vunpack.c.l.b16 %v260
        %v1229 = vunpack.c.l.b16 %v261
        %v1230 = vunpack.c.l.b16 %v263
        %v1231 = vunpack.c.l.b16 %v264
        %v1232 = vunpack.c.l.b16 %v266
        %v1233 = vunpack.c.l.b16 %v267
        %v1234 = vunpack.c.l.b16 %v269
        %v1235 = vunpack.c.l.b16 %v270
        %v1236 = vpack.c.b16 %v1205, %v1204
        %v1237 = vpack.c.b16 %v1207, %v1206
        %v1238 = vpack.c.b16 %v1209, %v1208
        %v1239 = vpack.c.b16 %v1211, %v1210
        %v1240 = vpack.c.b16 %v1213, %v1212
        %v1241 = vpack.c.b16 %v1215, %v1214
        %v1242 = vpack.c.b16 %v1217, %v1216
        %v1243 = vpack.c.b16 %v1219, %v1218
        %v1244 = vpack.c.b16 %v1221, %v1220
        %v1245 = vpack.c.b16 %v1223, %v1222
        %v1246 = vpack.c.b16 %v1225, %v1224
        %v1247 = vpack.c.b16 %v1227, %v1226
        %v1248 = vpack.c.b16 %v1229, %v1228
        %v1249 = vpack.c.b16 %v1231, %v1230
        %v1250 = vpack.c.b16 %v1233, %v1232
        %v1251 = vpack.c.b16 %v1235, %v1234
        %v1254 = vunpack.c.l.b16 %v970
        %v1255 = vunpack.c.l.b16 %v971
        %v1256 = vpack.c.b16 %v1255, %v1254
        %v1259 = vsel %vm728, %v1236, 0
        %v1262 = vsel %vm728, %v1237, 0
        %v1265 = vsel %vm728, %v1238, 0
        %v1268 = vsel %vm728, %v1239, 0
        %v1271 = vsel %vm728, %v1240, 0
        %v1274 = vsel %vm728, %v1241, 0
        %v1277 = vsel %vm728, %v1242, 0
        %v1280 = vsel %vm728, %v1243, 0
        %v1283 = vsel %vm728, %v1244, 0
        %v1286 = vsel %vm728, %v1245, 0
        %v1289 = vsel %vm728, %v1246, 0
        %v1292 = vsel %vm728, %v1247, 0
        %v1295 = vsel %vm728, %v1248, 0
        %v1298 = vsel %vm728, %v1249, 0
        %v1301 = vsel %vm728, %v1250, 0
        %v1304 = vsel %vm728, %v1251, 0
        %1306 = vmatprep.subr.bf16.mxu0 0
        %1307 = vmatpush1.bf16.msra.mxu0 %v1256
        %1308 = vmatprep.subr.bf16.mxu0 0
        %1309 = vmatpush1.bf16.msra.mxu0 0
        %1310 = vmatprep.subr.bf16.mxu0 0
        %1311 = vmatpush1.bf16.msra.mxu0 0
        %1312 = vmatprep.subr.bf16.mxu0 0
        %1313 = vmatpush1.bf16.msra.mxu0 0
        %1314 = vmatprep.subr.bf16.mxu0 0
        %1315 = vmatpush1.bf16.msra.mxu0 0
        %1316 = vmatprep.subr.bf16.mxu0 0
        %1317 = vmatpush1.bf16.msra.mxu0 0
        %1318 = vmatprep.subr.bf16.mxu0 0
        %1319 = vmatpush1.bf16.msra.mxu0 0
        %1320 = vmatprep.subr.bf16.mxu0 0
        %1321 = vmatpush1.bf16.msra.mxu0 0
        %1322 = vmatprep.subr.bf16.mxu0 0
        %1323 = vmatpush1.bf16.msra.mxu0 0
        %1324 = vmatprep.subr.bf16.mxu0 0
        %1325 = vmatpush1.bf16.msra.mxu0 0
        %1326 = vmatprep.subr.bf16.mxu0 0
        %1327 = vmatpush1.bf16.msra.mxu0 0
        %1328 = vmatprep.subr.bf16.mxu0 0
        %1329 = vmatpush1.bf16.msra.mxu0 0
        %1330 = vmatprep.subr.bf16.mxu0 0
        %1331 = vmatpush1.bf16.msra.mxu0 0
        %1332 = vmatprep.subr.bf16.mxu0 0
        %1333 = vmatpush1.bf16.msra.mxu0 0
        %1334 = vmatprep.subr.bf16.mxu0 0
        %1335 = vmatpush1.bf16.msra.mxu0 0
        %1336 = vmatprep.subr.bf16.mxu0 0
        %1337 = vmatpush1.bf16.msra.mxu0 0
        %1338 = vmatprep.mubr.bf16.mxu0 0
        %1339 = vmatmul.mubr.bf16.gmra.mrb[0].mxu0 %v1259
        %v1340 = vpop.f32.mrb[0].mxu0
        %v1341 = vadd.f32 %v1046, %v1340
        %v1342 = vpop.f32.mrb[0].mxu0
        %v1343 = vpop.f32.mrb[0].mxu0
        %v1344 = vadd.f32 %v1049, %v1343
        %v1345 = vpop.f32.mrb[0].mxu0
        %1346 = vmatprep.mubr.bf16.mxu0 0
        %1347 = vmatmul.mubr.bf16.gmra.mrb[0].mxu0 %v1262
        %v1348 = vpop.f32.mrb[0].mxu0
        %v1349 = vadd.f32 %v1054, %v1348
        %v1350 = vpop.f32.mrb[0].mxu0
        %v1351 = vpop.f32.mrb[0].mxu0
        %v1352 = vadd.f32 %v1057, %v1351
        %v1353 = vpop.f32.mrb[0].mxu0
        %1354 = vmatprep.mubr.bf16.mxu0 0
        %1355 = vmatmul.mubr.bf16.gmra.mrb[0].mxu0 %v1265
        %v1356 = vpop.f32.mrb[0].mxu0
        %v1357 = vadd.f32 %v1062, %v1356
        %v1358 = vpop.f32.mrb[0].mxu0
        %v1359 = vpop.f32.mrb[0].mxu0
        %v1360 = vadd.f32 %v1065, %v1359
        %v1361 = vpop.f32.mrb[0].mxu0
        %1362 = vmatprep.mubr.bf16.mxu0 0
        %1363 = vmatmul.mubr.bf16.gmra.mrb[0].mxu0 %v1268
        %v1364 = vpop.f32.mrb[0].mxu0
        %v1365 = vadd.f32 %v1070, %v1364
        %v1366 = vpop.f32.mrb[0].mxu0
        %v1367 = vpop.f32.mrb[0].mxu0
        %v1368 = vadd.f32 %v1073, %v1367
        %v1369 = vpop.f32.mrb[0].mxu0
        %1370 = vmatprep.mubr.bf16.mxu0 0
        %1371 = vmatmul.mubr.bf16.gmra.mrb[0].mxu0 %v1271
        %v1372 = vpop.f32.mrb[0].mxu0
        %v1373 = vadd.f32 %v1078, %v1372
        %v1374 = vpop.f32.mrb[0].mxu0
        %v1375 = vpop.f32.mrb[0].mxu0
        %v1376 = vadd.f32 %v1081, %v1375
        %v1377 = vpop.f32.mrb[0].mxu0
        %1378 = vmatprep.mubr.bf16.mxu0 0
        %1379 = vmatmul.mubr.bf16.gmra.mrb[0].mxu0 %v1274
        %v1380 = vpop.f32.mrb[0].mxu0
        %v1381 = vadd.f32 %v1086, %v1380
        %v1382 = vpop.f32.mrb[0].mxu0
        %v1383 = vpop.f32.mrb[0].mxu0
        %v1384 = vadd.f32 %v1089, %v1383
        %v1385 = vpop.f32.mrb[0].mxu0
        %1386 = vmatprep.mubr.bf16.mxu0 0
        %1387 = vmatmul.mubr.bf16.gmra.mrb[0].mxu0 %v1277
        %v1388 = vpop.f32.mrb[0].mxu0
        %v1389 = vadd.f32 %v1094, %v1388
        %v1390 = vpop.f32.mrb[0].mxu0
        %v1391 = vpop.f32.mrb[0].mxu0
        %v1392 = vadd.f32 %v1097, %v1391
        %v1393 = vpop.f32.mrb[0].mxu0
        %1394 = vmatprep.mubr.bf16.mxu0 0
        %1395 = vmatmul.mubr.bf16.gmra.mrb[0].mxu0 %v1280
        %v1396 = vpop.f32.mrb[0].mxu0
        %v1397 = vadd.f32 %v1102, %v1396
        %v1398 = vpop.f32.mrb[0].mxu0
        %v1399 = vpop.f32.mrb[0].mxu0
        %v1400 = vadd.f32 %v1105, %v1399
        %v1401 = vpop.f32.mrb[0].mxu0
        %1402 = vmatprep.mubr.bf16.mxu0 0
        %1403 = vmatmul.mubr.bf16.gmra.mrb[0].mxu0 %v1283
        %v1404 = vpop.f32.mrb[0].mxu0
        %v1405 = vadd.f32 %v1110, %v1404
        %v1406 = vpop.f32.mrb[0].mxu0
        %v1407 = vpop.f32.mrb[0].mxu0
        %v1408 = vadd.f32 %v1113, %v1407
        %v1409 = vpop.f32.mrb[0].mxu0
        %1410 = vmatprep.mubr.bf16.mxu0 0
        %1411 = vmatmul.mubr.bf16.gmra.mrb[0].mxu0 %v1286
        %v1412 = vpop.f32.mrb[0].mxu0
        %v1413 = vadd.f32 %v1118, %v1412
        %v1414 = vpop.f32.mrb[0].mxu0
        %v1415 = vpop.f32.mrb[0].mxu0
        %v1416 = vadd.f32 %v1121, %v1415
        %v1417 = vpop.f32.mrb[0].mxu0
        %1418 = vmatprep.mubr.bf16.mxu0 0
        %1419 = vmatmul.mubr.bf16.gmra.mrb[0].mxu0 %v1289
        %v1420 = vpop.f32.mrb[0].mxu0
        %v1421 = vadd.f32 %v1126, %v1420
        %v1422 = vpop.f32.mrb[0].mxu0
        %v1423 = vpop.f32.mrb[0].mxu0
        %v1424 = vadd.f32 %v1129, %v1423
        %v1425 = vpop.f32.mrb[0].mxu0
        %1426 = vmatprep.mubr.bf16.mxu0 0
        %1427 = vmatmul.mubr.bf16.gmra.mrb[0].mxu0 %v1292
        %v1428 = vpop.f32.mrb[0].mxu0
        %v1429 = vadd.f32 %v1134, %v1428
        %v1430 = vpop.f32.mrb[0].mxu0
        %v1431 = vpop.f32.mrb[0].mxu0
        %v1432 = vadd.f32 %v1137, %v1431
        %v1433 = vpop.f32.mrb[0].mxu0
        %1434 = vmatprep.mubr.bf16.mxu0 0
        %1435 = vmatmul.mubr.bf16.gmra.mrb[0].mxu0 %v1295
        %v1436 = vpop.f32.mrb[0].mxu0
        %v1437 = vadd.f32 %v1142, %v1436
        %v1438 = vpop.f32.mrb[0].mxu0
        %v1439 = vpop.f32.mrb[0].mxu0
        %v1440 = vadd.f32 %v1145, %v1439
        %v1441 = vpop.f32.mrb[0].mxu0
        %1442 = vmatprep.mubr.bf16.mxu0 0
        %1443 = vmatmul.mubr.bf16.gmra.mrb[0].mxu0 %v1298
        %v1444 = vpop.f32.mrb[0].mxu0
        %v1445 = vadd.f32 %v1150, %v1444
        %v1446 = vpop.f32.mrb[0].mxu0
        %v1447 = vpop.f32.mrb[0].mxu0
        %v1448 = vadd.f32 %v1153, %v1447
        %v1449 = vpop.f32.mrb[0].mxu0
        %1450 = vmatprep.mubr.bf16.mxu0 0
        %1451 = vmatmul.mubr.bf16.gmra.mrb[0].mxu0 %v1301
        %v1452 = vpop.f32.mrb[0].mxu0
        %v1453 = vadd.f32 %v1158, %v1452
        %v1454 = vpop.f32.mrb[0].mxu0
        %v1455 = vpop.f32.mrb[0].mxu0
        %v1456 = vadd.f32 %v1161, %v1455
        %v1457 = vpop.f32.mrb[0].mxu0
        %1458 = vmatprep.mubr.bf16.mxu0 0
        %1459 = vmatmul.mubr.bf16.gmra.mrb[0].mxu0 %v1304
        %v1460 = vpop.f32.mrb[0].mxu0
        %v1461 = vadd.f32 %v1166, %v1460
        %v1462 = vpop.f32.mrb[0].mxu0
        %v1463 = vpop.f32.mrb[0].mxu0
        %v1464 = vadd.f32 %v1169, %v1463
        %v1465 = vpop.f32.mrb[0].mxu0
        %1466 = vdwg.mxu0
        %vm1483 = vcmask 1042432
        %vm1484 = vcmask 1046532
        %vm1485 = vmor %vm1483, %vm1484
        %v1486 = vrot.slane %v224, 5
        %v1487 = vrot.slane %v1486, 4
        %v1488 = vrot.slane %v225, 5
        %v1489 = vsel %vm1485, %v1487, %v1488
        %v1490 = vrot.slane %v1488, 4
        %v1491 = vrot.slane %v226, 5
        %v1492 = vsel %vm1485, %v1490, %v1491
        %v1493 = vrot.slane %v227, 5
        %v1494 = vrot.slane %v1493, 4
        %v1495 = vrot.slane %v228, 5
        %v1496 = vsel %vm1485, %v1494, %v1495
        %v1497 = vrot.slane %v1495, 4
        %v1498 = vrot.slane %v229, 5
        %v1499 = vsel %vm1485, %v1497, %v1498
        %v1500 = vrot.slane %v230, 5
        %v1501 = vrot.slane %v1500, 4
        %v1502 = vrot.slane %v231, 5
        %v1503 = vsel %vm1485, %v1501, %v1502
        %v1504 = vrot.slane %v1502, 4
        %v1505 = vrot.slane %v232, 5
        %v1506 = vsel %vm1485, %v1504, %v1505
        %v1507 = vrot.slane %v233, 5
        %v1508 = vrot.slane %v1507, 4
        %v1509 = vrot.slane %v234, 5
        %v1510 = vsel %vm1485, %v1508, %v1509
        %v1511 = vrot.slane %v1509, 4
        %v1512 = vrot.slane %v235, 5
        %v1513 = vsel %vm1485, %v1511, %v1512
        %v1514 = vrot.slane %v236, 5
        %v1515 = vrot.slane %v1514, 4
        %v1516 = vrot.slane %v237, 5
        %v1517 = vsel %vm1485, %v1515, %v1516
        %v1518 = vrot.slane %v1516, 4
        %v1519 = vrot.slane %v238, 5
        %v1520 = vsel %vm1485, %v1518, %v1519
        %v1521 = vrot.slane %v239, 5
        %v1522 = vrot.slane %v1521, 4
        %v1523 = vrot.slane %v240, 5
        %v1524 = vsel %vm1485, %v1522, %v1523
        %v1525 = vrot.slane %v1523, 4
        %v1526 = vrot.slane %v241, 5
        %v1527 = vsel %vm1485, %v1525, %v1526
        %v1528 = vrot.slane %v242, 5
        %v1529 = vrot.slane %v1528, 4
        %v1530 = vrot.slane %v243, 5
        %v1531 = vsel %vm1485, %v1529, %v1530
        %v1532 = vrot.slane %v1530, 4
        %v1533 = vrot.slane %v244, 5
        %v1534 = vsel %vm1485, %v1532, %v1533
        %v1535 = vrot.slane %v245, 5
        %v1536 = vrot.slane %v1535, 4
        %v1537 = vrot.slane %v246, 5
        %v1538 = vsel %vm1485, %v1536, %v1537
        %v1539 = vrot.slane %v1537, 4
        %v1540 = vrot.slane %v247, 5
        %v1541 = vsel %vm1485, %v1539, %v1540
        %v1542 = vrot.slane %v248, 5
        %v1543 = vrot.slane %v1542, 4
        %v1544 = vrot.slane %v249, 5
        %v1545 = vsel %vm1485, %v1543, %v1544
        %v1546 = vrot.slane %v1544, 4
        %v1547 = vrot.slane %v250, 5
        %v1548 = vsel %vm1485, %v1546, %v1547
        %v1549 = vrot.slane %v251, 5
        %v1550 = vrot.slane %v1549, 4
        %v1551 = vrot.slane %v252, 5
        %v1552 = vsel %vm1485, %v1550, %v1551
        %v1553 = vrot.slane %v1551, 4
        %v1554 = vrot.slane %v253, 5
        %v1555 = vsel %vm1485, %v1553, %v1554
        %v1556 = vrot.slane %v254, 5
        %v1557 = vrot.slane %v1556, 4
        %v1558 = vrot.slane %v255, 5
        %v1559 = vsel %vm1485, %v1557, %v1558
        %v1560 = vrot.slane %v1558, 4
        %v1561 = vrot.slane %v256, 5
        %v1562 = vsel %vm1485, %v1560, %v1561
        %v1563 = vrot.slane %v257, 5
        %v1564 = vrot.slane %v1563, 4
        %v1565 = vrot.slane %v258, 5
        %v1566 = vsel %vm1485, %v1564, %v1565
        %v1567 = vrot.slane %v1565, 4
        %v1568 = vrot.slane %v259, 5
        %v1569 = vsel %vm1485, %v1567, %v1568
        %v1570 = vrot.slane %v260, 5
        %v1571 = vrot.slane %v1570, 4
        %v1572 = vrot.slane %v261, 5
        %v1573 = vsel %vm1485, %v1571, %v1572
        %v1574 = vrot.slane %v1572, 4
        %v1575 = vrot.slane %v262, 5
        %v1576 = vsel %vm1485, %v1574, %v1575
        %v1577 = vrot.slane %v263, 5
        %v1578 = vrot.slane %v1577, 4
        %v1579 = vrot.slane %v264, 5
        %v1580 = vsel %vm1485, %v1578, %v1579
        %v1581 = vrot.slane %v1579, 4
        %v1582 = vrot.slane %v265, 5
        %v1583 = vsel %vm1485, %v1581, %v1582
        %v1584 = vrot.slane %v266, 5
        %v1585 = vrot.slane %v1584, 4
        %v1586 = vrot.slane %v267, 5
        %v1587 = vsel %vm1485, %v1585, %v1586
        %v1588 = vrot.slane %v1586, 4
        %v1589 = vrot.slane %v268, 5
        %v1590 = vsel %vm1485, %v1588, %v1589
        %v1591 = vrot.slane %v269, 5
        %v1592 = vrot.slane %v1591, 4
        %v1593 = vrot.slane %v270, 5
        %v1594 = vsel %vm1485, %v1592, %v1593
        %v1595 = vrot.slane %v1593, 4
        %v1596 = vrot.slane %v271, 5
        %v1597 = vsel %vm1485, %v1595, %v1596
        %s1598 = scalar_lea.vmem %s3, 16
        %v1599 = vld [vmem:[%s1598] sm:$0xf]
        %v1600 = vld [vmem:[%s1598 + $0x4] sm:$0xf]
        %v1601 = vunpack.c.l.b16 %v1489
        %v1602 = vunpack.c.l.b16 %v1492
        %v1603 = vunpack.c.l.b16 %v1496
        %v1604 = vunpack.c.l.b16 %v1499
        %v1605 = vunpack.c.l.b16 %v1503
        %v1606 = vunpack.c.l.b16 %v1506
        %v1607 = vunpack.c.l.b16 %v1510
        %v1608 = vunpack.c.l.b16 %v1513
        %v1609 = vunpack.c.l.b16 %v1517
        %v1610 = vunpack.c.l.b16 %v1520
        %v1611 = vunpack.c.l.b16 %v1524
        %v1612 = vunpack.c.l.b16 %v1527
        %v1613 = vunpack.c.l.b16 %v1531
        %v1614 = vunpack.c.l.b16 %v1534
        %v1615 = vunpack.c.l.b16 %v1538
        %v1616 = vunpack.c.l.b16 %v1541
        %v1617 = vunpack.c.l.b16 %v1545
        %v1618 = vunpack.c.l.b16 %v1548
        %v1619 = vunpack.c.l.b16 %v1552
        %v1620 = vunpack.c.l.b16 %v1555
        %v1621 = vunpack.c.l.b16 %v1559
        %v1622 = vunpack.c.l.b16 %v1562
        %v1623 = vunpack.c.l.b16 %v1566
        %v1624 = vunpack.c.l.b16 %v1569
        %v1625 = vunpack.c.l.b16 %v1573
        %v1626 = vunpack.c.l.b16 %v1576
        %v1627 = vunpack.c.l.b16 %v1580
        %v1628 = vunpack.c.l.b16 %v1583
        %v1629 = vunpack.c.l.b16 %v1587
        %v1630 = vunpack.c.l.b16 %v1590
        %v1631 = vunpack.c.l.b16 %v1594
        %v1632 = vunpack.c.l.b16 %v1597
        %v1633 = vpack.c.b16 %v1602, %v1601
        %v1634 = vpack.c.b16 %v1604, %v1603
        %v1635 = vpack.c.b16 %v1606, %v1605
        %v1636 = vpack.c.b16 %v1608, %v1607
        %v1637 = vpack.c.b16 %v1610, %v1609
        %v1638 = vpack.c.b16 %v1612, %v1611
        %v1639 = vpack.c.b16 %v1614, %v1613
        %v1640 = vpack.c.b16 %v1616, %v1615
        %v1641 = vpack.c.b16 %v1618, %v1617
        %v1642 = vpack.c.b16 %v1620, %v1619
        %v1643 = vpack.c.b16 %v1622, %v1621
        %v1644 = vpack.c.b16 %v1624, %v1623
        %v1645 = vpack.c.b16 %v1626, %v1625
        %v1646 = vpack.c.b16 %v1628, %v1627
        %v1647 = vpack.c.b16 %v1630, %v1629
        %v1648 = vpack.c.b16 %v1632, %v1631
        %v1651 = vunpack.c.l.b16 %v1599
        %v1652 = vunpack.c.l.b16 %v1600
        %v1653 = vpack.c.b16 %v1652, %v1651
        %v1656 = vsel %vm728, %v1633, 0
        %v1659 = vsel %vm728, %v1634, 0
        %v1662 = vsel %vm728, %v1635, 0
        %v1665 = vsel %vm728, %v1636, 0
        %v1668 = vsel %vm728, %v1637, 0
        %v1671 = vsel %vm728, %v1638, 0
        %v1674 = vsel %vm728, %v1639, 0
        %v1677 = vsel %vm728, %v1640, 0
        %v1680 = vsel %vm728, %v1641, 0
        %v1683 = vsel %vm728, %v1642, 0
        %v1686 = vsel %vm728, %v1643, 0
        %v1689 = vsel %vm728, %v1644, 0
        %v1692 = vsel %vm728, %v1645, 0
        %v1695 = vsel %vm728, %v1646, 0
        %v1698 = vsel %vm728, %v1647, 0
        %v1701 = vsel %vm728, %v1648, 0
        %1703 = vmatprep.subr.bf16.mxu0 0
        %1704 = vmatpush1.bf16.msra.mxu0 %v1653
        %1705 = vmatprep.subr.bf16.mxu0 0
        %1706 = vmatpush1.bf16.msra.mxu0 0
        %1707 = vmatprep.subr.bf16.mxu0 0
        %1708 = vmatpush1.bf16.msra.mxu0 0
        %1709 = vmatprep.subr.bf16.mxu0 0
        %1710 = vmatpush1.bf16.msra.mxu0 0
        %1711 = vmatprep.subr.bf16.mxu0 0
        %1712 = vmatpush1.bf16.msra.mxu0 0
        %1713 = vmatprep.subr.bf16.mxu0 0
        %1714 = vmatpush1.bf16.msra.mxu0 0
        %1715 = vmatprep.subr.bf16.mxu0 0
        %1716 = vmatpush1.bf16.msra.mxu0 0
        %1717 = vmatprep.subr.bf16.mxu0 0
        %1718 = vmatpush1.bf16.msra.mxu0 0
        %1719 = vmatprep.subr.bf16.mxu0 0
        %1720 = vmatpush1.bf16.msra.mxu0 0
        %1721 = vmatprep.subr.bf16.mxu0 0
        %1722 = vmatpush1.bf16.msra.mxu0 0
        %1723 = vmatprep.subr.bf16.mxu0 0
        %1724 = vmatpush1.bf16.msra.mxu0 0
        %1725 = vmatprep.subr.bf16.mxu0 0
        %1726 = vmatpush1.bf16.msra.mxu0 0
        %1727 = vmatprep.subr.bf16.mxu0 0
        %1728 = vmatpush1.bf16.msra.mxu0 0
        %1729 = vmatprep.subr.bf16.mxu0 0
        %1730 = vmatpush1.bf16.msra.mxu0 0
        %1731 = vmatprep.subr.bf16.mxu0 0
        %1732 = vmatpush1.bf16.msra.mxu0 0
        %1733 = vmatprep.subr.bf16.mxu0 0
        %1734 = vmatpush1.bf16.msra.mxu0 0
        %1735 = vmatprep.mubr.bf16.mxu0 0
        %1736 = vmatmul.mubr.bf16.gmra.mrb[0].mxu0 %v1656
        %v1737 = vpop.f32.mrb[0].mxu0
        %v1738 = vadd.f32 0.0, %v1737
        %v1739 = vpop.f32.mrb[0].mxu0
        %v1740 = vpop.f32.mrb[0].mxu0
        %v1741 = vadd.f32 0.0, %v1740
        %v1742 = vpop.f32.mrb[0].mxu0
        %1743 = vmatprep.mubr.bf16.mxu0 0
        %1744 = vmatmul.mubr.bf16.gmra.mrb[0].mxu0 %v1659
        %v1745 = vpop.f32.mrb[0].mxu0
        %v1746 = vadd.f32 0.0, %v1745
        %v1747 = vpop.f32.mrb[0].mxu0
        %v1748 = vpop.f32.mrb[0].mxu0
        %v1749 = vadd.f32 0.0, %v1748
        %v1750 = vpop.f32.mrb[0].mxu0
        %1751 = vmatprep.mubr.bf16.mxu0 0
        %1752 = vmatmul.mubr.bf16.gmra.mrb[0].mxu0 %v1662
        %v1753 = vpop.f32.mrb[0].mxu0
        %v1754 = vadd.f32 0.0, %v1753
        %v1755 = vpop.f32.mrb[0].mxu0
        %v1756 = vpop.f32.mrb[0].mxu0
        %v1757 = vadd.f32 0.0, %v1756
        %v1758 = vpop.f32.mrb[0].mxu0
        %1759 = vmatprep.mubr.bf16.mxu0 0
        %1760 = vmatmul.mubr.bf16.gmra.mrb[0].mxu0 %v1665
        %v1761 = vpop.f32.mrb[0].mxu0
        %v1762 = vadd.f32 0.0, %v1761
        %v1763 = vpop.f32.mrb[0].mxu0
        %v1764 = vpop.f32.mrb[0].mxu0
        %v1765 = vadd.f32 0.0, %v1764
        %v1766 = vpop.f32.mrb[0].mxu0
        %1767 = vmatprep.mubr.bf16.mxu0 0
        %1768 = vmatmul.mubr.bf16.gmra.mrb[0].mxu0 %v1668
        %v1769 = vpop.f32.mrb[0].mxu0
        %v1770 = vadd.f32 0.0, %v1769
        %v1771 = vpop.f32.mrb[0].mxu0
        %v1772 = vpop.f32.mrb[0].mxu0
        %v1773 = vadd.f32 0.0, %v1772
        %v1774 = vpop.f32.mrb[0].mxu0
        %1775 = vmatprep.mubr.bf16.mxu0 0
        %1776 = vmatmul.mubr.bf16.gmra.mrb[0].mxu0 %v1671
        %v1777 = vpop.f32.mrb[0].mxu0
        %v1778 = vadd.f32 0.0, %v1777
        %v1779 = vpop.f32.mrb[0].mxu0
        %v1780 = vpop.f32.mrb[0].mxu0
        %v1781 = vadd.f32 0.0, %v1780
        %v1782 = vpop.f32.mrb[0].mxu0
        %1783 = vmatprep.mubr.bf16.mxu0 0
        %1784 = vmatmul.mubr.bf16.gmra.mrb[0].mxu0 %v1674
        %v1785 = vpop.f32.mrb[0].mxu0
        %v1786 = vadd.f32 0.0, %v1785
        %v1787 = vpop.f32.mrb[0].mxu0
        %v1788 = vpop.f32.mrb[0].mxu0
        %v1789 = vadd.f32 0.0, %v1788
        %v1790 = vpop.f32.mrb[0].mxu0
        %1791 = vmatprep.mubr.bf16.mxu0 0
        %1792 = vmatmul.mubr.bf16.gmra.mrb[0].mxu0 %v1677
        %v1793 = vpop.f32.mrb[0].mxu0
        %v1794 = vadd.f32 0.0, %v1793
        %v1795 = vpop.f32.mrb[0].mxu0
        %v1796 = vpop.f32.mrb[0].mxu0
        %v1797 = vadd.f32 0.0, %v1796
        %v1798 = vpop.f32.mrb[0].mxu0
        %1799 = vmatprep.mubr.bf16.mxu0 0
        %1800 = vmatmul.mubr.bf16.gmra.mrb[0].mxu0 %v1680
        %v1801 = vpop.f32.mrb[0].mxu0
        %v1802 = vadd.f32 0.0, %v1801
        %v1803 = vpop.f32.mrb[0].mxu0
        %v1804 = vpop.f32.mrb[0].mxu0
        %v1805 = vadd.f32 0.0, %v1804
        %v1806 = vpop.f32.mrb[0].mxu0
        %1807 = vmatprep.mubr.bf16.mxu0 0
        %1808 = vmatmul.mubr.bf16.gmra.mrb[0].mxu0 %v1683
        %v1809 = vpop.f32.mrb[0].mxu0
        %v1810 = vadd.f32 0.0, %v1809
        %v1811 = vpop.f32.mrb[0].mxu0
        %v1812 = vpop.f32.mrb[0].mxu0
        %v1813 = vadd.f32 0.0, %v1812
        %v1814 = vpop.f32.mrb[0].mxu0
        %1815 = vmatprep.mubr.bf16.mxu0 0
        %1816 = vmatmul.mubr.bf16.gmra.mrb[0].mxu0 %v1686
        %v1817 = vpop.f32.mrb[0].mxu0
        %v1818 = vadd.f32 0.0, %v1817
        %v1819 = vpop.f32.mrb[0].mxu0
        %v1820 = vpop.f32.mrb[0].mxu0
        %v1821 = vadd.f32 0.0, %v1820
        %v1822 = vpop.f32.mrb[0].mxu0
        %1823 = vmatprep.mubr.bf16.mxu0 0
        %1824 = vmatmul.mubr.bf16.gmra.mrb[0].mxu0 %v1689
        %v1825 = vpop.f32.mrb[0].mxu0
        %v1826 = vadd.f32 0.0, %v1825
        %v1827 = vpop.f32.mrb[0].mxu0
        %v1828 = vpop.f32.mrb[0].mxu0
        %v1829 = vadd.f32 0.0, %v1828
        %v1830 = vpop.f32.mrb[0].mxu0
        %1831 = vmatprep.mubr.bf16.mxu0 0
        %1832 = vmatmul.mubr.bf16.gmra.mrb[0].mxu0 %v1692
        %v1833 = vpop.f32.mrb[0].mxu0
        %v1834 = vadd.f32 0.0, %v1833
        %v1835 = vpop.f32.mrb[0].mxu0
        %v1836 = vpop.f32.mrb[0].mxu0
        %v1837 = vadd.f32 0.0, %v1836
        %v1838 = vpop.f32.mrb[0].mxu0
        %1839 = vmatprep.mubr.bf16.mxu0 0
        %1840 = vmatmul.mubr.bf16.gmra.mrb[0].mxu0 %v1695
        %v1841 = vpop.f32.mrb[0].mxu0
        %v1842 = vadd.f32 0.0, %v1841
        %v1843 = vpop.f32.mrb[0].mxu0
        %v1844 = vpop.f32.mrb[0].mxu0
        %v1845 = vadd.f32 0.0, %v1844
        %v1846 = vpop.f32.mrb[0].mxu0
        %1847 = vmatprep.mubr.bf16.mxu0 0
        %1848 = vmatmul.mubr.bf16.gmra.mrb[0].mxu0 %v1698
        %v1849 = vpop.f32.mrb[0].mxu0
        %v1850 = vadd.f32 0.0, %v1849
        %v1851 = vpop.f32.mrb[0].mxu0
        %v1852 = vpop.f32.mrb[0].mxu0
        %v1853 = vadd.f32 0.0, %v1852
        %v1854 = vpop.f32.mrb[0].mxu0
        %1855 = vmatprep.mubr.bf16.mxu0 0
        %1856 = vmatmul.mubr.bf16.gmra.mrb[0].mxu0 %v1701
        %v1857 = vpop.f32.mrb[0].mxu0
        %v1858 = vadd.f32 0.0, %v1857
        %v1859 = vpop.f32.mrb[0].mxu0
        %v1860 = vpop.f32.mrb[0].mxu0
        %v1861 = vadd.f32 0.0, %v1860
        %v1862 = vpop.f32.mrb[0].mxu0
        %1863 = vdwg.mxu0
        %v1864 = vadd.f32 %v1341, %v1738
        %v1865 = vadd.f32 %v1344, %v1741
        %v1866 = vadd.f32 %v1349, %v1746
        %v1867 = vadd.f32 %v1352, %v1749
        %v1868 = vadd.f32 %v1357, %v1754
        %v1869 = vadd.f32 %v1360, %v1757
        %v1870 = vadd.f32 %v1365, %v1762
        %v1871 = vadd.f32 %v1368, %v1765
        %v1872 = vadd.f32 %v1373, %v1770
        %v1873 = vadd.f32 %v1376, %v1773
        %v1874 = vadd.f32 %v1381, %v1778
        %v1875 = vadd.f32 %v1384, %v1781
        %v1876 = vadd.f32 %v1389, %v1786
        %v1877 = vadd.f32 %v1392, %v1789
        %v1878 = vadd.f32 %v1397, %v1794
        %v1879 = vadd.f32 %v1400, %v1797
        %v1880 = vadd.f32 %v1405, %v1802
        %v1881 = vadd.f32 %v1408, %v1805
        %v1882 = vadd.f32 %v1413, %v1810
        %v1883 = vadd.f32 %v1416, %v1813
        %v1884 = vadd.f32 %v1421, %v1818
        %v1885 = vadd.f32 %v1424, %v1821
        %v1886 = vadd.f32 %v1429, %v1826
        %v1887 = vadd.f32 %v1432, %v1829
        %v1888 = vadd.f32 %v1437, %v1834
        %v1889 = vadd.f32 %v1440, %v1837
        %v1890 = vadd.f32 %v1445, %v1842
        %v1891 = vadd.f32 %v1448, %v1845
        %v1892 = vadd.f32 %v1453, %v1850
        %v1893 = vadd.f32 %v1456, %v1853
        %v1894 = vadd.f32 %v1461, %v1858
        %v1895 = vadd.f32 %v1464, %v1861
        %s1896 = scalar_lea.vmem %s3, 24
        %v1897 = vld [vmem:[%s1896] sm:$0xf]
        %v1898 = vld [vmem:[%s1896 + $0x4] sm:$0xf]
        %v1901 = vunpack.c.l.b16 %v272
        %v1902 = vunpack.c.l.b16 %v273
        %v1903 = vpack.c.b16 %v1902, %v1901
        %v1906 = vunpack.c.l.b16 %v1897
        %v1907 = vunpack.c.l.b16 %v1898
        %v1908 = vpack.c.b16 %v1907, %v1906
        %v1911 = vsel %vm728, %v1903, 0
        %1913 = vmatprep.subr.bf16.mxu0 0
        %1914 = vmatpush1.bf16.msra.mxu0 %v1908
        %1915 = vmatprep.subr.bf16.mxu0 0
        %1916 = vmatpush1.bf16.msra.mxu0 0
        %1917 = vmatprep.subr.bf16.mxu0 0
        %1918 = vmatpush1.bf16.msra.mxu0 0
        %1919 = vmatprep.subr.bf16.mxu0 0
        %1920 = vmatpush1.bf16.msra.mxu0 0
        %1921 = vmatprep.subr.bf16.mxu0 0
        %1922 = vmatpush1.bf16.msra.mxu0 0
        %1923 = vmatprep.subr.bf16.mxu0 0
        %1924 = vmatpush1.bf16.msra.mxu0 0
        %1925 = vmatprep.subr.bf16.mxu0 0
        %1926 = vmatpush1.bf16.msra.mxu0 0
        %1927 = vmatprep.subr.bf16.mxu0 0
        %1928 = vmatpush1.bf16.msra.mxu0 0
        %1929 = vmatprep.subr.bf16.mxu0 0
        %1930 = vmatpush1.bf16.msra.mxu0 0
        %1931 = vmatprep.subr.bf16.mxu0 0
        %1932 = vmatpush1.bf16.msra.mxu0 0
        %1933 = vmatprep.subr.bf16.mxu0 0
        %1934 = vmatpush1.bf16.msra.mxu0 0
        %1935 = vmatprep.subr.bf16.mxu0 0
        %1936 = vmatpush1.bf16.msra.mxu0 0
        %1937 = vmatprep.subr.bf16.mxu0 0
        %1938 = vmatpush1.bf16.msra.mxu0 0
        %1939 = vmatprep.subr.bf16.mxu0 0
        %1940 = vmatpush1.bf16.msra.mxu0 0
        %1941 = vmatprep.subr.bf16.mxu0 0
        %1942 = vmatpush1.bf16.msra.mxu0 0
        %1943 = vmatprep.subr.bf16.mxu0 0
        %1944 = vmatpush1.bf16.msra.mxu0 0
        %1945 = vmatprep.mubr.bf16.mxu0 0
        %1946 = vmatmul.mubr.bf16.gmra.mrb[0].mxu0 %v1262
        %v1947 = vpop.f32.mrb[0].mxu0
        %v1948 = vadd.f32 0.0, %v1947
        %v1949 = vpop.f32.mrb[0].mxu0
        %v1950 = vpop.f32.mrb[0].mxu0
        %v1951 = vadd.f32 0.0, %v1950
        %v1952 = vpop.f32.mrb[0].mxu0
        %1953 = vmatprep.mubr.bf16.mxu0 0
        %1954 = vmatmul.mubr.bf16.gmra.mrb[0].mxu0 %v1265
        %v1955 = vpop.f32.mrb[0].mxu0
        %v1956 = vadd.f32 0.0, %v1955
        %v1957 = vpop.f32.mrb[0].mxu0
        %v1958 = vpop.f32.mrb[0].mxu0
        %v1959 = vadd.f32 0.0, %v1958
        %v1960 = vpop.f32.mrb[0].mxu0
        %1961 = vmatprep.mubr.bf16.mxu0 0
        %1962 = vmatmul.mubr.bf16.gmra.mrb[0].mxu0 %v1268
        %v1963 = vpop.f32.mrb[0].mxu0
        %v1964 = vadd.f32 0.0, %v1963
        %v1965 = vpop.f32.mrb[0].mxu0
        %v1966 = vpop.f32.mrb[0].mxu0
        %v1967 = vadd.f32 0.0, %v1966
        %v1968 = vpop.f32.mrb[0].mxu0
        %1969 = vmatprep.mubr.bf16.mxu0 0
        %1970 = vmatmul.mubr.bf16.gmra.mrb[0].mxu0 %v1271
        %v1971 = vpop.f32.mrb[0].mxu0
        %v1972 = vadd.f32 0.0, %v1971
        %v1973 = vpop.f32.mrb[0].mxu0
        %v1974 = vpop.f32.mrb[0].mxu0
        %v1975 = vadd.f32 0.0, %v1974
        %v1976 = vpop.f32.mrb[0].mxu0
        %1977 = vmatprep.mubr.bf16.mxu0 0
        %1978 = vmatmul.mubr.bf16.gmra.mrb[0].mxu0 %v1274
        %v1979 = vpop.f32.mrb[0].mxu0
        %v1980 = vadd.f32 0.0, %v1979
        %v1981 = vpop.f32.mrb[0].mxu0
        %v1982 = vpop.f32.mrb[0].mxu0
        %v1983 = vadd.f32 0.0, %v1982
        %v1984 = vpop.f32.mrb[0].mxu0
        %1985 = vmatprep.mubr.bf16.mxu0 0
        %1986 = vmatmul.mubr.bf16.gmra.mrb[0].mxu0 %v1277
        %v1987 = vpop.f32.mrb[0].mxu0
        %v1988 = vadd.f32 0.0, %v1987
        %v1989 = vpop.f32.mrb[0].mxu0
        %v1990 = vpop.f32.mrb[0].mxu0
        %v1991 = vadd.f32 0.0, %v1990
        %v1992 = vpop.f32.mrb[0].mxu0
        %1993 = vmatprep.mubr.bf16.mxu0 0
        %1994 = vmatmul.mubr.bf16.gmra.mrb[0].mxu0 %v1280
        %v1995 = vpop.f32.mrb[0].mxu0
        %v1996 = vadd.f32 0.0, %v1995
        %v1997 = vpop.f32.mrb[0].mxu0
        %v1998 = vpop.f32.mrb[0].mxu0
        %v1999 = vadd.f32 0.0, %v1998
        %v2000 = vpop.f32.mrb[0].mxu0
        %2001 = vmatprep.mubr.bf16.mxu0 0
        %2002 = vmatmul.mubr.bf16.gmra.mrb[0].mxu0 %v1283
        %v2003 = vpop.f32.mrb[0].mxu0
        %v2004 = vadd.f32 0.0, %v2003
        %v2005 = vpop.f32.mrb[0].mxu0
        %v2006 = vpop.f32.mrb[0].mxu0
        %v2007 = vadd.f32 0.0, %v2006
        %v2008 = vpop.f32.mrb[0].mxu0
        %2009 = vmatprep.mubr.bf16.mxu0 0
        %2010 = vmatmul.mubr.bf16.gmra.mrb[0].mxu0 %v1286
        %v2011 = vpop.f32.mrb[0].mxu0
        %v2012 = vadd.f32 0.0, %v2011
        %v2013 = vpop.f32.mrb[0].mxu0
        %v2014 = vpop.f32.mrb[0].mxu0
        %v2015 = vadd.f32 0.0, %v2014
        %v2016 = vpop.f32.mrb[0].mxu0
        %2017 = vmatprep.mubr.bf16.mxu0 0
        %2018 = vmatmul.mubr.bf16.gmra.mrb[0].mxu0 %v1289
        %v2019 = vpop.f32.mrb[0].mxu0
        %v2020 = vadd.f32 0.0, %v2019
        %v2021 = vpop.f32.mrb[0].mxu0
        %v2022 = vpop.f32.mrb[0].mxu0
        %v2023 = vadd.f32 0.0, %v2022
        %v2024 = vpop.f32.mrb[0].mxu0
        %2025 = vmatprep.mubr.bf16.mxu0 0
        %2026 = vmatmul.mubr.bf16.gmra.mrb[0].mxu0 %v1292
        %v2027 = vpop.f32.mrb[0].mxu0
        %v2028 = vadd.f32 0.0, %v2027
        %v2029 = vpop.f32.mrb[0].mxu0
        %v2030 = vpop.f32.mrb[0].mxu0
        %v2031 = vadd.f32 0.0, %v2030
        %v2032 = vpop.f32.mrb[0].mxu0
        %2033 = vmatprep.mubr.bf16.mxu0 0
        %2034 = vmatmul.mubr.bf16.gmra.mrb[0].mxu0 %v1295
        %v2035 = vpop.f32.mrb[0].mxu0
        %v2036 = vadd.f32 0.0, %v2035
        %v2037 = vpop.f32.mrb[0].mxu0
        %v2038 = vpop.f32.mrb[0].mxu0
        %v2039 = vadd.f32 0.0, %v2038
        %v2040 = vpop.f32.mrb[0].mxu0
        %2041 = vmatprep.mubr.bf16.mxu0 0
        %2042 = vmatmul.mubr.bf16.gmra.mrb[0].mxu0 %v1298
        %v2043 = vpop.f32.mrb[0].mxu0
        %v2044 = vadd.f32 0.0, %v2043
        %v2045 = vpop.f32.mrb[0].mxu0
        %v2046 = vpop.f32.mrb[0].mxu0
        %v2047 = vadd.f32 0.0, %v2046
        %v2048 = vpop.f32.mrb[0].mxu0
        %2049 = vmatprep.mubr.bf16.mxu0 0
        %2050 = vmatmul.mubr.bf16.gmra.mrb[0].mxu0 %v1301
        %v2051 = vpop.f32.mrb[0].mxu0
        %v2052 = vadd.f32 0.0, %v2051
        %v2053 = vpop.f32.mrb[0].mxu0
        %v2054 = vpop.f32.mrb[0].mxu0
        %v2055 = vadd.f32 0.0, %v2054
        %v2056 = vpop.f32.mrb[0].mxu0
        %2057 = vmatprep.mubr.bf16.mxu0 0
        %2058 = vmatmul.mubr.bf16.gmra.mrb[0].mxu0 %v1304
        %v2059 = vpop.f32.mrb[0].mxu0
        %v2060 = vadd.f32 0.0, %v2059
        %v2061 = vpop.f32.mrb[0].mxu0
        %v2062 = vpop.f32.mrb[0].mxu0
        %v2063 = vadd.f32 0.0, %v2062
        %v2064 = vpop.f32.mrb[0].mxu0
        %2065 = vmatprep.mubr.bf16.mxu0 0
        %2066 = vmatmul.mubr.bf16.gmra.mrb[0].mxu0 %v1911
        %v2067 = vpop.f32.mrb[0].mxu0
        %v2068 = vadd.f32 0.0, %v2067
        %v2069 = vpop.f32.mrb[0].mxu0
        %v2070 = vpop.f32.mrb[0].mxu0
        %v2071 = vadd.f32 0.0, %v2070
        %v2072 = vpop.f32.mrb[0].mxu0
        %2073 = vdwg.mxu0
        %v2074 = vadd.f32 %v1864, %v1948
        %v2075 = vadd.f32 %v1865, %v1951
        %v2076 = vadd.f32 %v1866, %v1956
        %v2077 = vadd.f32 %v1867, %v1959
        %v2078 = vadd.f32 %v1868, %v1964
        %v2079 = vadd.f32 %v1869, %v1967
        %v2080 = vadd.f32 %v1870, %v1972
        %v2081 = vadd.f32 %v1871, %v1975
        %v2082 = vadd.f32 %v1872, %v1980
        %v2083 = vadd.f32 %v1873, %v1983
        %v2084 = vadd.f32 %v1874, %v1988
        %v2085 = vadd.f32 %v1875, %v1991
        %v2086 = vadd.f32 %v1876, %v1996
        %v2087 = vadd.f32 %v1877, %v1999
        %v2088 = vadd.f32 %v1878, %v2004
        %v2089 = vadd.f32 %v1879, %v2007
        %v2090 = vadd.f32 %v1880, %v2012
        %v2091 = vadd.f32 %v1881, %v2015
        %v2092 = vadd.f32 %v1882, %v2020
        %v2093 = vadd.f32 %v1883, %v2023
        %v2094 = vadd.f32 %v1884, %v2028
        %v2095 = vadd.f32 %v1885, %v2031
        %v2096 = vadd.f32 %v1886, %v2036
        %v2097 = vadd.f32 %v1887, %v2039
        %v2098 = vadd.f32 %v1888, %v2044
        %v2099 = vadd.f32 %v1889, %v2047
        %v2100 = vadd.f32 %v1890, %v2052
        %v2101 = vadd.f32 %v1891, %v2055
        %v2102 = vadd.f32 %v1892, %v2060
        %v2103 = vadd.f32 %v1893, %v2063
        %v2104 = vadd.f32 %v1894, %v2068
        %v2105 = vadd.f32 %v1895, %v2071
        %s2106 = scalar_lea.vmem %s3, 32
        %v2107 = vld [vmem:[%s2106] sm:$0xf]
        %v2108 = vld [vmem:[%s2106 + $0x4] sm:$0xf]
        %v2111 = vunpack.c.l.b16 %v2107
        %v2112 = vunpack.c.l.b16 %v2108
        %v2113 = vpack.c.b16 %v2112, %v2111
        %2115 = vmatprep.subr.bf16.mxu0 0
        %2116 = vmatpush1.bf16.msra.mxu0 %v2113
        %2117 = vmatprep.subr.bf16.mxu0 0
        %2118 = vmatpush1.bf16.msra.mxu0 0
        %2119 = vmatprep.subr.bf16.mxu0 0
        %2120 = vmatpush1.bf16.msra.mxu0 0
        %2121 = vmatprep.subr.bf16.mxu0 0
        %2122 = vmatpush1.bf16.msra.mxu0 0
        %2123 = vmatprep.subr.bf16.mxu0 0
        %2124 = vmatpush1.bf16.msra.mxu0 0
        %2125 = vmatprep.subr.bf16.mxu0 0
        %2126 = vmatpush1.bf16.msra.mxu0 0
        %2127 = vmatprep.subr.bf16.mxu0 0
        %2128 = vmatpush1.bf16.msra.mxu0 0
        %2129 = vmatprep.subr.bf16.mxu0 0
        %2130 = vmatpush1.bf16.msra.mxu0 0
        %2131 = vmatprep.subr.bf16.mxu0 0
        %2132 = vmatpush1.bf16.msra.mxu0 0
        %2133 = vmatprep.subr.bf16.mxu0 0
        %2134 = vmatpush1.bf16.msra.mxu0 0
        %2135 = vmatprep.subr.bf16.mxu0 0
        %2136 = vmatpush1.bf16.msra.mxu0 0
        %2137 = vmatprep.subr.bf16.mxu0 0
        %2138 = vmatpush1.bf16.msra.mxu0 0
        %2139 = vmatprep.subr.bf16.mxu0 0
        %2140 = vmatpush1.bf16.msra.mxu0 0
        %2141 = vmatprep.subr.bf16.mxu0 0
        %2142 = vmatpush1.bf16.msra.mxu0 0
        %2143 = vmatprep.subr.bf16.mxu0 0
        %2144 = vmatpush1.bf16.msra.mxu0 0
        %2145 = vmatprep.subr.bf16.mxu0 0
        %2146 = vmatpush1.bf16.msra.mxu0 0
        %2147 = vmatprep.mubr.bf16.mxu0 0
        %2148 = vmatmul.mubr.bf16.gmra.mrb[0].mxu0 %v730
        %v2149 = vpop.f32.mrb[0].mxu0
        %v2150 = vadd.f32 0.0, %v2149
        %v2151 = vpop.f32.mrb[0].mxu0
        %v2152 = vpop.f32.mrb[0].mxu0
        %v2153 = vadd.f32 0.0, %v2152
        %v2154 = vpop.f32.mrb[0].mxu0
        %2155 = vmatprep.mubr.bf16.mxu0 0
        %2156 = vmatmul.mubr.bf16.gmra.mrb[0].mxu0 %v733
        %v2157 = vpop.f32.mrb[0].mxu0
        %v2158 = vadd.f32 0.0, %v2157
        %v2159 = vpop.f32.mrb[0].mxu0
        %v2160 = vpop.f32.mrb[0].mxu0
        %v2161 = vadd.f32 0.0, %v2160
        %v2162 = vpop.f32.mrb[0].mxu0
        %2163 = vmatprep.mubr.bf16.mxu0 0
        %2164 = vmatmul.mubr.bf16.gmra.mrb[0].mxu0 %v736
        %v2165 = vpop.f32.mrb[0].mxu0
        %v2166 = vadd.f32 0.0, %v2165
        %v2167 = vpop.f32.mrb[0].mxu0
        %v2168 = vpop.f32.mrb[0].mxu0
        %v2169 = vadd.f32 0.0, %v2168
        %v2170 = vpop.f32.mrb[0].mxu0
        %2171 = vmatprep.mubr.bf16.mxu0 0
        %2172 = vmatmul.mubr.bf16.gmra.mrb[0].mxu0 %v739
        %v2173 = vpop.f32.mrb[0].mxu0
        %v2174 = vadd.f32 0.0, %v2173
        %v2175 = vpop.f32.mrb[0].mxu0
        %v2176 = vpop.f32.mrb[0].mxu0
        %v2177 = vadd.f32 0.0, %v2176
        %v2178 = vpop.f32.mrb[0].mxu0
        %2179 = vmatprep.mubr.bf16.mxu0 0
        %2180 = vmatmul.mubr.bf16.gmra.mrb[0].mxu0 %v742
        %v2181 = vpop.f32.mrb[0].mxu0
        %v2182 = vadd.f32 0.0, %v2181
        %v2183 = vpop.f32.mrb[0].mxu0
        %v2184 = vpop.f32.mrb[0].mxu0
        %v2185 = vadd.f32 0.0, %v2184
        %v2186 = vpop.f32.mrb[0].mxu0
        %2187 = vmatprep.mubr.bf16.mxu0 0
        %2188 = vmatmul.mubr.bf16.gmra.mrb[0].mxu0 %v745
        %v2189 = vpop.f32.mrb[0].mxu0
        %v2190 = vadd.f32 0.0, %v2189
        %v2191 = vpop.f32.mrb[0].mxu0
        %v2192 = vpop.f32.mrb[0].mxu0
        %v2193 = vadd.f32 0.0, %v2192
        %v2194 = vpop.f32.mrb[0].mxu0
        %2195 = vmatprep.mubr.bf16.mxu0 0
        %2196 = vmatmul.mubr.bf16.gmra.mrb[0].mxu0 %v748
        %v2197 = vpop.f32.mrb[0].mxu0
        %v2198 = vadd.f32 0.0, %v2197
        %v2199 = vpop.f32.mrb[0].mxu0
        %v2200 = vpop.f32.mrb[0].mxu0
        %v2201 = vadd.f32 0.0, %v2200
        %v2202 = vpop.f32.mrb[0].mxu0
        %2203 = vmatprep.mubr.bf16.mxu0 0
        %2204 = vmatmul.mubr.bf16.gmra.mrb[0].mxu0 %v751
        %v2205 = vpop.f32.mrb[0].mxu0
        %v2206 = vadd.f32 0.0, %v2205
        %v2207 = vpop.f32.mrb[0].mxu0
        %v2208 = vpop.f32.mrb[0].mxu0
        %v2209 = vadd.f32 0.0, %v2208
        %v2210 = vpop.f32.mrb[0].mxu0
        %2211 = vmatprep.mubr.bf16.mxu0 0
        %2212 = vmatmul.mubr.bf16.gmra.mrb[0].mxu0 %v754
        %v2213 = vpop.f32.mrb[0].mxu0
        %v2214 = vadd.f32 0.0, %v2213
        %v2215 = vpop.f32.mrb[0].mxu0
        %v2216 = vpop.f32.mrb[0].mxu0
        %v2217 = vadd.f32 0.0, %v2216
        %v2218 = vpop.f32.mrb[0].mxu0
        %2219 = vmatprep.mubr.bf16.mxu0 0
        %2220 = vmatmul.mubr.bf16.gmra.mrb[0].mxu0 %v757
        %v2221 = vpop.f32.mrb[0].mxu0
        %v2222 = vadd.f32 0.0, %v2221
        %v2223 = vpop.f32.mrb[0].mxu0
        %v2224 = vpop.f32.mrb[0].mxu0
        %v2225 = vadd.f32 0.0, %v2224
        %v2226 = vpop.f32.mrb[0].mxu0
        %2227 = vmatprep.mubr.bf16.mxu0 0
        %2228 = vmatmul.mubr.bf16.gmra.mrb[0].mxu0 %v760
        %v2229 = vpop.f32.mrb[0].mxu0
        %v2230 = vadd.f32 0.0, %v2229
        %v2231 = vpop.f32.mrb[0].mxu0
        %v2232 = vpop.f32.mrb[0].mxu0
        %v2233 = vadd.f32 0.0, %v2232
        %v2234 = vpop.f32.mrb[0].mxu0
        %2235 = vmatprep.mubr.bf16.mxu0 0
        %2236 = vmatmul.mubr.bf16.gmra.mrb[0].mxu0 %v763
        %v2237 = vpop.f32.mrb[0].mxu0
        %v2238 = vadd.f32 0.0, %v2237
        %v2239 = vpop.f32.mrb[0].mxu0
        %v2240 = vpop.f32.mrb[0].mxu0
        %v2241 = vadd.f32 0.0, %v2240
        %v2242 = vpop.f32.mrb[0].mxu0
        %2243 = vmatprep.mubr.bf16.mxu0 0
        %2244 = vmatmul.mubr.bf16.gmra.mrb[0].mxu0 %v766
        %v2245 = vpop.f32.mrb[0].mxu0
        %v2246 = vadd.f32 0.0, %v2245
        %v2247 = vpop.f32.mrb[0].mxu0
        %v2248 = vpop.f32.mrb[0].mxu0
        %v2249 = vadd.f32 0.0, %v2248
        %v2250 = vpop.f32.mrb[0].mxu0
        %2251 = vmatprep.mubr.bf16.mxu0 0
        %2252 = vmatmul.mubr.bf16.gmra.mrb[0].mxu0 %v769
        %v2253 = vpop.f32.mrb[0].mxu0
        %v2254 = vadd.f32 0.0, %v2253
        %v2255 = vpop.f32.mrb[0].mxu0
        %v2256 = vpop.f32.mrb[0].mxu0
        %v2257 = vadd.f32 0.0, %v2256
        %v2258 = vpop.f32.mrb[0].mxu0
        %2259 = vmatprep.mubr.bf16.mxu0 0
        %2260 = vmatmul.mubr.bf16.gmra.mrb[0].mxu0 %v772
        %v2261 = vpop.f32.mrb[0].mxu0
        %v2262 = vadd.f32 0.0, %v2261
        %v2263 = vpop.f32.mrb[0].mxu0
        %v2264 = vpop.f32.mrb[0].mxu0
        %v2265 = vadd.f32 0.0, %v2264
        %v2266 = vpop.f32.mrb[0].mxu0
        %2267 = vmatprep.mubr.bf16.mxu0 0
        %2268 = vmatmul.mubr.bf16.gmra.mrb[0].mxu0 %v775
        %v2269 = vpop.f32.mrb[0].mxu0
        %v2270 = vadd.f32 0.0, %v2269
        %v2271 = vpop.f32.mrb[0].mxu0
        %v2272 = vpop.f32.mrb[0].mxu0
        %v2273 = vadd.f32 0.0, %v2272
        %v2274 = vpop.f32.mrb[0].mxu0
        %2275 = vdwg.mxu0
        %v2276 = vadd.f32 %v2074, %v2150
        %v2277 = vadd.f32 %v2075, %v2153
        %v2278 = vadd.f32 %v2076, %v2158
        %v2279 = vadd.f32 %v2077, %v2161
        %v2280 = vadd.f32 %v2078, %v2166
        %v2281 = vadd.f32 %v2079, %v2169
        %v2282 = vadd.f32 %v2080, %v2174
        %v2283 = vadd.f32 %v2081, %v2177
        %v2284 = vadd.f32 %v2082, %v2182
        %v2285 = vadd.f32 %v2083, %v2185
        %v2286 = vadd.f32 %v2084, %v2190
        %v2287 = vadd.f32 %v2085, %v2193
        %v2288 = vadd.f32 %v2086, %v2198
        %v2289 = vadd.f32 %v2087, %v2201
        %v2290 = vadd.f32 %v2088, %v2206
        %v2291 = vadd.f32 %v2089, %v2209
        %v2292 = vadd.f32 %v2090, %v2214
        %v2293 = vadd.f32 %v2091, %v2217
        %v2294 = vadd.f32 %v2092, %v2222
        %v2295 = vadd.f32 %v2093, %v2225
        %v2296 = vadd.f32 %v2094, %v2230
        %v2297 = vadd.f32 %v2095, %v2233
        %v2298 = vadd.f32 %v2096, %v2238
        %v2299 = vadd.f32 %v2097, %v2241
        %v2300 = vadd.f32 %v2098, %v2246
        %v2301 = vadd.f32 %v2099, %v2249
        %v2302 = vadd.f32 %v2100, %v2254
        %v2303 = vadd.f32 %v2101, %v2257
        %v2304 = vadd.f32 %v2102, %v2262
        %v2305 = vadd.f32 %v2103, %v2265
        %v2306 = vadd.f32 %v2104, %v2270
        %v2307 = vadd.f32 %v2105, %v2273
        %v2309 = vrot.slane %v272, 5
        %v2310 = vrot.slane %v2309, 4
        %v2311 = vrot.slane %v273, 5
        %v2312 = vsel %vm1485, %v2310, %v2311
        %v2313 = vrot.slane %v2311, 4
        %v2314 = vrot.slane %v274, 5
        %v2315 = vsel %vm1485, %v2313, %v2314
        %s2316 = scalar_lea.vmem %s3, 40
        %v2317 = vld [vmem:[%s2316] sm:$0xf]
        %v2318 = vld [vmem:[%s2316 + $0x4] sm:$0xf]
        %v2319 = vunpack.c.l.b16 %v2312
        %v2320 = vunpack.c.l.b16 %v2315
        %v2321 = vpack.c.b16 %v2320, %v2319
        %v2324 = vunpack.c.l.b16 %v2317
        %v2325 = vunpack.c.l.b16 %v2318
        %v2326 = vpack.c.b16 %v2325, %v2324
        %v2329 = vsel %vm728, %v2321, 0
        %2331 = vmatprep.subr.bf16.mxu0 0
        %2332 = vmatpush1.bf16.msra.mxu0 %v2326
        %2333 = vmatprep.subr.bf16.mxu0 0
        %2334 = vmatpush1.bf16.msra.mxu0 0
        %2335 = vmatprep.subr.bf16.mxu0 0
        %2336 = vmatpush1.bf16.msra.mxu0 0
        %2337 = vmatprep.subr.bf16.mxu0 0
        %2338 = vmatpush1.bf16.msra.mxu0 0
        %2339 = vmatprep.subr.bf16.mxu0 0
        %2340 = vmatpush1.bf16.msra.mxu0 0
        %2341 = vmatprep.subr.bf16.mxu0 0
        %2342 = vmatpush1.bf16.msra.mxu0 0
        %2343 = vmatprep.subr.bf16.mxu0 0
        %2344 = vmatpush1.bf16.msra.mxu0 0
        %2345 = vmatprep.subr.bf16.mxu0 0
        %2346 = vmatpush1.bf16.msra.mxu0 0
        %2347 = vmatprep.subr.bf16.mxu0 0
        %2348 = vmatpush1.bf16.msra.mxu0 0
        %2349 = vmatprep.subr.bf16.mxu0 0
        %2350 = vmatpush1.bf16.msra.mxu0 0
        %2351 = vmatprep.subr.bf16.mxu0 0
        %2352 = vmatpush1.bf16.msra.mxu0 0
        %2353 = vmatprep.subr.bf16.mxu0 0
        %2354 = vmatpush1.bf16.msra.mxu0 0
        %2355 = vmatprep.subr.bf16.mxu0 0
        %2356 = vmatpush1.bf16.msra.mxu0 0
        %2357 = vmatprep.subr.bf16.mxu0 0
        %2358 = vmatpush1.bf16.msra.mxu0 0
        %2359 = vmatprep.subr.bf16.mxu0 0
        %2360 = vmatpush1.bf16.msra.mxu0 0
        %2361 = vmatprep.subr.bf16.mxu0 0
        %2362 = vmatpush1.bf16.msra.mxu0 0
        %2363 = vmatprep.mubr.bf16.mxu0 0
        %2364 = vmatmul.mubr.bf16.gmra.mrb[0].mxu0 %v1659
        %v2365 = vpop.f32.mrb[0].mxu0
        %v2366 = vadd.f32 0.0, %v2365
        %v2367 = vpop.f32.mrb[0].mxu0
        %v2368 = vpop.f32.mrb[0].mxu0
        %v2369 = vadd.f32 0.0, %v2368
        %v2370 = vpop.f32.mrb[0].mxu0
        %2371 = vmatprep.mubr.bf16.mxu0 0
        %2372 = vmatmul.mubr.bf16.gmra.mrb[0].mxu0 %v1662
        %v2373 = vpop.f32.mrb[0].mxu0
        %v2374 = vadd.f32 0.0, %v2373
        %v2375 = vpop.f32.mrb[0].mxu0
        %v2376 = vpop.f32.mrb[0].mxu0
        %v2377 = vadd.f32 0.0, %v2376
        %v2378 = vpop.f32.mrb[0].mxu0
        %2379 = vmatprep.mubr.bf16.mxu0 0
        %2380 = vmatmul.mubr.bf16.gmra.mrb[0].mxu0 %v1665
        %v2381 = vpop.f32.mrb[0].mxu0
        %v2382 = vadd.f32 0.0, %v2381
        %v2383 = vpop.f32.mrb[0].mxu0
        %v2384 = vpop.f32.mrb[0].mxu0
        %v2385 = vadd.f32 0.0, %v2384
        %v2386 = vpop.f32.mrb[0].mxu0
        %2387 = vmatprep.mubr.bf16.mxu0 0
        %2388 = vmatmul.mubr.bf16.gmra.mrb[0].mxu0 %v1668
        %v2389 = vpop.f32.mrb[0].mxu0
        %v2390 = vadd.f32 0.0, %v2389
        %v2391 = vpop.f32.mrb[0].mxu0
        %v2392 = vpop.f32.mrb[0].mxu0
        %v2393 = vadd.f32 0.0, %v2392
        %v2394 = vpop.f32.mrb[0].mxu0
        %2395 = vmatprep.mubr.bf16.mxu0 0
        %2396 = vmatmul.mubr.bf16.gmra.mrb[0].mxu0 %v1671
        %v2397 = vpop.f32.mrb[0].mxu0
        %v2398 = vadd.f32 0.0, %v2397
        %v2399 = vpop.f32.mrb[0].mxu0
        %v2400 = vpop.f32.mrb[0].mxu0
        %v2401 = vadd.f32 0.0, %v2400
        %v2402 = vpop.f32.mrb[0].mxu0
        %2403 = vmatprep.mubr.bf16.mxu0 0
        %2404 = vmatmul.mubr.bf16.gmra.mrb[0].mxu0 %v1674
        %v2405 = vpop.f32.mrb[0].mxu0
        %v2406 = vadd.f32 0.0, %v2405
        %v2407 = vpop.f32.mrb[0].mxu0
        %v2408 = vpop.f32.mrb[0].mxu0
        %v2409 = vadd.f32 0.0, %v2408
        %v2410 = vpop.f32.mrb[0].mxu0
        %2411 = vmatprep.mubr.bf16.mxu0 0
        %2412 = vmatmul.mubr.bf16.gmra.mrb[0].mxu0 %v1677
        %v2413 = vpop.f32.mrb[0].mxu0
        %v2414 = vadd.f32 0.0, %v2413
        %v2415 = vpop.f32.mrb[0].mxu0
        %v2416 = vpop.f32.mrb[0].mxu0
        %v2417 = vadd.f32 0.0, %v2416
        %v2418 = vpop.f32.mrb[0].mxu0
        %2419 = vmatprep.mubr.bf16.mxu0 0
        %2420 = vmatmul.mubr.bf16.gmra.mrb[0].mxu0 %v1680
        %v2421 = vpop.f32.mrb[0].mxu0
        %v2422 = vadd.f32 0.0, %v2421
        %v2423 = vpop.f32.mrb[0].mxu0
        %v2424 = vpop.f32.mrb[0].mxu0
        %v2425 = vadd.f32 0.0, %v2424
        %v2426 = vpop.f32.mrb[0].mxu0
        %2427 = vmatprep.mubr.bf16.mxu0 0
        %2428 = vmatmul.mubr.bf16.gmra.mrb[0].mxu0 %v1683
        %v2429 = vpop.f32.mrb[0].mxu0
        %v2430 = vadd.f32 0.0, %v2429
        %v2431 = vpop.f32.mrb[0].mxu0
        %v2432 = vpop.f32.mrb[0].mxu0
        %v2433 = vadd.f32 0.0, %v2432
        %v2434 = vpop.f32.mrb[0].mxu0
        %2435 = vmatprep.mubr.bf16.mxu0 0
        %2436 = vmatmul.mubr.bf16.gmra.mrb[0].mxu0 %v1686
        %v2437 = vpop.f32.mrb[0].mxu0
        %v2438 = vadd.f32 0.0, %v2437
        %v2439 = vpop.f32.mrb[0].mxu0
        %v2440 = vpop.f32.mrb[0].mxu0
        %v2441 = vadd.f32 0.0, %v2440
        %v2442 = vpop.f32.mrb[0].mxu0
        %2443 = vmatprep.mubr.bf16.mxu0 0
        %2444 = vmatmul.mubr.bf16.gmra.mrb[0].mxu0 %v1689
        %v2445 = vpop.f32.mrb[0].mxu0
        %v2446 = vadd.f32 0.0, %v2445
        %v2447 = vpop.f32.mrb[0].mxu0
        %v2448 = vpop.f32.mrb[0].mxu0
        %v2449 = vadd.f32 0.0, %v2448
        %v2450 = vpop.f32.mrb[0].mxu0
        %2451 = vmatprep.mubr.bf16.mxu0 0
        %2452 = vmatmul.mubr.bf16.gmra.mrb[0].mxu0 %v1692
        %v2453 = vpop.f32.mrb[0].mxu0
        %v2454 = vadd.f32 0.0, %v2453
        %v2455 = vpop.f32.mrb[0].mxu0
        %v2456 = vpop.f32.mrb[0].mxu0
        %v2457 = vadd.f32 0.0, %v2456
        %v2458 = vpop.f32.mrb[0].mxu0
        %2459 = vmatprep.mubr.bf16.mxu0 0
        %2460 = vmatmul.mubr.bf16.gmra.mrb[0].mxu0 %v1695
        %v2461 = vpop.f32.mrb[0].mxu0
        %v2462 = vadd.f32 0.0, %v2461
        %v2463 = vpop.f32.mrb[0].mxu0
        %v2464 = vpop.f32.mrb[0].mxu0
        %v2465 = vadd.f32 0.0, %v2464
        %v2466 = vpop.f32.mrb[0].mxu0
        %2467 = vmatprep.mubr.bf16.mxu0 0
        %2468 = vmatmul.mubr.bf16.gmra.mrb[0].mxu0 %v1698
        %v2469 = vpop.f32.mrb[0].mxu0
        %v2470 = vadd.f32 0.0, %v2469
        %v2471 = vpop.f32.mrb[0].mxu0
        %v2472 = vpop.f32.mrb[0].mxu0
        %v2473 = vadd.f32 0.0, %v2472
        %v2474 = vpop.f32.mrb[0].mxu0
        %2475 = vmatprep.mubr.bf16.mxu0 0
        %2476 = vmatmul.mubr.bf16.gmra.mrb[0].mxu0 %v1701
        %v2477 = vpop.f32.mrb[0].mxu0
        %v2478 = vadd.f32 0.0, %v2477
        %v2479 = vpop.f32.mrb[0].mxu0
        %v2480 = vpop.f32.mrb[0].mxu0
        %v2481 = vadd.f32 0.0, %v2480
        %v2482 = vpop.f32.mrb[0].mxu0
        %2483 = vmatprep.mubr.bf16.mxu0 0
        %2484 = vmatmul.mubr.bf16.gmra.mrb[0].mxu0 %v2329
        %v2485 = vpop.f32.mrb[0].mxu0
        %v2486 = vadd.f32 0.0, %v2485
        %v2487 = vpop.f32.mrb[0].mxu0
        %v2488 = vpop.f32.mrb[0].mxu0
        %v2489 = vadd.f32 0.0, %v2488
        %v2490 = vpop.f32.mrb[0].mxu0
        %2491 = vdwg.mxu0
        %v2492 = vadd.f32 %v2276, %v2366
        %v2493 = vadd.f32 %v2277, %v2369
        %v2494 = vadd.f32 %v2278, %v2374
        %v2495 = vadd.f32 %v2279, %v2377
        %v2496 = vadd.f32 %v2280, %v2382
        %v2497 = vadd.f32 %v2281, %v2385
        %v2498 = vadd.f32 %v2282, %v2390
        %v2499 = vadd.f32 %v2283, %v2393
        %v2500 = vadd.f32 %v2284, %v2398
        %v2501 = vadd.f32 %v2285, %v2401
        %v2502 = vadd.f32 %v2286, %v2406
        %v2503 = vadd.f32 %v2287, %v2409
        %v2504 = vadd.f32 %v2288, %v2414
        %v2505 = vadd.f32 %v2289, %v2417
        %v2506 = vadd.f32 %v2290, %v2422
        %v2507 = vadd.f32 %v2291, %v2425
        %v2508 = vadd.f32 %v2292, %v2430
        %v2509 = vadd.f32 %v2293, %v2433
        %v2510 = vadd.f32 %v2294, %v2438
        %v2511 = vadd.f32 %v2295, %v2441
        %v2512 = vadd.f32 %v2296, %v2446
        %v2513 = vadd.f32 %v2297, %v2449
        %v2514 = vadd.f32 %v2298, %v2454
        %v2515 = vadd.f32 %v2299, %v2457
        %v2516 = vadd.f32 %v2300, %v2462
        %v2517 = vadd.f32 %v2301, %v2465
        %v2518 = vadd.f32 %v2302, %v2470
        %v2519 = vadd.f32 %v2303, %v2473
        %v2520 = vadd.f32 %v2304, %v2478
        %v2521 = vadd.f32 %v2305, %v2481
        %v2522 = vadd.f32 %v2306, %v2486
        %v2523 = vadd.f32 %v2307, %v2489
        %s2524 = scalar_lea.vmem %s3, 48
        %v2525 = vld [vmem:[%s2524] sm:$0xf]
        %v2526 = vld [vmem:[%s2524 + $0x4] sm:$0xf]
        %v2529 = vunpack.c.l.b16 %v275
        %v2530 = vunpack.c.l.b16 %v276
        %v2531 = vpack.c.b16 %v2530, %v2529
        %v2534 = vunpack.c.l.b16 %v2525
        %v2535 = vunpack.c.l.b16 %v2526
        %v2536 = vpack.c.b16 %v2535, %v2534
        %v2539 = vsel %vm728, %v2531, 0
        %2541 = vmatprep.subr.bf16.mxu0 0
        %2542 = vmatpush1.bf16.msra.mxu0 %v2536
        %2543 = vmatprep.subr.bf16.mxu0 0
        %2544 = vmatpush1.bf16.msra.mxu0 0
        %2545 = vmatprep.subr.bf16.mxu0 0
        %2546 = vmatpush1.bf16.msra.mxu0 0
        %2547 = vmatprep.subr.bf16.mxu0 0
        %2548 = vmatpush1.bf16.msra.mxu0 0
        %2549 = vmatprep.subr.bf16.mxu0 0
        %2550 = vmatpush1.bf16.msra.mxu0 0
        %2551 = vmatprep.subr.bf16.mxu0 0
        %2552 = vmatpush1.bf16.msra.mxu0 0
        %2553 = vmatprep.subr.bf16.mxu0 0
        %2554 = vmatpush1.bf16.msra.mxu0 0
        %2555 = vmatprep.subr.bf16.mxu0 0
        %2556 = vmatpush1.bf16.msra.mxu0 0
        %2557 = vmatprep.subr.bf16.mxu0 0
        %2558 = vmatpush1.bf16.msra.mxu0 0
        %2559 = vmatprep.subr.bf16.mxu0 0
        %2560 = vmatpush1.bf16.msra.mxu0 0
        %2561 = vmatprep.subr.bf16.mxu0 0
        %2562 = vmatpush1.bf16.msra.mxu0 0
        %2563 = vmatprep.subr.bf16.mxu0 0
        %2564 = vmatpush1.bf16.msra.mxu0 0
        %2565 = vmatprep.subr.bf16.mxu0 0
        %2566 = vmatpush1.bf16.msra.mxu0 0
        %2567 = vmatprep.subr.bf16.mxu0 0
        %2568 = vmatpush1.bf16.msra.mxu0 0
        %2569 = vmatprep.subr.bf16.mxu0 0
        %2570 = vmatpush1.bf16.msra.mxu0 0
        %2571 = vmatprep.subr.bf16.mxu0 0
        %2572 = vmatpush1.bf16.msra.mxu0 0
        %2573 = vmatprep.mubr.bf16.mxu0 0
        %2574 = vmatmul.mubr.bf16.gmra.mrb[0].mxu0 %v1265
        %v2575 = vpop.f32.mrb[0].mxu0
        %v2576 = vadd.f32 0.0, %v2575
        %v2577 = vpop.f32.mrb[0].mxu0
        %v2578 = vpop.f32.mrb[0].mxu0
        %v2579 = vadd.f32 0.0, %v2578
        %v2580 = vpop.f32.mrb[0].mxu0
        %2581 = vmatprep.mubr.bf16.mxu0 0
        %2582 = vmatmul.mubr.bf16.gmra.mrb[0].mxu0 %v1268
        %v2583 = vpop.f32.mrb[0].mxu0
        %v2584 = vadd.f32 0.0, %v2583
        %v2585 = vpop.f32.mrb[0].mxu0
        %v2586 = vpop.f32.mrb[0].mxu0
        %v2587 = vadd.f32 0.0, %v2586
        %v2588 = vpop.f32.mrb[0].mxu0
        %2589 = vmatprep.mubr.bf16.mxu0 0
        %2590 = vmatmul.mubr.bf16.gmra.mrb[0].mxu0 %v1271
        %v2591 = vpop.f32.mrb[0].mxu0
        %v2592 = vadd.f32 0.0, %v2591
        %v2593 = vpop.f32.mrb[0].mxu0
        %v2594 = vpop.f32.mrb[0].mxu0
        %v2595 = vadd.f32 0.0, %v2594
        %v2596 = vpop.f32.mrb[0].mxu0
        %2597 = vmatprep.mubr.bf16.mxu0 0
        %2598 = vmatmul.mubr.bf16.gmra.mrb[0].mxu0 %v1274
        %v2599 = vpop.f32.mrb[0].mxu0
        %v2600 = vadd.f32 0.0, %v2599
        %v2601 = vpop.f32.mrb[0].mxu0
        %v2602 = vpop.f32.mrb[0].mxu0
        %v2603 = vadd.f32 0.0, %v2602
        %v2604 = vpop.f32.mrb[0].mxu0
        %2605 = vmatprep.mubr.bf16.mxu0 0
        %2606 = vmatmul.mubr.bf16.gmra.mrb[0].mxu0 %v1277
        %v2607 = vpop.f32.mrb[0].mxu0
        %v2608 = vadd.f32 0.0, %v2607
        %v2609 = vpop.f32.mrb[0].mxu0
        %v2610 = vpop.f32.mrb[0].mxu0
        %v2611 = vadd.f32 0.0, %v2610
        %v2612 = vpop.f32.mrb[0].mxu0
        %2613 = vmatprep.mubr.bf16.mxu0 0
        %2614 = vmatmul.mubr.bf16.gmra.mrb[0].mxu0 %v1280
        %v2615 = vpop.f32.mrb[0].mxu0
        %v2616 = vadd.f32 0.0, %v2615
        %v2617 = vpop.f32.mrb[0].mxu0
        %v2618 = vpop.f32.mrb[0].mxu0
        %v2619 = vadd.f32 0.0, %v2618
        %v2620 = vpop.f32.mrb[0].mxu0
        %2621 = vmatprep.mubr.bf16.mxu0 0
        %2622 = vmatmul.mubr.bf16.gmra.mrb[0].mxu0 %v1283
        %v2623 = vpop.f32.mrb[0].mxu0
        %v2624 = vadd.f32 0.0, %v2623
        %v2625 = vpop.f32.mrb[0].mxu0
        %v2626 = vpop.f32.mrb[0].mxu0
        %v2627 = vadd.f32 0.0, %v2626
        %v2628 = vpop.f32.mrb[0].mxu0
        %2629 = vmatprep.mubr.bf16.mxu0 0
        %2630 = vmatmul.mubr.bf16.gmra.mrb[0].mxu0 %v1286
        %v2631 = vpop.f32.mrb[0].mxu0
        %v2632 = vadd.f32 0.0, %v2631
        %v2633 = vpop.f32.mrb[0].mxu0
        %v2634 = vpop.f32.mrb[0].mxu0
        %v2635 = vadd.f32 0.0, %v2634
        %v2636 = vpop.f32.mrb[0].mxu0
        %2637 = vmatprep.mubr.bf16.mxu0 0
        %2638 = vmatmul.mubr.bf16.gmra.mrb[0].mxu0 %v1289
        %v2639 = vpop.f32.mrb[0].mxu0
        %v2640 = vadd.f32 0.0, %v2639
        %v2641 = vpop.f32.mrb[0].mxu0
        %v2642 = vpop.f32.mrb[0].mxu0
        %v2643 = vadd.f32 0.0, %v2642
        %v2644 = vpop.f32.mrb[0].mxu0
        %2645 = vmatprep.mubr.bf16.mxu0 0
        %2646 = vmatmul.mubr.bf16.gmra.mrb[0].mxu0 %v1292
        %v2647 = vpop.f32.mrb[0].mxu0
        %v2648 = vadd.f32 0.0, %v2647
        %v2649 = vpop.f32.mrb[0].mxu0
        %v2650 = vpop.f32.mrb[0].mxu0
        %v2651 = vadd.f32 0.0, %v2650
        %v2652 = vpop.f32.mrb[0].mxu0
        %2653 = vmatprep.mubr.bf16.mxu0 0
        %2654 = vmatmul.mubr.bf16.gmra.mrb[0].mxu0 %v1295
        %v2655 = vpop.f32.mrb[0].mxu0
        %v2656 = vadd.f32 0.0, %v2655
        %v2657 = vpop.f32.mrb[0].mxu0
        %v2658 = vpop.f32.mrb[0].mxu0
        %v2659 = vadd.f32 0.0, %v2658
        %v2660 = vpop.f32.mrb[0].mxu0
        %2661 = vmatprep.mubr.bf16.mxu0 0
        %2662 = vmatmul.mubr.bf16.gmra.mrb[0].mxu0 %v1298
        %v2663 = vpop.f32.mrb[0].mxu0
        %v2664 = vadd.f32 0.0, %v2663
        %v2665 = vpop.f32.mrb[0].mxu0
        %v2666 = vpop.f32.mrb[0].mxu0
        %v2667 = vadd.f32 0.0, %v2666
        %v2668 = vpop.f32.mrb[0].mxu0
        %2669 = vmatprep.mubr.bf16.mxu0 0
        %2670 = vmatmul.mubr.bf16.gmra.mrb[0].mxu0 %v1301
        %v2671 = vpop.f32.mrb[0].mxu0
        %v2672 = vadd.f32 0.0, %v2671
        %v2673 = vpop.f32.mrb[0].mxu0
        %v2674 = vpop.f32.mrb[0].mxu0
        %v2675 = vadd.f32 0.0, %v2674
        %v2676 = vpop.f32.mrb[0].mxu0
        %2677 = vmatprep.mubr.bf16.mxu0 0
        %2678 = vmatmul.mubr.bf16.gmra.mrb[0].mxu0 %v1304
        %v2679 = vpop.f32.mrb[0].mxu0
        %v2680 = vadd.f32 0.0, %v2679
        %v2681 = vpop.f32.mrb[0].mxu0
        %v2682 = vpop.f32.mrb[0].mxu0
        %v2683 = vadd.f32 0.0, %v2682
        %v2684 = vpop.f32.mrb[0].mxu0
        %2685 = vmatprep.mubr.bf16.mxu0 0
        %2686 = vmatmul.mubr.bf16.gmra.mrb[0].mxu0 %v1911
        %v2687 = vpop.f32.mrb[0].mxu0
        %v2688 = vadd.f32 0.0, %v2687
        %v2689 = vpop.f32.mrb[0].mxu0
        %v2690 = vpop.f32.mrb[0].mxu0
        %v2691 = vadd.f32 0.0, %v2690
        %v2692 = vpop.f32.mrb[0].mxu0
        %2693 = vmatprep.mubr.bf16.mxu0 0
        %2694 = vmatmul.mubr.bf16.gmra.mrb[0].mxu0 %v2539
        %v2695 = vpop.f32.mrb[0].mxu0
        %v2696 = vadd.f32 0.0, %v2695
        %v2697 = vpop.f32.mrb[0].mxu0
        %v2698 = vpop.f32.mrb[0].mxu0
        %v2699 = vadd.f32 0.0, %v2698
        %v2700 = vpop.f32.mrb[0].mxu0
        %2701 = vdwg.mxu0
        %v2702 = vadd.f32 %v2492, %v2576
        %v2703 = vadd.f32 %v2493, %v2579
        %v2704 = vadd.f32 %v2494, %v2584
        %v2705 = vadd.f32 %v2495, %v2587
        %v2706 = vadd.f32 %v2496, %v2592
        %v2707 = vadd.f32 %v2497, %v2595
        %v2708 = vadd.f32 %v2498, %v2600
        %v2709 = vadd.f32 %v2499, %v2603
        %v2710 = vadd.f32 %v2500, %v2608
        %v2711 = vadd.f32 %v2501, %v2611
        %v2712 = vadd.f32 %v2502, %v2616
        %v2713 = vadd.f32 %v2503, %v2619
        %v2714 = vadd.f32 %v2504, %v2624
        %v2715 = vadd.f32 %v2505, %v2627
        %v2716 = vadd.f32 %v2506, %v2632
        %v2717 = vadd.f32 %v2507, %v2635
        %v2718 = vadd.f32 %v2508, %v2640
        %v2719 = vadd.f32 %v2509, %v2643
        %v2720 = vadd.f32 %v2510, %v2648
        %v2721 = vadd.f32 %v2511, %v2651
        %v2722 = vadd.f32 %v2512, %v2656
        %v2723 = vadd.f32 %v2513, %v2659
        %v2724 = vadd.f32 %v2514, %v2664
        %v2725 = vadd.f32 %v2515, %v2667
        %v2726 = vadd.f32 %v2516, %v2672
        %v2727 = vadd.f32 %v2517, %v2675
        %v2728 = vadd.f32 %v2518, %v2680
        %v2729 = vadd.f32 %v2519, %v2683
        %v2730 = vadd.f32 %v2520, %v2688
        %v2731 = vadd.f32 %v2521, %v2691
        %v2732 = vadd.f32 %v2522, %v2696
        %v2733 = vadd.f32 %v2523, %v2699
        %v2735 = vshrl.u32 %v275, 16
        %v2737 = vrot.slane %v2735, 4
        %v2738 = vshll.u32 %v275, 16
        %v2740 = vrot.slane %v2738, 5
        %v2741 = vor.u32 %v2737, %v2740
        %v2742 = vrot.slane %v2741, 4
        %v2744 = vshll.u32 %v276, 16
        %v2746 = vrot.slane %v2744, 5
        %v2747 = vsel %vm280, %v2742, %v2746
        %v2748 = vshrl.u32 %v276, 16
        %v2750 = vrot.slane %v2748, 4
        %v2751 = vor.u32 %v2750, %v2746
        %v2752 = vrot.slane %v2751, 4
        %v2754 = vshll.u32 %v277, 16
        %v2756 = vrot.slane %v2754, 5
        %v2757 = vsel %vm280, %v2752, %v2756
        %s2758 = scalar_lea.vmem %s3, 56
        %v2759 = vld [vmem:[%s2758] sm:$0xf]
        %v2760 = vld [vmem:[%s2758 + $0x4] sm:$0xf]
        %v2761 = vunpack.c.l.b16 %v2747
        %v2762 = vunpack.c.l.b16 %v2757
        %v2763 = vpack.c.b16 %v2762, %v2761
        %v2766 = vunpack.c.l.b16 %v2759
        %v2767 = vunpack.c.l.b16 %v2760
        %v2768 = vpack.c.b16 %v2767, %v2766
        %v2771 = vsel %vm728, %v2763, 0
        %2773 = vmatprep.subr.bf16.mxu0 0
        %2774 = vmatpush1.bf16.msra.mxu0 %v2768
        %2775 = vmatprep.subr.bf16.mxu0 0
        %2776 = vmatpush1.bf16.msra.mxu0 0
        %2777 = vmatprep.subr.bf16.mxu0 0
        %2778 = vmatpush1.bf16.msra.mxu0 0
        %2779 = vmatprep.subr.bf16.mxu0 0
        %2780 = vmatpush1.bf16.msra.mxu0 0
        %2781 = vmatprep.subr.bf16.mxu0 0
        %2782 = vmatpush1.bf16.msra.mxu0 0
        %2783 = vmatprep.subr.bf16.mxu0 0
        %2784 = vmatpush1.bf16.msra.mxu0 0
        %2785 = vmatprep.subr.bf16.mxu0 0
        %2786 = vmatpush1.bf16.msra.mxu0 0
        %2787 = vmatprep.subr.bf16.mxu0 0
        %2788 = vmatpush1.bf16.msra.mxu0 0
        %2789 = vmatprep.subr.bf16.mxu0 0
        %2790 = vmatpush1.bf16.msra.mxu0 0
        %2791 = vmatprep.subr.bf16.mxu0 0
        %2792 = vmatpush1.bf16.msra.mxu0 0
        %2793 = vmatprep.subr.bf16.mxu0 0
        %2794 = vmatpush1.bf16.msra.mxu0 0
        %2795 = vmatprep.subr.bf16.mxu0 0
        %2796 = vmatpush1.bf16.msra.mxu0 0
        %2797 = vmatprep.subr.bf16.mxu0 0
        %2798 = vmatpush1.bf16.msra.mxu0 0
        %2799 = vmatprep.subr.bf16.mxu0 0
        %2800 = vmatpush1.bf16.msra.mxu0 0
        %2801 = vmatprep.subr.bf16.mxu0 0
        %2802 = vmatpush1.bf16.msra.mxu0 0
        %2803 = vmatprep.subr.bf16.mxu0 0
        %2804 = vmatpush1.bf16.msra.mxu0 0
        %2805 = vmatprep.mubr.bf16.mxu0 0
        %2806 = vmatmul.mubr.bf16.gmra.mrb[0].mxu0 %v733
        %v2807 = vpop.f32.mrb[0].mxu0
        %v2808 = vadd.f32 0.0, %v2807
        %v2809 = vpop.f32.mrb[0].mxu0
        %v2810 = vpop.f32.mrb[0].mxu0
        %v2811 = vadd.f32 0.0, %v2810
        %v2812 = vpop.f32.mrb[0].mxu0
        %2813 = vmatprep.mubr.bf16.mxu0 0
        %2814 = vmatmul.mubr.bf16.gmra.mrb[0].mxu0 %v736
        %v2815 = vpop.f32.mrb[0].mxu0
        %v2816 = vadd.f32 0.0, %v2815
        %v2817 = vpop.f32.mrb[0].mxu0
        %v2818 = vpop.f32.mrb[0].mxu0
        %v2819 = vadd.f32 0.0, %v2818
        %v2820 = vpop.f32.mrb[0].mxu0
        %2821 = vmatprep.mubr.bf16.mxu0 0
        %2822 = vmatmul.mubr.bf16.gmra.mrb[0].mxu0 %v739
        %v2823 = vpop.f32.mrb[0].mxu0
        %v2824 = vadd.f32 0.0, %v2823
        %v2825 = vpop.f32.mrb[0].mxu0
        %v2826 = vpop.f32.mrb[0].mxu0
        %v2827 = vadd.f32 0.0, %v2826
        %v2828 = vpop.f32.mrb[0].mxu0
        %2829 = vmatprep.mubr.bf16.mxu0 0
        %2830 = vmatmul.mubr.bf16.gmra.mrb[0].mxu0 %v742
        %v2831 = vpop.f32.mrb[0].mxu0
        %v2832 = vadd.f32 0.0, %v2831
        %v2833 = vpop.f32.mrb[0].mxu0
        %v2834 = vpop.f32.mrb[0].mxu0
        %v2835 = vadd.f32 0.0, %v2834
        %v2836 = vpop.f32.mrb[0].mxu0
        %2837 = vmatprep.mubr.bf16.mxu0 0
        %2838 = vmatmul.mubr.bf16.gmra.mrb[0].mxu0 %v745
        %v2839 = vpop.f32.mrb[0].mxu0
        %v2840 = vadd.f32 0.0, %v2839
        %v2841 = vpop.f32.mrb[0].mxu0
        %v2842 = vpop.f32.mrb[0].mxu0
        %v2843 = vadd.f32 0.0, %v2842
        %v2844 = vpop.f32.mrb[0].mxu0
        %2845 = vmatprep.mubr.bf16.mxu0 0
        %2846 = vmatmul.mubr.bf16.gmra.mrb[0].mxu0 %v748
        %v2847 = vpop.f32.mrb[0].mxu0
        %v2848 = vadd.f32 0.0, %v2847
        %v2849 = vpop.f32.mrb[0].mxu0
        %v2850 = vpop.f32.mrb[0].mxu0
        %v2851 = vadd.f32 0.0, %v2850
        %v2852 = vpop.f32.mrb[0].mxu0
        %2853 = vmatprep.mubr.bf16.mxu0 0
        %2854 = vmatmul.mubr.bf16.gmra.mrb[0].mxu0 %v751
        %v2855 = vpop.f32.mrb[0].mxu0
        %v2856 = vadd.f32 0.0, %v2855
        %v2857 = vpop.f32.mrb[0].mxu0
        %v2858 = vpop.f32.mrb[0].mxu0
        %v2859 = vadd.f32 0.0, %v2858
        %v2860 = vpop.f32.mrb[0].mxu0
        %2861 = vmatprep.mubr.bf16.mxu0 0
        %2862 = vmatmul.mubr.bf16.gmra.mrb[0].mxu0 %v754
        %v2863 = vpop.f32.mrb[0].mxu0
        %v2864 = vadd.f32 0.0, %v2863
        %v2865 = vpop.f32.mrb[0].mxu0
        %v2866 = vpop.f32.mrb[0].mxu0
        %v2867 = vadd.f32 0.0, %v2866
        %v2868 = vpop.f32.mrb[0].mxu0
        %2869 = vmatprep.mubr.bf16.mxu0 0
        %2870 = vmatmul.mubr.bf16.gmra.mrb[0].mxu0 %v757
        %v2871 = vpop.f32.mrb[0].mxu0
        %v2872 = vadd.f32 0.0, %v2871
        %v2873 = vpop.f32.mrb[0].mxu0
        %v2874 = vpop.f32.mrb[0].mxu0
        %v2875 = vadd.f32 0.0, %v2874
        %v2876 = vpop.f32.mrb[0].mxu0
        %2877 = vmatprep.mubr.bf16.mxu0 0
        %2878 = vmatmul.mubr.bf16.gmra.mrb[0].mxu0 %v760
        %v2879 = vpop.f32.mrb[0].mxu0
        %v2880 = vadd.f32 0.0, %v2879
        %v2881 = vpop.f32.mrb[0].mxu0
        %v2882 = vpop.f32.mrb[0].mxu0
        %v2883 = vadd.f32 0.0, %v2882
        %v2884 = vpop.f32.mrb[0].mxu0
        %2885 = vmatprep.mubr.bf16.mxu0 0
        %2886 = vmatmul.mubr.bf16.gmra.mrb[0].mxu0 %v763
        %v2887 = vpop.f32.mrb[0].mxu0
        %v2888 = vadd.f32 0.0, %v2887
        %v2889 = vpop.f32.mrb[0].mxu0
        %v2890 = vpop.f32.mrb[0].mxu0
        %v2891 = vadd.f32 0.0, %v2890
        %v2892 = vpop.f32.mrb[0].mxu0
        %2893 = vmatprep.mubr.bf16.mxu0 0
        %2894 = vmatmul.mubr.bf16.gmra.mrb[0].mxu0 %v766
        %v2895 = vpop.f32.mrb[0].mxu0
        %v2896 = vadd.f32 0.0, %v2895
        %v2897 = vpop.f32.mrb[0].mxu0
        %v2898 = vpop.f32.mrb[0].mxu0
        %v2899 = vadd.f32 0.0, %v2898
        %v2900 = vpop.f32.mrb[0].mxu0
        %2901 = vmatprep.mubr.bf16.mxu0 0
        %2902 = vmatmul.mubr.bf16.gmra.mrb[0].mxu0 %v769
        %v2903 = vpop.f32.mrb[0].mxu0
        %v2904 = vadd.f32 0.0, %v2903
        %v2905 = vpop.f32.mrb[0].mxu0
        %v2906 = vpop.f32.mrb[0].mxu0
        %v2907 = vadd.f32 0.0, %v2906
        %v2908 = vpop.f32.mrb[0].mxu0
        %2909 = vmatprep.mubr.bf16.mxu0 0
        %2910 = vmatmul.mubr.bf16.gmra.mrb[0].mxu0 %v772
        %v2911 = vpop.f32.mrb[0].mxu0
        %v2912 = vadd.f32 0.0, %v2911
        %v2913 = vpop.f32.mrb[0].mxu0
        %v2914 = vpop.f32.mrb[0].mxu0
        %v2915 = vadd.f32 0.0, %v2914
        %v2916 = vpop.f32.mrb[0].mxu0
        %2917 = vmatprep.mubr.bf16.mxu0 0
        %2918 = vmatmul.mubr.bf16.gmra.mrb[0].mxu0 %v775
        %v2919 = vpop.f32.mrb[0].mxu0
        %v2920 = vadd.f32 0.0, %v2919
        %v2921 = vpop.f32.mrb[0].mxu0
        %v2922 = vpop.f32.mrb[0].mxu0
        %v2923 = vadd.f32 0.0, %v2922
        %v2924 = vpop.f32.mrb[0].mxu0
        %2925 = vmatprep.mubr.bf16.mxu0 0
        %2926 = vmatmul.mubr.bf16.gmra.mrb[0].mxu0 %v2771
        %v2927 = vpop.f32.mrb[0].mxu0
        %v2928 = vadd.f32 0.0, %v2927
        %v2929 = vpop.f32.mrb[0].mxu0
        %v2930 = vpop.f32.mrb[0].mxu0
        %v2931 = vadd.f32 0.0, %v2930
        %v2932 = vpop.f32.mrb[0].mxu0
        %2933 = vdwg.mxu0
        %v2934 = vadd.f32 %v2702, %v2808
        %v2935 = vadd.f32 %v2703, %v2811
        %v2936 = vadd.f32 %v2704, %v2816
        %v2937 = vadd.f32 %v2705, %v2819
        %v2938 = vadd.f32 %v2706, %v2824
        %v2939 = vadd.f32 %v2707, %v2827
        %v2940 = vadd.f32 %v2708, %v2832
        %v2941 = vadd.f32 %v2709, %v2835
        %v2942 = vadd.f32 %v2710, %v2840
        %v2943 = vadd.f32 %v2711, %v2843
        %v2944 = vadd.f32 %v2712, %v2848
        %v2945 = vadd.f32 %v2713, %v2851
        %v2946 = vadd.f32 %v2714, %v2856
        %v2947 = vadd.f32 %v2715, %v2859
        %v2948 = vadd.f32 %v2716, %v2864
        %v2949 = vadd.f32 %v2717, %v2867
        %v2950 = vadd.f32 %v2718, %v2872
        %v2951 = vadd.f32 %v2719, %v2875
        %v2952 = vadd.f32 %v2720, %v2880
        %v2953 = vadd.f32 %v2721, %v2883
        %v2954 = vadd.f32 %v2722, %v2888
        %v2955 = vadd.f32 %v2723, %v2891
        %v2956 = vadd.f32 %v2724, %v2896
        %v2957 = vadd.f32 %v2725, %v2899
        %v2958 = vadd.f32 %v2726, %v2904
        %v2959 = vadd.f32 %v2727, %v2907
        %v2960 = vadd.f32 %v2728, %v2912
        %v2961 = vadd.f32 %v2729, %v2915
        %v2962 = vadd.f32 %v2730, %v2920
        %v2963 = vadd.f32 %v2731, %v2923
        %v2964 = vadd.f32 %v2732, %v2928
        %v2965 = vadd.f32 %v2733, %v2931
        %v2967 = vrot.slane %v275, 5
        %v2968 = vrot.slane %v2967, 4
        %v2969 = vrot.slane %v276, 5
        %v2970 = vsel %vm1485, %v2968, %v2969
        %v2971 = vrot.slane %v2969, 4
        %v2972 = vrot.slane %v277, 5
        %v2973 = vsel %vm1485, %v2971, %v2972
        %s2974 = scalar_lea.vmem %s3, 64
        %v2975 = vld [vmem:[%s2974] sm:$0xf]
        %v2976 = vld [vmem:[%s2974 + $0x4] sm:$0xf]
        %v2977 = vunpack.c.l.b16 %v2970
        %v2978 = vunpack.c.l.b16 %v2973
        %v2979 = vpack.c.b16 %v2978, %v2977
        %v2982 = vunpack.c.l.b16 %v2975
        %v2983 = vunpack.c.l.b16 %v2976
        %v2984 = vpack.c.b16 %v2983, %v2982
        %v2987 = vsel %vm728, %v2979, 0
        %2989 = vmatprep.subr.bf16.mxu0 0
        %2990 = vmatpush1.bf16.msra.mxu0 %v2984
        %2991 = vmatprep.subr.bf16.mxu0 0
        %2992 = vmatpush1.bf16.msra.mxu0 0
        %2993 = vmatprep.subr.bf16.mxu0 0
        %2994 = vmatpush1.bf16.msra.mxu0 0
        %2995 = vmatprep.subr.bf16.mxu0 0
        %2996 = vmatpush1.bf16.msra.mxu0 0
        %2997 = vmatprep.subr.bf16.mxu0 0
        %2998 = vmatpush1.bf16.msra.mxu0 0
        %2999 = vmatprep.subr.bf16.mxu0 0
        %3000 = vmatpush1.bf16.msra.mxu0 0
        %3001 = vmatprep.subr.bf16.mxu0 0
        %3002 = vmatpush1.bf16.msra.mxu0 0
        %3003 = vmatprep.subr.bf16.mxu0 0
        %3004 = vmatpush1.bf16.msra.mxu0 0
        %3005 = vmatprep.subr.bf16.mxu0 0
        %3006 = vmatpush1.bf16.msra.mxu0 0
        %3007 = vmatprep.subr.bf16.mxu0 0
        %3008 = vmatpush1.bf16.msra.mxu0 0
        %3009 = vmatprep.subr.bf16.mxu0 0
        %3010 = vmatpush1.bf16.msra.mxu0 0
        %3011 = vmatprep.subr.bf16.mxu0 0
        %3012 = vmatpush1.bf16.msra.mxu0 0
        %3013 = vmatprep.subr.bf16.mxu0 0
        %3014 = vmatpush1.bf16.msra.mxu0 0
        %3015 = vmatprep.subr.bf16.mxu0 0
        %3016 = vmatpush1.bf16.msra.mxu0 0
        %3017 = vmatprep.subr.bf16.mxu0 0
        %3018 = vmatpush1.bf16.msra.mxu0 0
        %3019 = vmatprep.subr.bf16.mxu0 0
        %3020 = vmatpush1.bf16.msra.mxu0 0
        %3021 = vmatprep.mubr.bf16.mxu0 0
        %3022 = vmatmul.mubr.bf16.gmra.mrb[0].mxu0 %v1662
        %v3023 = vpop.f32.mrb[0].mxu0
        %v3024 = vadd.f32 0.0, %v3023
        %v3025 = vpop.f32.mrb[0].mxu0
        %v3026 = vpop.f32.mrb[0].mxu0
        %v3027 = vadd.f32 0.0, %v3026
        %v3028 = vpop.f32.mrb[0].mxu0
        %3029 = vmatprep.mubr.bf16.mxu0 0
        %3030 = vmatmul.mubr.bf16.gmra.mrb[0].mxu0 %v1665
        %v3031 = vpop.f32.mrb[0].mxu0
        %v3032 = vadd.f32 0.0, %v3031
        %v3033 = vpop.f32.mrb[0].mxu0
        %v3034 = vpop.f32.mrb[0].mxu0
        %v3035 = vadd.f32 0.0, %v3034
        %v3036 = vpop.f32.mrb[0].mxu0
        %3037 = vmatprep.mubr.bf16.mxu0 0
        %3038 = vmatmul.mubr.bf16.gmra.mrb[0].mxu0 %v1668
        %v3039 = vpop.f32.mrb[0].mxu0
        %v3040 = vadd.f32 0.0, %v3039
        %v3041 = vpop.f32.mrb[0].mxu0
        %v3042 = vpop.f32.mrb[0].mxu0
        %v3043 = vadd.f32 0.0, %v3042
        %v3044 = vpop.f32.mrb[0].mxu0
        %3045 = vmatprep.mubr.bf16.mxu0 0
        %3046 = vmatmul.mubr.bf16.gmra.mrb[0].mxu0 %v1671
        %v3047 = vpop.f32.mrb[0].mxu0
        %v3048 = vadd.f32 0.0, %v3047
        %v3049 = vpop.f32.mrb[0].mxu0
        %v3050 = vpop.f32.mrb[0].mxu0
        %v3051 = vadd.f32 0.0, %v3050
        %v3052 = vpop.f32.mrb[0].mxu0
        %3053 = vmatprep.mubr.bf16.mxu0 0
        %3054 = vmatmul.mubr.bf16.gmra.mrb[0].mxu0 %v1674
        %v3055 = vpop.f32.mrb[0].mxu0
        %v3056 = vadd.f32 0.0, %v3055
        %v3057 = vpop.f32.mrb[0].mxu0
        %v3058 = vpop.f32.mrb[0].mxu0
        %v3059 = vadd.f32 0.0, %v3058
        %v3060 = vpop.f32.mrb[0].mxu0
        %3061 = vmatprep.mubr.bf16.mxu0 0
        %3062 = vmatmul.mubr.bf16.gmra.mrb[0].mxu0 %v1677
        %v3063 = vpop.f32.mrb[0].mxu0
        %v3064 = vadd.f32 0.0, %v3063
        %v3065 = vpop.f32.mrb[0].mxu0
        %v3066 = vpop.f32.mrb[0].mxu0
        %v3067 = vadd.f32 0.0, %v3066
        %v3068 = vpop.f32.mrb[0].mxu0
        %3069 = vmatprep.mubr.bf16.mxu0 0
        %3070 = vmatmul.mubr.bf16.gmra.mrb[0].mxu0 %v1680
        %v3071 = vpop.f32.mrb[0].mxu0
        %v3072 = vadd.f32 0.0, %v3071
        %v3073 = vpop.f32.mrb[0].mxu0
        %v3074 = vpop.f32.mrb[0].mxu0
        %v3075 = vadd.f32 0.0, %v3074
        %v3076 = vpop.f32.mrb[0].mxu0
        %3077 = vmatprep.mubr.bf16.mxu0 0
        %3078 = vmatmul.mubr.bf16.gmra.mrb[0].mxu0 %v1683
        %v3079 = vpop.f32.mrb[0].mxu0
        %v3080 = vadd.f32 0.0, %v3079
        %v3081 = vpop.f32.mrb[0].mxu0
        %v3082 = vpop.f32.mrb[0].mxu0
        %v3083 = vadd.f32 0.0, %v3082
        %v3084 = vpop.f32.mrb[0].mxu0
        %3085 = vmatprep.mubr.bf16.mxu0 0
        %3086 = vmatmul.mubr.bf16.gmra.mrb[0].mxu0 %v1686
        %v3087 = vpop.f32.mrb[0].mxu0
        %v3088 = vadd.f32 0.0, %v3087
        %v3089 = vpop.f32.mrb[0].mxu0
        %v3090 = vpop.f32.mrb[0].mxu0
        %v3091 = vadd.f32 0.0, %v3090
        %v3092 = vpop.f32.mrb[0].mxu0
        %3093 = vmatprep.mubr.bf16.mxu0 0
        %3094 = vmatmul.mubr.bf16.gmra.mrb[0].mxu0 %v1689
        %v3095 = vpop.f32.mrb[0].mxu0
        %v3096 = vadd.f32 0.0, %v3095
        %v3097 = vpop.f32.mrb[0].mxu0
        %v3098 = vpop.f32.mrb[0].mxu0
        %v3099 = vadd.f32 0.0, %v3098
        %v3100 = vpop.f32.mrb[0].mxu0
        %3101 = vmatprep.mubr.bf16.mxu0 0
        %3102 = vmatmul.mubr.bf16.gmra.mrb[0].mxu0 %v1692
        %v3103 = vpop.f32.mrb[0].mxu0
        %v3104 = vadd.f32 0.0, %v3103
        %v3105 = vpop.f32.mrb[0].mxu0
        %v3106 = vpop.f32.mrb[0].mxu0
        %v3107 = vadd.f32 0.0, %v3106
        %v3108 = vpop.f32.mrb[0].mxu0
        %3109 = vmatprep.mubr.bf16.mxu0 0
        %3110 = vmatmul.mubr.bf16.gmra.mrb[0].mxu0 %v1695
        %v3111 = vpop.f32.mrb[0].mxu0
        %v3112 = vadd.f32 0.0, %v3111
        %v3113 = vpop.f32.mrb[0].mxu0
        %v3114 = vpop.f32.mrb[0].mxu0
        %v3115 = vadd.f32 0.0, %v3114
        %v3116 = vpop.f32.mrb[0].mxu0
        %3117 = vmatprep.mubr.bf16.mxu0 0
        %3118 = vmatmul.mubr.bf16.gmra.mrb[0].mxu0 %v1698
        %v3119 = vpop.f32.mrb[0].mxu0
        %v3120 = vadd.f32 0.0, %v3119
        %v3121 = vpop.f32.mrb[0].mxu0
        %v3122 = vpop.f32.mrb[0].mxu0
        %v3123 = vadd.f32 0.0, %v3122
        %v3124 = vpop.f32.mrb[0].mxu0
        %3125 = vmatprep.mubr.bf16.mxu0 0
        %3126 = vmatmul.mubr.bf16.gmra.mrb[0].mxu0 %v1701
        %v3127 = vpop.f32.mrb[0].mxu0
        %v3128 = vadd.f32 0.0, %v3127
        %v3129 = vpop.f32.mrb[0].mxu0
        %v3130 = vpop.f32.mrb[0].mxu0
        %v3131 = vadd.f32 0.0, %v3130
        %v3132 = vpop.f32.mrb[0].mxu0
        %3133 = vmatprep.mubr.bf16.mxu0 0
        %3134 = vmatmul.mubr.bf16.gmra.mrb[0].mxu0 %v2329
        %v3135 = vpop.f32.mrb[0].mxu0
        %v3136 = vadd.f32 0.0, %v3135
        %v3137 = vpop.f32.mrb[0].mxu0
        %v3138 = vpop.f32.mrb[0].mxu0
        %v3139 = vadd.f32 0.0, %v3138
        %v3140 = vpop.f32.mrb[0].mxu0
        %3141 = vmatprep.mubr.bf16.mxu0 0
        %3142 = vmatmul.mubr.bf16.gmra.mrb[0].mxu0 %v2987
        %v3143 = vpop.f32.mrb[0].mxu0
        %v3144 = vadd.f32 0.0, %v3143
        %v3145 = vpop.f32.mrb[0].mxu0
        %v3146 = vpop.f32.mrb[0].mxu0
        %v3147 = vadd.f32 0.0, %v3146
        %v3148 = vpop.f32.mrb[0].mxu0
        %3149 = vdwg.mxu0
        %v3150 = vadd.f32 %v2934, %v3024
        %v3151 = vadd.f32 %v2935, %v3027
        %v3152 = vadd.f32 %v2936, %v3032
        %v3153 = vadd.f32 %v2937, %v3035
        %v3154 = vadd.f32 %v2938, %v3040
        %v3155 = vadd.f32 %v2939, %v3043
        %v3156 = vadd.f32 %v2940, %v3048
        %v3157 = vadd.f32 %v2941, %v3051
        %v3158 = vadd.f32 %v2942, %v3056
        %v3159 = vadd.f32 %v2943, %v3059
        %v3160 = vadd.f32 %v2944, %v3064
        %v3161 = vadd.f32 %v2945, %v3067
        %v3162 = vadd.f32 %v2946, %v3072
        %v3163 = vadd.f32 %v2947, %v3075
        %v3164 = vadd.f32 %v2948, %v3080
        %v3165 = vadd.f32 %v2949, %v3083
        %v3166 = vadd.f32 %v2950, %v3088
        %v3167 = vadd.f32 %v2951, %v3091
        %v3168 = vadd.f32 %v2952, %v3096
        %v3169 = vadd.f32 %v2953, %v3099
        %v3170 = vadd.f32 %v2954, %v3104
        %v3171 = vadd.f32 %v2955, %v3107
        %v3172 = vadd.f32 %v2956, %v3112
        %v3173 = vadd.f32 %v2957, %v3115
        %v3174 = vadd.f32 %v2958, %v3120
        %v3175 = vadd.f32 %v2959, %v3123
        %v3176 = vadd.f32 %v2960, %v3128
        %v3177 = vadd.f32 %v2961, %v3131
        %v3178 = vadd.f32 %v2962, %v3136
        %v3179 = vadd.f32 %v2963, %v3139
        %v3180 = vadd.f32 %v2964, %v3144
        %v3181 = vadd.f32 %v2965, %v3147
        %v3182 = vld [vmem:[%s4] sm:$0x1]
        %v3184 = vlaneseq
        %v3185 = vshrl.u32 %v3184, 7
        %v3186 = vsub.s32 0, %v3185
        %v3187 = vrot.slane %v3182, %v3186
        %v3189 = vadd.f32 %v3150, %v3187
        %v3190 = vadd.f32 %v3151, %v3187
        %v3191 = vadd.f32 %v3152, %v3187
        %v3192 = vadd.f32 %v3153, %v3187
        %v3193 = vadd.f32 %v3154, %v3187
        %v3194 = vadd.f32 %v3155, %v3187
        %v3195 = vadd.f32 %v3156, %v3187
        %v3196 = vadd.f32 %v3157, %v3187
        %v3197 = vadd.f32 %v3158, %v3187
        %v3198 = vadd.f32 %v3159, %v3187
        %v3199 = vadd.f32 %v3160, %v3187
        %v3200 = vadd.f32 %v3161, %v3187
        %v3201 = vadd.f32 %v3162, %v3187
        %v3202 = vadd.f32 %v3163, %v3187
        %v3203 = vadd.f32 %v3164, %v3187
        %v3204 = vadd.f32 %v3165, %v3187
        %v3205 = vadd.f32 %v3166, %v3187
        %v3206 = vadd.f32 %v3167, %v3187
        %v3207 = vadd.f32 %v3168, %v3187
        %v3208 = vadd.f32 %v3169, %v3187
        %v3209 = vadd.f32 %v3170, %v3187
        %v3210 = vadd.f32 %v3171, %v3187
        %v3211 = vadd.f32 %v3172, %v3187
        %v3212 = vadd.f32 %v3173, %v3187
        %v3213 = vadd.f32 %v3174, %v3187
        %v3214 = vadd.f32 %v3175, %v3187
        %v3215 = vadd.f32 %v3176, %v3187
        %v3216 = vadd.f32 %v3177, %v3187
        %v3217 = vadd.f32 %v3178, %v3187
        %v3218 = vadd.f32 %v3179, %v3187
        %v3219 = vadd.f32 %v3180, %v3187
        %v3220 = vadd.f32 %v3181, %v3187
        %v3221 = vmax.f32 %v3189, 0.0
        %v3222 = vmax.f32 %v3190, 0.0
        %v3223 = vmax.f32 %v3191, 0.0
        %v3224 = vmax.f32 %v3192, 0.0
        %v3225 = vmax.f32 %v3193, 0.0
        %v3226 = vmax.f32 %v3194, 0.0
        %v3227 = vmax.f32 %v3195, 0.0
        %v3228 = vmax.f32 %v3196, 0.0
        %v3229 = vmax.f32 %v3197, 0.0
        %v3230 = vmax.f32 %v3198, 0.0
        %v3231 = vmax.f32 %v3199, 0.0
        %v3232 = vmax.f32 %v3200, 0.0
        %v3233 = vmax.f32 %v3201, 0.0
        %v3234 = vmax.f32 %v3202, 0.0
        %v3235 = vmax.f32 %v3203, 0.0
        %v3236 = vmax.f32 %v3204, 0.0
        %v3237 = vmax.f32 %v3205, 0.0
        %v3238 = vmax.f32 %v3206, 0.0
        %v3239 = vmax.f32 %v3207, 0.0
        %v3240 = vmax.f32 %v3208, 0.0
        %v3241 = vmax.f32 %v3209, 0.0
        %v3242 = vmax.f32 %v3210, 0.0
        %v3243 = vmax.f32 %v3211, 0.0
        %v3244 = vmax.f32 %v3212, 0.0
        %v3245 = vmax.f32 %v3213, 0.0
        %v3246 = vmax.f32 %v3214, 0.0
        %v3247 = vmax.f32 %v3215, 0.0
        %v3248 = vmax.f32 %v3216, 0.0
        %v3249 = vmax.f32 %v3217, 0.0
        %v3250 = vmax.f32 %v3218, 0.0
        %v3251 = vmax.f32 %v3219, 0.0
        %v3252 = vmax.f32 %v3220, 0.0
        %3285 = vrot.lane.b32.xlu0 %v3221, 64
        %v3286 = vpop.permute.xlu0 %3285
        %3287 = vrot.lane.b32.xlu0 %v3222, 64
        %v3288 = vpop.permute.xlu0 %3287
        %3289 = vrot.lane.b32.xlu0 %v3223, 64
        %v3290 = vpop.permute.xlu0 %3289
        %3291 = vrot.lane.b32.xlu0 %v3224, 64
        %v3292 = vpop.permute.xlu0 %3291
        %3293 = vrot.lane.b32.xlu0 %v3225, 64
        %v3294 = vpop.permute.xlu0 %3293
        %3295 = vrot.lane.b32.xlu0 %v3226, 64
        %v3296 = vpop.permute.xlu0 %3295
        %3297 = vrot.lane.b32.xlu0 %v3227, 64
        %v3298 = vpop.permute.xlu0 %3297
        %3299 = vrot.lane.b32.xlu0 %v3228, 64
        %v3300 = vpop.permute.xlu0 %3299
        %3301 = vrot.lane.b32.xlu0 %v3229, 64
        %v3302 = vpop.permute.xlu0 %3301
        %3303 = vrot.lane.b32.xlu0 %v3230, 64
        %v3304 = vpop.permute.xlu0 %3303
        %3305 = vrot.lane.b32.xlu0 %v3231, 64
        %v3306 = vpop.permute.xlu0 %3305
        %3307 = vrot.lane.b32.xlu0 %v3232, 64
        %v3308 = vpop.permute.xlu0 %3307
        %3309 = vrot.lane.b32.xlu0 %v3233, 64
        %v3310 = vpop.permute.xlu0 %3309
        %3311 = vrot.lane.b32.xlu0 %v3234, 64
        %v3312 = vpop.permute.xlu0 %3311
        %3313 = vrot.lane.b32.xlu0 %v3235, 64
        %v3314 = vpop.permute.xlu0 %3313
        %3315 = vrot.lane.b32.xlu0 %v3236, 64
        %v3316 = vpop.permute.xlu0 %3315
        %3317 = vrot.lane.b32.xlu0 %v3237, 64
        %v3318 = vpop.permute.xlu0 %3317
        %3319 = vrot.lane.b32.xlu0 %v3238, 64
        %v3320 = vpop.permute.xlu0 %3319
        %3321 = vrot.lane.b32.xlu0 %v3239, 64
        %v3322 = vpop.permute.xlu0 %3321
        %3323 = vrot.lane.b32.xlu0 %v3240, 64
        %v3324 = vpop.permute.xlu0 %3323
        %3325 = vrot.lane.b32.xlu0 %v3241, 64
        %v3326 = vpop.permute.xlu0 %3325
        %3327 = vrot.lane.b32.xlu0 %v3242, 64
        %v3328 = vpop.permute.xlu0 %3327
        %3329 = vrot.lane.b32.xlu0 %v3243, 64
        %v3330 = vpop.permute.xlu0 %3329
        %3331 = vrot.lane.b32.xlu0 %v3244, 64
        %v3332 = vpop.permute.xlu0 %3331
        %3333 = vrot.lane.b32.xlu0 %v3245, 64
        %v3334 = vpop.permute.xlu0 %3333
        %3335 = vrot.lane.b32.xlu0 %v3246, 64
        %v3336 = vpop.permute.xlu0 %3335
        %3337 = vrot.lane.b32.xlu0 %v3247, 64
        %v3338 = vpop.permute.xlu0 %3337
        %3339 = vrot.lane.b32.xlu0 %v3248, 64
        %v3340 = vpop.permute.xlu0 %3339
        %3341 = vrot.lane.b32.xlu0 %v3249, 64
        %v3342 = vpop.permute.xlu0 %3341
        %3343 = vrot.lane.b32.xlu0 %v3250, 64
        %v3344 = vpop.permute.xlu0 %3343
        %3345 = vrot.lane.b32.xlu0 %v3251, 64
        %v3346 = vpop.permute.xlu0 %3345
        %3347 = vrot.lane.b32.xlu0 %v3252, 64
        %v3348 = vpop.permute.xlu0 %3347
        %vm3381 = vcmask 523264
        %v3382 = vsel %vm3381, %v938, %v3286
        %v3383 = vsel %vm3381, %v939, %v3288
        %v3384 = vsel %vm3381, %v940, %v3290
        %v3385 = vsel %vm3381, %v941, %v3292
        %v3386 = vsel %vm3381, %v942, %v3294
        %v3387 = vsel %vm3381, %v943, %v3296
        %v3388 = vsel %vm3381, %v944, %v3298
        %v3389 = vsel %vm3381, %v945, %v3300
        %v3390 = vsel %vm3381, %v946, %v3302
        %v3391 = vsel %vm3381, %v947, %v3304
        %v3392 = vsel %vm3381, %v948, %v3306
        %v3393 = vsel %vm3381, %v949, %v3308
        %v3394 = vsel %vm3381, %v950, %v3310
        %v3395 = vsel %vm3381, %v951, %v3312
        %v3396 = vsel %vm3381, %v952, %v3314
        %v3397 = vsel %vm3381, %v953, %v3316
        %v3398 = vsel %vm3381, %v954, %v3318
        %v3399 = vsel %vm3381, %v955, %v3320
        %v3400 = vsel %vm3381, %v956, %v3322
        %v3401 = vsel %vm3381, %v957, %v3324
        %v3402 = vsel %vm3381, %v958, %v3326
        %v3403 = vsel %vm3381, %v959, %v3328
        %v3404 = vsel %vm3381, %v960, %v3330
        %v3405 = vsel %vm3381, %v961, %v3332
        %v3406 = vsel %vm3381, %v962, %v3334
        %v3407 = vsel %vm3381, %v963, %v3336
        %v3408 = vsel %vm3381, %v964, %v3338
        %v3409 = vsel %vm3381, %v965, %v3340
        %v3410 = vsel %vm3381, %v966, %v3342
        %v3411 = vsel %vm3381, %v967, %v3344
        %v3412 = vsel %vm3381, %v968, %v3346
        %v3413 = vsel %vm3381, %v969, %v3348
        %3414 = vst [vmem:[%s217] sm:$0xff] %v3382
        %3415 = vst [vmem:[%s217 + $0x8] sm:$0xff] %v3383
        %3416 = vst [vmem:[%s217 + $0x10] sm:$0xff] %v3384
        %3417 = vst [vmem:[%s217 + $0x18] sm:$0xff] %v3385
        %3418 = vst [vmem:[%s217 + $0x20] sm:$0xff] %v3386
        %3419 = vst [vmem:[%s217 + $0x28] sm:$0xff] %v3387
        %3420 = vst [vmem:[%s217 + $0x30] sm:$0xff] %v3388
        %3421 = vst [vmem:[%s217 + $0x38] sm:$0xff] %v3389
        %3422 = vst [vmem:[%s217 + $0x40] sm:$0xff] %v3390
        %3423 = vst [vmem:[%s217 + $0x48] sm:$0xff] %v3391
        %3424 = vst [vmem:[%s217 + $0x50] sm:$0xff] %v3392
        %3425 = vst [vmem:[%s217 + $0x58] sm:$0xff] %v3393
        %3426 = vst [vmem:[%s217 + $0x60] sm:$0xff] %v3394
        %3427 = vst [vmem:[%s217 + $0x68] sm:$0xff] %v3395
        %3428 = vst [vmem:[%s217 + $0x70] sm:$0xff] %v3396
        %3429 = vst [vmem:[%s217 + $0x78] sm:$0xff] %v3397
        %3430 = vst [vmem:[%s217 + $0x80] sm:$0xff] %v3398
        %3431 = vst [vmem:[%s217 + $0x88] sm:$0xff] %v3399
        %3432 = vst [vmem:[%s217 + $0x90] sm:$0xff] %v3400
        %3433 = vst [vmem:[%s217 + $0x98] sm:$0xff] %v3401
        %3434 = vst [vmem:[%s217 + $0xa0] sm:$0xff] %v3402
        %3435 = vst [vmem:[%s217 + $0xa8] sm:$0xff] %v3403
        %3436 = vst [vmem:[%s217 + $0xb0] sm:$0xff] %v3404
        %3437 = vst [vmem:[%s217 + $0xb8] sm:$0xff] %v3405
        %3438 = vst [vmem:[%s217 + $0xc0] sm:$0xff] %v3406
        %3439 = vst [vmem:[%s217 + $0xc8] sm:$0xff] %v3407
        %3440 = vst [vmem:[%s217 + $0xd0] sm:$0xff] %v3408
        %3441 = vst [vmem:[%s217 + $0xd8] sm:$0xff] %v3409
        %3442 = vst [vmem:[%s217 + $0xe0] sm:$0xff] %v3410
        %3443 = vst [vmem:[%s217 + $0xe8] sm:$0xff] %v3411
        %3444 = vst [vmem:[%s217 + $0xf0] sm:$0xff] %v3412
        %3445 = vst [vmem:[%s217 + $0xf8] sm:$0xff] %v3413
        %s3446 = sand.u32 %s137, 1
        %s3447 = scalar_lea.sflag [#allocation3], %s3446
        %s3448 = sand.u32 %s137, 1
        %s3449 = smul.addr %s3448, 256
        %s3450 = scalar_lea.vmem [#allocation2], %s3449
        // Predicated region
        $region41: #{fire_forward.3} parent=39 // pred_check
          %p3451 = pneg %p147
        $region42: #{fire_forward.3} parent=39 // pred_check_branch
          %3453 = sbr.rel (%p3451) target = $region44
        $region43: #{fire_forward.3} parent=39 // pred_region
          %s3455 = ssub.s32 4096, 4096
          %3456 = vsyncadd %s3447, %s3455
          %s3457 = smul.addr %s19, 32
          %s3458 = smul.addr %s3457, 128
          %s3459 = scalar_lea.hbm %s5, %s3458
          %s3460 = sshll.u32 %s3450, 4
          %s3461 = int_to_ptr.vmem [resolvable:$true] %s3460
          %3466 = dma.vmem_to_hbm [thread:$0]  %s3461, 4096, %s3459, %s3447, 128, 128, 8
        $region44: #{fire_forward.3} parent=39 // pred_fallthru
          _
      $region40: #{fire_forward.3} parent=5 // pred_fallthru
        _
      %p3467 = scmp.le.s32.totalorder 2, %s14
      // Predicated region
      $region45: #{fire_forward.3} parent=5 // pred_check
        %p3468 = pneg %p3467
      $region46: #{fire_forward.3} parent=5 // pred_check_branch
        %3470 = sbr.rel (%p3468) target = $region48
      $region47: #{fire_forward.3} parent=5 // pred_region
        %s3471 = ssub.s32 %s14, 2
        // Predicated region
        $region49: #{fire_forward.3} parent=47 // pred_check
          %p3472 = pneg %p153
        $region50: #{fire_forward.3} parent=47 // pred_check_branch
          %3474 = sbr.rel (%p3472) target = $region52
        $region51: #{fire_forward.3} parent=47 // pred_region
          %s3475 = sand.u32 %s138, 1
          %s3476 = scalar_lea.sflag [#allocation3], %s3475
          %s3477 = sand.u32 %s138, 1
          %s3478 = smul.addr %s3477, 256
          %s3479 = scalar_lea.vmem [#allocation2], %s3478
          %3480 = dma.done %s3476, 4096
        $region52: #{fire_forward.3} parent=47 // pred_fallthru
          _
      $region48: #{fire_forward.3} parent=5 // pred_fallthru
        _
    $region6: #{fire_forward.3} parent=1 // loop_footer
      %s18 = sadd.s32 1, %s14
    $region7: #{fire_forward.3} parent=1 // loop_footer_branch
      %13 = sbr.rel target = $region3
    $region8: #{fire_forward.3} parent=1 // loop_exit
      _
    %3481 = vsyncpa [#allocation3], 1
    %s3482 = scalar_lea.sflag [#allocation3], 1
    %3483 = vsyncpa %s3482, 1

</llo_original>
